<compile_context>
chip_gen: v7x
topology: tpu7x:2x2x1
jax: 0.10.0
libtpu: 0.0.40
codegen_flags: <defaults>
</compile_context>

<pallas_src>
import functools

import jax
import jax.numpy as jnp
from jax.experimental import pallas as pl
from jax.experimental.pallas import tpu as pltpu


# ---------------------------------------------------------------------------
# Feature probe: single-buffered resident blocks (pipeline_mode=pl.Buffered(1)).
# Run once, eagerly, at import time (outside any jit trace); fall back to the
# default double buffering if this JAX/Mosaic build rejects it.
# ---------------------------------------------------------------------------
def _probe_buffered_one():
    def _copy(w_ref, o_ref):
        o_ref[...] = w_ref[...]

    try:
        mode = pl.Buffered(1)
        fn = pl.pallas_call(
            _copy,
            out_shape=jax.ShapeDtypeStruct((16, 128), jnp.float32),
            grid=(2,),
            in_specs=[pl.BlockSpec((8, 128), lambda i: (0, 0), pipeline_mode=mode)],
            out_specs=pl.BlockSpec((8, 128), lambda i: (i, 0)),
        )
        jax.block_until_ready(fn(jnp.zeros((8, 128), jnp.float32)))
        return mode
    except Exception:
        return None


_WEIGHT_PIPELINE_MODE = _probe_buffered_one()


def _device_defaults():
    """Generation-conditional (sequence-tile target, vmem_limit_bytes)."""
    kind = ""
    try:
        kind = jax.devices()[0].device_kind.lower()
    except Exception:
        pass
    vmem_cap = None
    try:
        vmem_cap = pltpu.get_tpu_info().vmem_capacity_bytes
    except Exception:
        pass
    if "v5 lite" in kind or "v5e" in kind:
        # v5e: 128x128 MXU (256-row tiles gain nothing) and 128 MiB VMEM.
        # TODO(synk): spend spare VMEM on Buffered(3) activation row tiles here.
        return 128, 100 * 1024 * 1024
    if vmem_cap is not None and vmem_cap <= 80 * 1024 * 1024:
        # v7x-class: 256-wide MXU but only 64 MiB physical VMEM -> headroom.
        return 256, 56 * 1024 * 1024
    if vmem_cap is not None:
        # v6e-class: 256-wide MXU, 128 MiB VMEM.
        return 256, 100 * 1024 * 1024
    # Unknown part: MXU-friendly tile, conservative VMEM limit.
    return 256, 48 * 1024 * 1024


def _resident_spec(a):
    """Full-array block with a constant index_map: operand stays resident in
    VMEM for the whole grid.  Single-buffered when supported (a constant block
    is never re-fetched, so the second pipeline buffer is pure VMEM waste)."""
    nd = a.ndim
    if _WEIGHT_PIPELINE_MODE is not None:
        return pl.BlockSpec(a.shape, lambda *_: (0,) * nd,
                            pipeline_mode=_WEIGHT_PIPELINE_MODE)
    return pl.BlockSpec(a.shape, lambda *_: (0,) * nd)


def _layernorm(v, w, b, eps=1e-5):
    """One-pass LayerNorm (var = E[x^2] - mu^2): halves cross-lane reductions.
    NOTE: cancellation-prone if |mean| >> std of the activations."""
    inv_d = 1.0 / v.shape[-1]
    mu = jnp.sum(v, axis=-1, keepdims=True) * inv_d
    var = jnp.sum(v * v, axis=-1, keepdims=True) * inv_d - mu * mu
    return (v - mu) * jax.lax.rsqrt(var + eps) * w + b


# ---------------- Stage 1: LN1 + Q/K/V projections ---------------------------
def _ln_qkv_kernel(x_ref, ln1w_ref, ln1b_ref, wq_ref, wk_ref, wv_ref,
                   q_ref, k_ref, v_ref):
    x = x_ref[0]                                                   # (T, C) f32
    h = _layernorm(x, ln1w_ref[0], ln1b_ref[0]).astype(jnp.bfloat16)
    # bf16 x bf16 -> f32 on the MXU.  Softmax scale is pre-folded into W_q and
    # Q/K/V are written as three separate lane-dense (B, N, C) tensors, so no
    # XLA reshape/transpose (HBM round trip) is needed between stages.
    q_ref[0] = jnp.dot(h, wq_ref[...],
                       preferred_element_type=jnp.float32).astype(q_ref.dtype)
    k_ref[0] = jnp.dot(h, wk_ref[...],
                       preferred_element_type=jnp.float32).astype(k_ref.dtype)
    v_ref[0] = jnp.dot(h, wv_ref[...],
                       preferred_element_type=jnp.float32).astype(v_ref.dtype)


# ---------------- Stage 2: multi-head attention ------------------------------
def _attention_kernel(q_ref, k_ref, v_ref, o_ref, *, num_heads):
    # q_ref: (1, T, C) bf16 (Q already scaled); k_ref / v_ref: (1, N, C) bf16.
    # TODO(synk): for long sequences (N >= ~2k) switch to a flash-style inner
    # K-tile grid axis with online softmax so K/V + (T, N) scores stay inside
    # v7x's 64 MiB VMEM.
    Hd = q_ref.shape[-1] // num_heads
    for h in range(num_heads):
        sl = slice(h * Hd, (h + 1) * Hd)
        # Per-head lane slices stay in VMEM: this replaces the previous
        # wrapper-side (B,N,3C)->(B,H,N,Hd) XLA transposes (each a full HBM
        # round trip); a "head-batched" einsum unrolls to the same H MXU
        # matmuls anyway.
        q_h = q_ref[0, :, sl]                                      # (T, Hd)
        k_h = k_ref[0, :, sl]                                      # (N, Hd)
        v_h = v_ref[0, :, sl]                                      # (N, Hd)
        s = jnp.einsum('qd,kd->qk', q_h, k_h,
                       preferred_element_type=jnp.float32)         # (T, N) f32
        s = s - jnp.max(s, axis=-1, keepdims=True)
        p = jnp.exp(s)
        denom = jnp.sum(p, axis=-1, keepdims=True)                  # (T, 1)
        ctx = jnp.dot(p.astype(jnp.bfloat16), v_h,
                      preferred_element_type=jnp.float32)           # (T, Hd)
        # Deferred softmax normalization: scale the (T, Hd) context instead of
        # the (T, N) probabilities (saves T*(N-Hd) multiplies per head and one
        # big temporary); the reciprocal runs on the EUP.
        ctx = ctx * pl.reciprocal(denom, approx=True)
        # HBM-level output block is lane-dense (1, T, C) -> unmasked vst on
        # write-back (not Hd-wide masked stores).
        o_ref[0, :, sl] = ctx.astype(o_ref.dtype)


# ---------------- Stage 3: proj + residual + LN2 + MLP + residual ------------
def _proj_mlp_kernel(x_ref, ctx_ref,
                     wproj_ref, bproj_ref,
                     ln2w_ref, ln2b_ref,
                     wfc1_ref, bfc1_ref,
                     wfc2_ref, bfc2_ref,
                     o_ref):
    x = x_ref[0]                                   # (T, C) f32 residual input
    ctx = ctx_ref[0]                               # (T, C) bf16 attention ctx
    attn_out = jnp.dot(ctx, wproj_ref[...],
                       preferred_element_type=jnp.float32) + bproj_ref[0]
    x1 = x + attn_out                              # residual 1 (f32)

    h = _layernorm(x1, ln2w_ref[0], ln2b_ref[0]).astype(jnp.bfloat16)
    h = jnp.dot(h, wfc1_ref[...],
                preferred_element_type=jnp.float32) + bfc1_ref[0]   # (T, Hm)
    # exact GELU (erf), matches PyTorch nn.GELU default
    h = 0.5 * h * (1.0 + jax.lax.erf(h * (2.0 ** -0.5)))
    h = jnp.dot(h.astype(jnp.bfloat16), wfc2_ref[...],
                preferred_element_type=jnp.float32) + bfc2_ref[0]   # (T, C)
    o_ref[0] = (x1 + h).astype(o_ref.dtype)
    # TODO(synk): for C >= ~1280 on v7x, stream w_fc1/w_fc2 over a K-reduction
    # grid axis (f32 accumulator scratch) instead of keeping them resident.


def _pick_tile_n(n, b, target):
    """Largest 16-aligned divisor of n that is <= target (bf16 blocks want
    16-sublane alignment).  When b == 1, cap at ~n/2 so the grid has >= 2
    parallel steps and both v7x TensorCores get work.  Falls back to T = n
    (full dim, always legal) when n has no aligned divisor."""
    # TODO(synk): pad N + mask attention instead of the T=N fallback for
    # ragged sequence lengths (e.g. ViT's N=197).
    cap = target
    if b == 1:
        cap = min(cap, max(16, n // 2))
    for t in range(min(cap, n), 15, -1):
        if n % t == 0 and t % 16 == 0:
            return t
    return n


def transformer_block(x, params, num_heads, tile_n=None):
    B, N, C = x.shape
    assert C % num_heads == 0
    H = num_heads
    Hd = C // H
    scale = Hd ** -0.5
    Hm = params["w_fc1"].shape[1]

    tile_target, vmem_limit = _device_defaults()
    T = tile_n if tile_n is not None else _pick_tile_n(N, B, tile_target)
    assert N % T == 0
    n_tiles = N // T

    f32, bf16 = jnp.float32, jnp.bfloat16

    # LayerNorm / bias params stay f32; matmul weights bf16 (f32 accumulation).
    ln1_w = params["ln1_w"].astype(f32)
    ln1_b = params["ln1_b"].astype(f32)
    ln2_w = params["ln2_w"].astype(f32)
    ln2_b = params["ln2_b"].astype(f32)
    w_qkv = params["w_qkv"].astype(f32)
    # Softmax scale folded into W_q (zero in-kernel work); split into three
    # (C, C) projections so each stage-1 output is a lane-dense (B, N, C).
    w_q = (w_qkv[:, :C] * scale).astype(bf16)
    w_k = w_qkv[:, C:2 * C].astype(bf16)
    w_v = w_qkv[:, 2 * C:].astype(bf16)
    w_proj = params["w_proj"].astype(bf16)
    b_proj = params["b_proj"].astype(f32)
    w_fc1 = params["w_fc1"].astype(bf16)
    b_fc1 = params["b_fc1"].astype(f32)
    w_fc2 = params["w_fc2"].astype(bf16)
    b_fc2 = params["b_fc2"].astype(f32)

    cparams = pltpu.CompilerParams(
        dimension_semantics=("parallel", "parallel"),
        vmem_limit_bytes=vmem_limit)

    row_tile_ib = pl.BlockSpec((1, T, C), lambda i, b: (b, i, 0))   # grid (tiles, B)
    row_tile_bi = pl.BlockSpec((1, T, C), lambda b, i: (b, i, 0))   # grid (B, tiles)
    full_seq_bi = pl.BlockSpec((1, N, C), lambda b, i: (b, 0, 0))

    # ---- Stage 1: LN1 + Q/K/V ----
    cost1 = pl.CostEstimate(
        flops=6 * B * N * C * C,
        transcendentals=B * N,
        bytes_accessed=4 * B * N * C + 6 * C * C + 6 * B * N * C)
    q, k, v = pl.pallas_call(
        _ln_qkv_kernel,
        out_shape=(jax.ShapeDtypeStruct((B, N, C), bf16),) * 3,
        grid=(n_tiles, B),
        in_specs=[row_tile_ib, _resident_spec(ln1_w), _resident_spec(ln1_b),
                  _resident_spec(w_q), _resident_spec(w_k), _resident_spec(w_v)],
        out_specs=(row_tile_ib,) * 3,
        compiler_params=cparams,
        cost_estimate=cost1,
    )(x, ln1_w, ln1_b, w_q, w_k, w_v)

    # ---- Stage 2: attention.  Grid (batch, q-tiles): the K/V block index is
    # constant across the inner q-tile axis, so K/V are DMA'd once per batch
    # element; scores are bounded to one (T, N) tile per head. ----
    cost2 = pl.CostEstimate(
        flops=4 * B * N * N * C,
        transcendentals=B * H * N * N + B * H * N,
        bytes_accessed=6 * B * N * C + 2 * B * N * C)
    ctx = pl.pallas_call(
        functools.partial(_attention_kernel, num_heads=H),
        out_shape=jax.ShapeDtypeStruct((B, N, C), bf16),
        grid=(B, n_tiles),
        in_specs=[row_tile_bi, full_seq_bi, full_seq_bi],
        out_specs=row_tile_bi,
        compiler_params=cparams,
        cost_estimate=cost2,
    )(q, k, v)

    # ---- Stage 3: proj + residual + LN2 + MLP + residual ----
    cost3 = pl.CostEstimate(
        flops=2 * B * N * (C * C + 2 * C * Hm),
        transcendentals=B * N * (Hm + 1),
        bytes_accessed=10 * B * N * C + 2 * (C * C + 2 * C * Hm))
    out = pl.pallas_call(
        _proj_mlp_kernel,
        out_shape=jax.ShapeDtypeStruct((B, N, C), x.dtype),
        grid=(n_tiles, B),
        in_specs=[row_tile_ib, row_tile_ib,
                  _resident_spec(w_proj), _resident_spec(b_proj),
                  _resident_spec(ln2_w), _resident_spec(ln2_b),
                  _resident_spec(w_fc1), _resident_spec(b_fc1),
                  _resident_spec(w_fc2), _resident_spec(b_fc2)],
        out_specs=row_tile_ib,
        compiler_params=cparams,
        cost_estimate=cost3,
        input_output_aliases={0: 0},   # out aliases x (same shape/dtype)
    )(x, ctx, w_proj, b_proj, ln2_w, ln2_b, w_fc1, b_fc1, w_fc2, b_fc2)

    return out


# ---------------- pure-JAX f32 reference (matches the PyTorch module) --------
def transformer_block_ref(x, params, num_heads):
    B, N, C = x.shape
    H = num_heads
    Hd = C // H
    scale = Hd ** -0.5

    def ln(v, w, b):
        mu = jnp.mean(v, -1, keepdims=True)
        var = jnp.mean((v - mu) ** 2, -1, keepdims=True)
        return (v - mu) / jnp.sqrt(var + 1e-5) * w + b

    h = ln(x, params["ln1_w"], params["ln1_b"])
    qkv = (h @ params["w_qkv"]).reshape(B, N, 3, H, Hd).transpose(2, 0, 3, 1, 4)
    q, k, v = qkv[0], qkv[1], qkv[2]
    attn = jax.nn.softmax((q @ jnp.swapaxes(k, -2, -1)) * scale, axis=-1)
    ctx = (attn @ v).transpose(0, 2, 1, 3).reshape(B, N, C)
    x = x + ctx @ params["w_proj"] + params["b_proj"]
    h2 = ln(x, params["ln2_w"], params["ln2_b"])
    h2 = h2 @ params["w_fc1"] + params["b_fc1"]
    h2 = 0.5 * h2 * (1.0 + jax.lax.erf(h2 * (2.0 ** -0.5)))
    h2 = h2 @ params["w_fc2"] + params["b_fc2"]
    return x + h2


def init_params(key, dim, num_heads, mlp_ratio=4.0):
    hidden = int(dim * mlp_ratio)
    ks = jax.random.split(key, 8)
    std = 0.02
    return {
        "ln1_w": 1.0 + std * jax.random.normal(ks[0], (1, dim), jnp.float32),
        "ln1_b": std * jax.random.normal(ks[1], (1, dim), jnp.float32),
        "ln2_w": 1.0 + std * jax.random.normal(ks[2], (1, dim), jnp.float32),
        "ln2_b": std * jax.random.normal(ks[3], (1, dim), jnp.float32),
        # Linear weights stored (in, out); qkv has no bias (qkv_bias=False)
        "w_qkv": std * jax.random.normal(ks[4], (dim, 3 * dim), jnp.float32),
        "w_proj": std * jax.random.normal(ks[5], (dim, dim), jnp.float32),
        "b_proj": jnp.zeros((1, dim), jnp.float32),
        "w_fc1": std * jax.random.normal(ks[6], (dim, hidden), jnp.float32),
        "b_fc1": jnp.zeros((1, hidden), jnp.float32),
        "w_fc2": std * jax.random.normal(ks[7], (hidden, dim), jnp.float32),
        "b_fc2": jnp.zeros((1, dim), jnp.float32),
    }


if __name__ == "__main__":
    B, N, C = 2, 16, 64
    num_heads = 4

    key = jax.random.PRNGKey(0)
    kx, kp = jax.random.split(key)
    x = jax.random.normal(kx, (B, N, C), jnp.float32)
    params = init_params(kp, C, num_heads)

    fwd = jax.jit(lambda xx, pp: transformer_block(xx, pp, num_heads))
    out = jax.block_until_ready(fwd(x, params))
    assert out.shape == (B, N, C) and out.dtype == jnp.float32

    # bf16 matmul inputs with f32 accumulation (+ approx EUP reciprocal in the
    # softmax) -> generous tolerance vs the f32 reference.
    ref = transformer_block_ref(x, params, num_heads)
    assert jnp.allclose(out, ref, rtol=2e-2, atol=2e-2), \
        float(jnp.max(jnp.abs(out - ref)))
    print("KERNEL_OK")
</pallas_src>

<mosaic_0001>
module attributes {stable_mosaic.version = 11 : i64} {
  func.func @_copy(%arg0: i32, %arg1: memref<8x128xf32, #tpu.memory_space<vmem>>, %arg2: memref<8x128xf32, #tpu.memory_space<vmem>>) attributes {dimension_semantics = [#tpu.dimension_semantics<arbitrary>], iteration_bounds = array<i64: 2>, scalar_prefetch = 0 : i64, scratch_operands = 0 : i64, tpu.core_type = #tpu.core_type<tc>, window_params = [{pipeline_mode = #tpu.pipeline_mode<synchronous>, transform_indices = @transform_0, window_bounds = array<i64: 8, 128>}, {transform_indices = @transform_1, window_bounds = array<i64: 8, 128>}]} {
    %c0 = arith.constant 0 : index
    %c0_0 = arith.constant 0 : index
    %0 = vector.load %arg1[%c0, %c0_0] : memref<8x128xf32, #tpu.memory_space<vmem>>, vector<8x128xf32>
    %c0_1 = arith.constant 0 : index
    %c0_2 = arith.constant 0 : index
    %1 = vector.load %arg2[%c0_1, %c0_2] : memref<8x128xf32, #tpu.memory_space<vmem>>, vector<8x128xf32>
    tpu.vector_store %arg2[%c0_1, %c0_2], %0 {strides = array<i32>} : memref<8x128xf32, #tpu.memory_space<vmem>>, vector<8x128xf32>,
    return
  }
  func.func @transform_0(%arg0: i32) -> (i32, i32) {
    %c0_i32 = arith.constant 0 : i32
    %c0_i32_0 = arith.constant 0 : i32
    %c0_i32_1 = arith.constant 0 : i32
    return %c0_i32, %c0_i32_0 : i32, i32
  }
  func.func @transform_1(%arg0: i32) -> (i32, i32) {
    %c0_i32 = arith.constant 0 : i32
    %c0_i32_0 = arith.constant 0 : i32
    return %arg0, %c0_i32 : i32, i32
  }
}

module attributes {stable_mosaic.version = 11 : i64} {
  func.func @_proj_mlp_kernel(%arg0: i32, %arg1: i32, %arg2: memref<1x16x64xf32, #tpu.memory_space<vmem>>, %arg3: memref<1x16x64xbf16, #tpu.memory_space<vmem>>, %arg4: memref<64x64xbf16, #tpu.memory_space<vmem>>, %arg5: memref<1x64xf32, #tpu.memory_space<vmem>>, %arg6: memref<1x64xf32, #tpu.memory_space<vmem>>, %arg7: memref<1x64xf32, #tpu.memory_space<vmem>>, %arg8: memref<64x256xbf16, #tpu.memory_space<vmem>>, %arg9: memref<1x256xf32, #tpu.memory_space<vmem>>, %arg10: memref<256x64xbf16, #tpu.memory_space<vmem>>, %arg11: memref<1x64xf32, #tpu.memory_space<vmem>>, %arg12: memref<1x16x64xf32, #tpu.memory_space<vmem>>) attributes {dimension_semantics = [#tpu.dimension_semantics<parallel>, #tpu.dimension_semantics<parallel>], iteration_bounds = array<i64: 1, 2>, scalar_prefetch = 0 : i64, scratch_operands = 0 : i64, tpu.core_type = #tpu.core_type<tc>, window_params = [{transform_indices = @transform_0, window_bounds = array<i64: 1, 16, 64>}, {transform_indices = @transform_1, window_bounds = array<i64: 1, 16, 64>}, {pipeline_mode = #tpu.pipeline_mode<synchronous>, transform_indices = @transform_2, window_bounds = array<i64: 64, 64>}, {pipeline_mode = #tpu.pipeline_mode<synchronous>, transform_indices = @transform_3, window_bounds = array<i64: 1, 64>}, {pipeline_mode = #tpu.pipeline_mode<synchronous>, transform_indices = @transform_4, window_bounds = array<i64: 1, 64>}, {pipeline_mode = #tpu.pipeline_mode<synchronous>, transform_indices = @transform_5, window_bounds = array<i64: 1, 64>}, {pipeline_mode = #tpu.pipeline_mode<synchronous>, transform_indices = @transform_6, window_bounds = array<i64: 64, 256>}, {pipeline_mode = #tpu.pipeline_mode<synchronous>, transform_indices = @transform_7, window_bounds = array<i64: 1, 256>}, {pipeline_mode = #tpu.pipeline_mode<synchronous>, transform_indices = @transform_8, window_bounds = array<i64: 256, 64>}, {pipeline_mode = #tpu.pipeline_mode<synchronous>, transform_indices = @transform_9, window_bounds = array<i64: 1, 64>}, {transform_indices = @transform_10, window_bounds = array<i64: 1, 16, 64>}]} {
    %c0 = arith.constant 0 : index
    %c0_0 = arith.constant 0 : index
    %c0_1 = arith.constant 0 : index
    %0 = vector.load %arg2[%c0, %c0_0, %c0_1] : memref<1x16x64xf32, #tpu.memory_space<vmem>>, vector<1x16x64xf32>
    %1 = vector.shape_cast %0 : vector<1x16x64xf32> to vector<16x64xf32>
    %c0_2 = arith.constant 0 : index
    %c0_3 = arith.constant 0 : index
    %c0_4 = arith.constant 0 : index
    %2 = vector.load %arg3[%c0_2, %c0_3, %c0_4] : memref<1x16x64xbf16, #tpu.memory_space<vmem>>, vector<1x16x64xbf16>
    %3 = vector.shape_cast %2 : vector<1x16x64xbf16> to vector<16x64xbf16>
    %c0_5 = arith.constant 0 : index
    %c0_6 = arith.constant 0 : index
    %4 = vector.load %arg4[%c0_5, %c0_6] : memref<64x64xbf16, #tpu.memory_space<vmem>>, vector<64x64xbf16>
    %cst = arith.constant dense<0.000000e+00> : vector<16x64xf32>
    %5 = tpu.matmul %3, %4, %cst {dimension_numbers = #tpu.dot_dimension_numbers<[1], [0], [0], [1], [0, 0, 1, 1], [], []>} : vector<16x64xbf16>, vector<64x64xbf16>, vector<16x64xf32> -> vector<16x64xf32>
    %c0_7 = arith.constant 0 : index
    %c0_8 = arith.constant 0 : index
    %6 = vector.load %arg5[%c0_7, %c0_8] : memref<1x64xf32, #tpu.memory_space<vmem>>, vector<1x64xf32>
    %7 = vector.shape_cast %6 : vector<1x64xf32> to vector<64xf32>
    %8 = vector.shape_cast %7 : vector<64xf32> to vector<1x64xf32>
    %9 = vector.broadcast %8 : vector<1x64xf32> to vector<16x64xf32>
    %10 = arith.addf %5, %9 : vector<16x64xf32>
    %11 = arith.addf %1, %10 : vector<16x64xf32>
    %c0_9 = arith.constant 0 : index
    %c0_10 = arith.constant 0 : index
    %12 = vector.load %arg6[%c0_9, %c0_10] : memref<1x64xf32, #tpu.memory_space<vmem>>, vector<1x64xf32>
    %13 = vector.shape_cast %12 : vector<1x64xf32> to vector<64xf32>
    %c0_11 = arith.constant 0 : index
    %c0_12 = arith.constant 0 : index
    %14 = vector.load %arg7[%c0_11, %c0_12] : memref<1x64xf32, #tpu.memory_space<vmem>>, vector<1x64xf32>
    %15 = vector.shape_cast %14 : vector<1x64xf32> to vector<64xf32>
    %cst_13 = arith.constant dense<0.000000e+00> : vector<16xf32>
    %16 = vector.multi_reduction <add>, %11, %cst_13 [1] : vector<16x64xf32> to vector<16xf32>
    %17 = vector.shape_cast %16 : vector<16xf32> to vector<16x1xf32>
    %cst_14 = arith.constant 1.562500e-02 : f32
    %18 = vector.broadcast %cst_14 : f32 to vector<16x1xf32>
    %19 = arith.mulf %17, %18 : vector<16x1xf32>
    %20 = arith.mulf %11, %11 : vector<16x64xf32>
    %cst_15 = arith.constant dense<0.000000e+00> : vector<16xf32>
    %21 = vector.multi_reduction <add>, %20, %cst_15 [1] : vector<16x64xf32> to vector<16xf32>
    %22 = vector.shape_cast %21 : vector<16xf32> to vector<16x1xf32>
    %cst_16 = arith.constant 1.562500e-02 : f32
    %23 = vector.broadcast %cst_16 : f32 to vector<16x1xf32>
    %24 = arith.mulf %22, %23 : vector<16x1xf32>
    %25 = arith.mulf %19, %19 : vector<16x1xf32>
    %26 = arith.subf %24, %25 : vector<16x1xf32>
    %27 = vector.broadcast %19 : vector<16x1xf32> to vector<16x64xf32>
    %28 = arith.subf %11, %27 : vector<16x64xf32>
    %cst_17 = arith.constant 9.99999974E-6 : f32
    %29 = vector.broadcast %cst_17 : f32 to vector<16x1xf32>
    %30 = arith.addf %26, %29 : vector<16x1xf32>
    %31 = math.rsqrt %30 : vector<16x1xf32>
    %32 = vector.broadcast %31 : vector<16x1xf32> to vector<16x64xf32>
    %33 = arith.mulf %28, %32 : vector<16x64xf32>
    %34 = vector.shape_cast %13 : vector<64xf32> to vector<1x64xf32>
    %35 = vector.broadcast %34 : vector<1x64xf32> to vector<16x64xf32>
    %36 = arith.mulf %33, %35 : vector<16x64xf32>
    %37 = vector.shape_cast %15 : vector<64xf32> to vector<1x64xf32>
    %38 = vector.broadcast %37 : vector<1x64xf32> to vector<16x64xf32>
    %39 = arith.addf %36, %38 : vector<16x64xf32>
    %40 = arith.truncf %39 : vector<16x64xf32> to vector<16x64xbf16>
    %c0_18 = arith.constant 0 : index
    %c0_19 = arith.constant 0 : index
    %41 = vector.load %arg8[%c0_18, %c0_19] : memref<64x256xbf16, #tpu.memory_space<vmem>>, vector<64x256xbf16>
    %cst_20 = arith.constant dense<0.000000e+00> : vector<16x256xf32>
    %42 = tpu.matmul %40, %41, %cst_20 {dimension_numbers = #tpu.dot_dimension_numbers<[1], [0], [0], [1], [0, 0, 1, 1], [], []>} : vector<16x64xbf16>, vector<64x256xbf16>, vector<16x256xf32> -> vector<16x256xf32>
    %c0_21 = arith.constant 0 : index
    %c0_22 = arith.constant 0 : index
    %43 = vector.load %arg9[%c0_21, %c0_22] : memref<1x256xf32, #tpu.memory_space<vmem>>, vector<1x256xf32>
    %44 = vector.shape_cast %43 : vector<1x256xf32> to vector<256xf32>
    %45 = vector.shape_cast %44 : vector<256xf32> to vector<1x256xf32>
    %46 = vector.broadcast %45 : vector<1x256xf32> to vector<16x256xf32>
    %47 = arith.addf %42, %46 : vector<16x256xf32>
    %cst_23 = arith.constant 5.000000e-01 : f32
    %48 = vector.broadcast %cst_23 : f32 to vector<16x256xf32>
    %49 = arith.mulf %48, %47 : vector<16x256xf32>
    %cst_24 = arith.constant 0.707106769 : f32
    %50 = vector.broadcast %cst_24 : f32 to vector<16x256xf32>
    %51 = arith.mulf %47, %50 : vector<16x256xf32>
    %52 = math.erf %51 : vector<16x256xf32>
    %cst_25 = arith.constant 1.000000e+00 : f32
    %53 = vector.broadcast %cst_25 : f32 to vector<16x256xf32>
    %54 = arith.addf %53, %52 : vector<16x256xf32>
    %55 = arith.mulf %49, %54 : vector<16x256xf32>
    %56 = arith.truncf %55 : vector<16x256xf32> to vector<16x256xbf16>
    %c0_26 = arith.constant 0 : index
    %c0_27 = arith.constant 0 : index
    %57 = vector.load %arg10[%c0_26, %c0_27] : memref<256x64xbf16, #tpu.memory_space<vmem>>, vector<256x64xbf16>
    %cst_28 = arith.constant dense<0.000000e+00> : vector<16x64xf32>
    %58 = tpu.matmul %56, %57, %cst_28 {dimension_numbers = #tpu.dot_dimension_numbers<[1], [0], [0], [1], [0, 0, 1, 1], [], []>} : vector<16x256xbf16>, vector<256x64xbf16>, vector<16x64xf32> -> vector<16x64xf32>
    %c0_29 = arith.constant 0 : index
    %c0_30 = arith.constant 0 : index
    %59 = vector.load %arg11[%c0_29, %c0_30] : memref<1x64xf32, #tpu.memory_space<vmem>>, vector<1x64xf32>
    %60 = vector.shape_cast %59 : vector<1x64xf32> to vector<64xf32>
    %61 = vector.shape_cast %60 : vector<64xf32> to vector<1x64xf32>
    %62 = vector.broadcast %61 : vector<1x64xf32> to vector<16x64xf32>
    %63 = arith.addf %58, %62 : vector<16x64xf32>
    %64 = arith.addf %11, %63 : vector<16x64xf32>
    %c0_31 = arith.constant 0 : index
    %c0_32 = arith.constant 0 : index
    %c0_33 = arith.constant 0 : index
    %65 = vector.load %arg12[%c0_31, %c0_32, %c0_33] : memref<1x16x64xf32, #tpu.memory_space<vmem>>, vector<1x16x64xf32>
    %66 = vector.shape_cast %65 : vector<1x16x64xf32> to vector<16x64xf32>
    %67 = vector.shape_cast %64 : vector<16x64xf32> to vector<1x16x64xf32>
    tpu.vector_store %arg12[%c0_31, %c0_32, %c0_33], %67 {strides = array<i32>} : memref<1x16x64xf32, #tpu.memory_space<vmem>>, vector<1x16x64xf32>,
    return
  }
  func.func @transform_0(%arg0: i32, %arg1: i32) -> (i32, i32, i32) {
    %c0_i32 = arith.constant 0 : i32
    %c0_i32_0 = arith.constant 0 : i32
    return %arg1, %arg0, %c0_i32 : i32, i32, i32
  }
  func.func @transform_1(%arg0: i32, %arg1: i32) -> (i32, i32, i32) {
    %c0_i32 = arith.constant 0 : i32
    %c0_i32_0 = arith.constant 0 : i32
    return %arg1, %arg0, %c0_i32 : i32, i32, i32
  }
  func.func @transform_2(%arg0: i32, %arg1: i32) -> (i32, i32) {
    %c0_i32 = arith.constant 0 : i32
    %c0_i32_0 = arith.constant 0 : i32
    %c0_i32_1 = arith.constant 0 : i32
    return %c0_i32, %c0_i32_0 : i32, i32
  }
  func.func @transform_3(%arg0: i32, %arg1: i32) -> (i32, i32) {
    %c0_i32 = arith.constant 0 : i32
    %c0_i32_0 = arith.constant 0 : i32
    %c0_i32_1 = arith.constant 0 : i32
    return %c0_i32, %c0_i32_0 : i32, i32
  }
  func.func @transform_4(%arg0: i32, %arg1: i32) -> (i32, i32) {
    %c0_i32 = arith.constant 0 : i32
    %c0_i32_0 = arith.constant 0 : i32
    %c0_i32_1 = arith.constant 0 : i32
    return %c0_i32, %c0_i32_0 : i32, i32
  }
  func.func @transform_5(%arg0: i32, %arg1: i32) -> (i32, i32) {
    %c0_i32 = arith.constant 0 : i32
    %c0_i32_0 = arith.constant 0 : i32
    %c0_i32_1 = arith.constant 0 : i32
    return %c0_i32, %c0_i32_0 : i32, i32
  }
  func.func @transform_6(%arg0: i32, %arg1: i32) -> (i32, i32) {
    %c0_i32 = arith.constant 0 : i32
    %c0_i32_0 = arith.constant 0 : i32
    %c0_i32_1 = arith.constant 0 : i32
    return %c0_i32, %c0_i32_0 : i32, i32
  }
  func.func @transform_7(%arg0: i32, %arg1: i32) -> (i32, i32) {
    %c0_i32 = arith.constant 0 : i32
    %c0_i32_0 = arith.constant 0 : i32
    %c0_i32_1 = arith.constant 0 : i32
    return %c0_i32, %c0_i32_0 : i32, i32
  }
  func.func @transform_8(%arg0: i32, %arg1: i32) -> (i32, i32) {
    %c0_i32 = arith.constant 0 : i32
    %c0_i32_0 = arith.constant 0 : i32
    %c0_i32_1 = arith.constant 0 : i32
    return %c0_i32, %c0_i32_0 : i32, i32
  }
  func.func @transform_9(%arg0: i32, %arg1: i32) -> (i32, i32) {
    %c0_i32 = arith.constant 0 : i32
    %c0_i32_0 = arith.constant 0 : i32
    %c0_i32_1 = arith.constant 0 : i32
    return %c0_i32, %c0_i32_0 : i32, i32
  }
  func.func @transform_10(%arg0: i32, %arg1: i32) -> (i32, i32, i32) {
    %c0_i32 = arith.constant 0 : i32
    %c0_i32_0 = arith.constant 0 : i32
    return %arg1, %arg0, %c0_i32 : i32, i32, i32
  }
}

module attributes {stable_mosaic.version = 11 : i64} {
  func.func @_ln_qkv_kernel(%arg0: i32, %arg1: i32, %arg2: memref<1x16x64xf32, #tpu.memory_space<vmem>>, %arg3: memref<1x64xf32, #tpu.memory_space<vmem>>, %arg4: memref<1x64xf32, #tpu.memory_space<vmem>>, %arg5: memref<64x64xbf16, #tpu.memory_space<vmem>>, %arg6: memref<64x64xbf16, #tpu.memory_space<vmem>>, %arg7: memref<64x64xbf16, #tpu.memory_space<vmem>>, %arg8: memref<1x16x64xbf16, #tpu.memory_space<vmem>>, %arg9: memref<1x16x64xbf16, #tpu.memory_space<vmem>>, %arg10: memref<1x16x64xbf16, #tpu.memory_space<vmem>>) attributes {dimension_semantics = [#tpu.dimension_semantics<parallel>, #tpu.dimension_semantics<parallel>], iteration_bounds = array<i64: 1, 2>, scalar_prefetch = 0 : i64, scratch_operands = 0 : i64, tpu.core_type = #tpu.core_type<tc>, window_params = [{transform_indices = @transform_0, window_bounds = array<i64: 1, 16, 64>}, {pipeline_mode = #tpu.pipeline_mode<synchronous>, transform_indices = @transform_1, window_bounds = array<i64: 1, 64>}, {pipeline_mode = #tpu.pipeline_mode<synchronous>, transform_indices = @transform_2, window_bounds = array<i64: 1, 64>}, {pipeline_mode = #tpu.pipeline_mode<synchronous>, transform_indices = @transform_3, window_bounds = array<i64: 64, 64>}, {pipeline_mode = #tpu.pipeline_mode<synchronous>, transform_indices = @transform_4, window_bounds = array<i64: 64, 64>}, {pipeline_mode = #tpu.pipeline_mode<synchronous>, transform_indices = @transform_5, window_bounds = array<i64: 64, 64>}, {transform_indices = @transform_6, window_bounds = array<i64: 1, 16, 64>}, {transform_indices = @transform_7, window_bounds = array<i64: 1, 16, 64>}, {transform_indices = @transform_8, window_bounds = array<i64: 1, 16, 64>}]} {
    %c0 = arith.constant 0 : index
    %c0_0 = arith.constant 0 : index
    %c0_1 = arith.constant 0 : index
    %0 = vector.load %arg2[%c0, %c0_0, %c0_1] : memref<1x16x64xf32, #tpu.memory_space<vmem>>, vector<1x16x64xf32>
    %1 = vector.shape_cast %0 : vector<1x16x64xf32> to vector<16x64xf32>
    %c0_2 = arith.constant 0 : index
    %c0_3 = arith.constant 0 : index
    %2 = vector.load %arg3[%c0_2, %c0_3] : memref<1x64xf32, #tpu.memory_space<vmem>>, vector<1x64xf32>
    %3 = vector.shape_cast %2 : vector<1x64xf32> to vector<64xf32>
    %c0_4 = arith.constant 0 : index
    %c0_5 = arith.constant 0 : index
    %4 = vector.load %arg4[%c0_4, %c0_5] : memref<1x64xf32, #tpu.memory_space<vmem>>, vector<1x64xf32>
    %5 = vector.shape_cast %4 : vector<1x64xf32> to vector<64xf32>
    %cst = arith.constant dense<0.000000e+00> : vector<16xf32>
    %6 = vector.multi_reduction <add>, %1, %cst [1] : vector<16x64xf32> to vector<16xf32>
    %7 = vector.shape_cast %6 : vector<16xf32> to vector<16x1xf32>
    %cst_6 = arith.constant 1.562500e-02 : f32
    %8 = vector.broadcast %cst_6 : f32 to vector<16x1xf32>
    %9 = arith.mulf %7, %8 : vector<16x1xf32>
    %10 = arith.mulf %1, %1 : vector<16x64xf32>
    %cst_7 = arith.constant dense<0.000000e+00> : vector<16xf32>
    %11 = vector.multi_reduction <add>, %10, %cst_7 [1] : vector<16x64xf32> to vector<16xf32>
    %12 = vector.shape_cast %11 : vector<16xf32> to vector<16x1xf32>
    %cst_8 = arith.constant 1.562500e-02 : f32
    %13 = vector.broadcast %cst_8 : f32 to vector<16x1xf32>
    %14 = arith.mulf %12, %13 : vector<16x1xf32>
    %15 = arith.mulf %9, %9 : vector<16x1xf32>
    %16 = arith.subf %14, %15 : vector<16x1xf32>
    %17 = vector.broadcast %9 : vector<16x1xf32> to vector<16x64xf32>
    %18 = arith.subf %1, %17 : vector<16x64xf32>
    %cst_9 = arith.constant 9.99999974E-6 : f32
    %19 = vector.broadcast %cst_9 : f32 to vector<16x1xf32>
    %20 = arith.addf %16, %19 : vector<16x1xf32>
    %21 = math.rsqrt %20 : vector<16x1xf32>
    %22 = vector.broadcast %21 : vector<16x1xf32> to vector<16x64xf32>
    %23 = arith.mulf %18, %22 : vector<16x64xf32>
    %24 = vector.shape_cast %3 : vector<64xf32> to vector<1x64xf32>
    %25 = vector.broadcast %24 : vector<1x64xf32> to vector<16x64xf32>
    %26 = arith.mulf %23, %25 : vector<16x64xf32>
    %27 = vector.shape_cast %5 : vector<64xf32> to vector<1x64xf32>
    %28 = vector.broadcast %27 : vector<1x64xf32> to vector<16x64xf32>
    %29 = arith.addf %26, %28 : vector<16x64xf32>
    %30 = arith.truncf %29 : vector<16x64xf32> to vector<16x64xbf16>
    %c0_10 = arith.constant 0 : index
    %c0_11 = arith.constant 0 : index
    %31 = vector.load %arg5[%c0_10, %c0_11] : memref<64x64xbf16, #tpu.memory_space<vmem>>, vector<64x64xbf16>
    %cst_12 = arith.constant dense<0.000000e+00> : vector<16x64xf32>
    %32 = tpu.matmul %30, %31, %cst_12 {dimension_numbers = #tpu.dot_dimension_numbers<[1], [0], [0], [1], [0, 0, 1, 1], [], []>} : vector<16x64xbf16>, vector<64x64xbf16>, vector<16x64xf32> -> vector<16x64xf32>
    %33 = arith.truncf %32 : vector<16x64xf32> to vector<16x64xbf16>
    %c0_13 = arith.constant 0 : index
    %c0_14 = arith.constant 0 : index
    %c0_15 = arith.constant 0 : index
    %34 = vector.load %arg8[%c0_13, %c0_14, %c0_15] : memref<1x16x64xbf16, #tpu.memory_space<vmem>>, vector<1x16x64xbf16>
    %35 = vector.shape_cast %34 : vector<1x16x64xbf16> to vector<16x64xbf16>
    %36 = vector.shape_cast %33 : vector<16x64xbf16> to vector<1x16x64xbf16>
    tpu.vector_store %arg8[%c0_13, %c0_14, %c0_15], %36 {strides = array<i32>} : memref<1x16x64xbf16, #tpu.memory_space<vmem>>, vector<1x16x64xbf16>,
    %c0_16 = arith.constant 0 : index
    %c0_17 = arith.constant 0 : index
    %37 = vector.load %arg6[%c0_16, %c0_17] : memref<64x64xbf16, #tpu.memory_space<vmem>>, vector<64x64xbf16>
    %cst_18 = arith.constant dense<0.000000e+00> : vector<16x64xf32>
    %38 = tpu.matmul %30, %37, %cst_18 {dimension_numbers = #tpu.dot_dimension_numbers<[1], [0], [0], [1], [0, 0, 1, 1], [], []>} : vector<16x64xbf16>, vector<64x64xbf16>, vector<16x64xf32> -> vector<16x64xf32>
    %39 = arith.truncf %38 : vector<16x64xf32> to vector<16x64xbf16>
    %c0_19 = arith.constant 0 : index
    %c0_20 = arith.constant 0 : index
    %c0_21 = arith.constant 0 : index
    %40 = vector.load %arg9[%c0_19, %c0_20, %c0_21] : memref<1x16x64xbf16, #tpu.memory_space<vmem>>, vector<1x16x64xbf16>
    %41 = vector.shape_cast %40 : vector<1x16x64xbf16> to vector<16x64xbf16>
    %42 = vector.shape_cast %39 : vector<16x64xbf16> to vector<1x16x64xbf16>
    tpu.vector_store %arg9[%c0_19, %c0_20, %c0_21], %42 {strides = array<i32>} : memref<1x16x64xbf16, #tpu.memory_space<vmem>>, vector<1x16x64xbf16>,
    %c0_22 = arith.constant 0 : index
    %c0_23 = arith.constant 0 : index
    %43 = vector.load %arg7[%c0_22, %c0_23] : memref<64x64xbf16, #tpu.memory_space<vmem>>, vector<64x64xbf16>
    %cst_24 = arith.constant dense<0.000000e+00> : vector<16x64xf32>
    %44 = tpu.matmul %30, %43, %cst_24 {dimension_numbers = #tpu.dot_dimension_numbers<[1], [0], [0], [1], [0, 0, 1, 1], [], []>} : vector<16x64xbf16>, vector<64x64xbf16>, vector<16x64xf32> -> vector<16x64xf32>
    %45 = arith.truncf %44 : vector<16x64xf32> to vector<16x64xbf16>
    %c0_25 = arith.constant 0 : index
    %c0_26 = arith.constant 0 : index
    %c0_27 = arith.constant 0 : index
    %46 = vector.load %arg10[%c0_25, %c0_26, %c0_27] : memref<1x16x64xbf16, #tpu.memory_space<vmem>>, vector<1x16x64xbf16>
    %47 = vector.shape_cast %46 : vector<1x16x64xbf16> to vector<16x64xbf16>
    %48 = vector.shape_cast %45 : vector<16x64xbf16> to vector<1x16x64xbf16>
    tpu.vector_store %arg10[%c0_25, %c0_26, %c0_27], %48 {strides = array<i32>} : memref<1x16x64xbf16, #tpu.memory_space<vmem>>, vector<1x16x64xbf16>,
    return
  }
  func.func @transform_0(%arg0: i32, %arg1: i32) -> (i32, i32, i32) {
    %c0_i32 = arith.constant 0 : i32
    %c0_i32_0 = arith.constant 0 : i32
    return %arg1, %arg0, %c0_i32 : i32, i32, i32
  }
  func.func @transform_1(%arg0: i32, %arg1: i32) -> (i32, i32) {
    %c0_i32 = arith.constant 0 : i32
    %c0_i32_0 = arith.constant 0 : i32
    %c0_i32_1 = arith.constant 0 : i32
    return %c0_i32, %c0_i32_0 : i32, i32
  }
  func.func @transform_2(%arg0: i32, %arg1: i32) -> (i32, i32) {
    %c0_i32 = arith.constant 0 : i32
    %c0_i32_0 = arith.constant 0 : i32
    %c0_i32_1 = arith.constant 0 : i32
    return %c0_i32, %c0_i32_0 : i32, i32
  }
  func.func @transform_3(%arg0: i32, %arg1: i32) -> (i32, i32) {
    %c0_i32 = arith.constant 0 : i32
    %c0_i32_0 = arith.constant 0 : i32
    %c0_i32_1 = arith.constant 0 : i32
    return %c0_i32, %c0_i32_0 : i32, i32
  }
  func.func @transform_4(%arg0: i32, %arg1: i32) -> (i32, i32) {
    %c0_i32 = arith.constant 0 : i32
    %c0_i32_0 = arith.constant 0 : i32
    %c0_i32_1 = arith.constant 0 : i32
    return %c0_i32, %c0_i32_0 : i32, i32
  }
  func.func @transform_5(%arg0: i32, %arg1: i32) -> (i32, i32) {
    %c0_i32 = arith.constant 0 : i32
    %c0_i32_0 = arith.constant 0 : i32
    %c0_i32_1 = arith.constant 0 : i32
    return %c0_i32, %c0_i32_0 : i32, i32
  }
  func.func @transform_6(%arg0: i32, %arg1: i32) -> (i32, i32, i32) {
    %c0_i32 = arith.constant 0 : i32
    %c0_i32_0 = arith.constant 0 : i32
    return %arg1, %arg0, %c0_i32 : i32, i32, i32
  }
  func.func @transform_7(%arg0: i32, %arg1: i32) -> (i32, i32, i32) {
    %c0_i32 = arith.constant 0 : i32
    %c0_i32_0 = arith.constant 0 : i32
    return %arg1, %arg0, %c0_i32 : i32, i32, i32
  }
  func.func @transform_8(%arg0: i32, %arg1: i32) -> (i32, i32, i32) {
    %c0_i32 = arith.constant 0 : i32
    %c0_i32_0 = arith.constant 0 : i32
    return %arg1, %arg0, %c0_i32 : i32, i32, i32
  }
}

module attributes {stable_mosaic.version = 11 : i64} {
  func.func @_attention_kernel(%arg0: i32, %arg1: i32, %arg2: memref<1x16x64xbf16, #tpu.memory_space<vmem>>, %arg3: memref<1x16x64xbf16, #tpu.memory_space<vmem>>, %arg4: memref<1x16x64xbf16, #tpu.memory_space<vmem>>, %arg5: memref<1x16x64xbf16, #tpu.memory_space<vmem>>) attributes {dimension_semantics = [#tpu.dimension_semantics<parallel>, #tpu.dimension_semantics<parallel>], iteration_bounds = array<i64: 2, 1>, scalar_prefetch = 0 : i64, scratch_operands = 0 : i64, tpu.core_type = #tpu.core_type<tc>, window_params = [{transform_indices = @transform_0, window_bounds = array<i64: 1, 16, 64>}, {transform_indices = @transform_1, window_bounds = array<i64: 1, 16, 64>}, {transform_indices = @transform_2, window_bounds = array<i64: 1, 16, 64>}, {transform_indices = @transform_3, window_bounds = array<i64: 1, 16, 64>}]} {
    %c0 = arith.constant 0 : index
    %c0_0 = arith.constant 0 : index
    %c0_1 = arith.constant 0 : index
    %0 = vector.load %arg2[%c0, %c0_0, %c0_1] : memref<1x16x64xbf16, #tpu.memory_space<vmem>>, vector<1x16x16xbf16>
    %1 = vector.shape_cast %0 : vector<1x16x16xbf16> to vector<16x16xbf16>
    %c0_2 = arith.constant 0 : index
    %c0_3 = arith.constant 0 : index
    %c0_4 = arith.constant 0 : index
    %2 = vector.load %arg3[%c0_2, %c0_3, %c0_4] : memref<1x16x64xbf16, #tpu.memory_space<vmem>>, vector<1x16x16xbf16>
    %3 = vector.shape_cast %2 : vector<1x16x16xbf16> to vector<16x16xbf16>
    %c0_5 = arith.constant 0 : index
    %c0_6 = arith.constant 0 : index
    %c0_7 = arith.constant 0 : index
    %4 = vector.load %arg4[%c0_5, %c0_6, %c0_7] : memref<1x16x64xbf16, #tpu.memory_space<vmem>>, vector<1x16x16xbf16>
    %5 = vector.shape_cast %4 : vector<1x16x16xbf16> to vector<16x16xbf16>
    "tpu.trace_start"() <{level = 10 : i32, message = "qd,kd->qk"}> : () -> ()
    %cst = arith.constant dense<0.000000e+00> : vector<16x16xf32>
    %6 = tpu.matmul %1, %3, %cst {dimension_numbers = #tpu.dot_dimension_numbers<[1], [1], [0], [0], [0, 0, 1, 0], [], []>} : vector<16x16xbf16>, vector<16x16xbf16>, vector<16x16xf32> -> vector<16x16xf32>
    "tpu.trace_stop"() : () -> ()
    %cst_8 = arith.constant dense<0xFF800000> : vector<16xf32>
    %7 = vector.multi_reduction <maximumf>, %6, %cst_8 [1] : vector<16x16xf32> to vector<16xf32>
    %8 = vector.shape_cast %7 : vector<16xf32> to vector<16x1xf32>
    %9 = vector.broadcast %8 : vector<16x1xf32> to vector<16x16xf32>
    %10 = arith.subf %6, %9 : vector<16x16xf32>
    %11 = math.exp %10 : vector<16x16xf32>
    %cst_9 = arith.constant dense<0.000000e+00> : vector<16xf32>
    %12 = vector.multi_reduction <add>, %11, %cst_9 [1] : vector<16x16xf32> to vector<16xf32>
    %13 = vector.shape_cast %12 : vector<16xf32> to vector<16x1xf32>
    %14 = arith.truncf %11 : vector<16x16xf32> to vector<16x16xbf16>
    %cst_10 = arith.constant dense<0.000000e+00> : vector<16x16xf32>
    %15 = tpu.matmul %14, %5, %cst_10 {dimension_numbers = #tpu.dot_dimension_numbers<[1], [0], [0], [1], [0, 0, 1, 1], [], []>} : vector<16x16xbf16>, vector<16x16xbf16>, vector<16x16xf32> -> vector<16x16xf32>
    %16 = tpu.reciprocal %13 {approx = true} : vector<16x1xf32> -> vector<16x1xf32>
    %17 = vector.broadcast %16 : vector<16x1xf32> to vector<16x16xf32>
    %18 = arith.mulf %15, %17 : vector<16x16xf32>
    %19 = arith.truncf %18 : vector<16x16xf32> to vector<16x16xbf16>
    %c0_11 = arith.constant 0 : index
    %c0_12 = arith.constant 0 : index
    %c0_13 = arith.constant 0 : index
    %20 = vector.load %arg5[%c0_11, %c0_12, %c0_13] : memref<1x16x64xbf16, #tpu.memory_space<vmem>>, vector<1x16x16xbf16>
    %21 = vector.shape_cast %20 : vector<1x16x16xbf16> to vector<16x16xbf16>
    %22 = vector.shape_cast %19 : vector<16x16xbf16> to vector<1x16x16xbf16>
    tpu.vector_store %arg5[%c0_11, %c0_12, %c0_13], %22 {strides = array<i32>} : memref<1x16x64xbf16, #tpu.memory_space<vmem>>, vector<1x16x16xbf16>,
    %c0_14 = arith.constant 0 : index
    %c0_15 = arith.constant 0 : index
    %c16 = arith.constant 16 : index
    %23 = vector.load %arg2[%c0_14, %c0_15, %c16] : memref<1x16x64xbf16, #tpu.memory_space<vmem>>, vector<1x16x16xbf16>
    %24 = vector.shape_cast %23 : vector<1x16x16xbf16> to vector<16x16xbf16>
    %c0_16 = arith.constant 0 : index
    %c0_17 = arith.constant 0 : index
    %c16_18 = arith.constant 16 : index
    %25 = vector.load %arg3[%c0_16, %c0_17, %c16_18] : memref<1x16x64xbf16, #tpu.memory_space<vmem>>, vector<1x16x16xbf16>
    %26 = vector.shape_cast %25 : vector<1x16x16xbf16> to vector<16x16xbf16>
    %c0_19 = arith.constant 0 : index
    %c0_20 = arith.constant 0 : index
    %c16_21 = arith.constant 16 : index
    %27 = vector.load %arg4[%c0_19, %c0_20, %c16_21] : memref<1x16x64xbf16, #tpu.memory_space<vmem>>, vector<1x16x16xbf16>
    %28 = vector.shape_cast %27 : vector<1x16x16xbf16> to vector<16x16xbf16>
    "tpu.trace_start"() <{level = 10 : i32, message = "qd,kd->qk"}> : () -> ()
    %cst_22 = arith.constant dense<0.000000e+00> : vector<16x16xf32>
    %29 = tpu.matmul %24, %26, %cst_22 {dimension_numbers = #tpu.dot_dimension_numbers<[1], [1], [0], [0], [0, 0, 1, 0], [], []>} : vector<16x16xbf16>, vector<16x16xbf16>, vector<16x16xf32> -> vector<16x16xf32>
    "tpu.trace_stop"() : () -> ()
    %cst_23 = arith.constant dense<0xFF800000> : vector<16xf32>
    %30 = vector.multi_reduction <maximumf>, %29, %cst_23 [1] : vector<16x16xf32> to vector<16xf32>
    %31 = vector.shape_cast %30 : vector<16xf32> to vector<16x1xf32>
    %32 = vector.broadcast %31 : vector<16x1xf32> to vector<16x16xf32>
    %33 = arith.subf %29, %32 : vector<16x16xf32>
    %34 = math.exp %33 : vector<16x16xf32>
    %cst_24 = arith.constant dense<0.000000e+00> : vector<16xf32>
    %35 = vector.multi_reduction <add>, %34, %cst_24 [1] : vector<16x16xf32> to vector<16xf32>
    %36 = vector.shape_cast %35 : vector<16xf32> to vector<16x1xf32>
    %37 = arith.truncf %34 : vector<16x16xf32> to vector<16x16xbf16>
    %cst_25 = arith.constant dense<0.000000e+00> : vector<16x16xf32>
    %38 = tpu.matmul %37, %28, %cst_25 {dimension_numbers = #tpu.dot_dimension_numbers<[1], [0], [0], [1], [0, 0, 1, 1], [], []>} : vector<16x16xbf16>, vector<16x16xbf16>, vector<16x16xf32> -> vector<16x16xf32>
    %39 = tpu.reciprocal %36 {approx = true} : vector<16x1xf32> -> vector<16x1xf32>
    %40 = vector.broadcast %39 : vector<16x1xf32> to vector<16x16xf32>
    %41 = arith.mulf %38, %40 : vector<16x16xf32>
    %42 = arith.truncf %41 : vector<16x16xf32> to vector<16x16xbf16>
    %c0_26 = arith.constant 0 : index
    %c0_27 = arith.constant 0 : index
    %c16_28 = arith.constant 16 : index
    %43 = vector.load %arg5[%c0_26, %c0_27, %c16_28] : memref<1x16x64xbf16, #tpu.memory_space<vmem>>, vector<1x16x16xbf16>
    %44 = vector.shape_cast %43 : vector<1x16x16xbf16> to vector<16x16xbf16>
    %45 = vector.shape_cast %42 : vector<16x16xbf16> to vector<1x16x16xbf16>
    tpu.vector_store %arg5[%c0_26, %c0_27, %c16_28], %45 {strides = array<i32>} : memref<1x16x64xbf16, #tpu.memory_space<vmem>>, vector<1x16x16xbf16>,
    %c0_29 = arith.constant 0 : index
    %c0_30 = arith.constant 0 : index
    %c32 = arith.constant 32 : index
    %46 = vector.load %arg2[%c0_29, %c0_30, %c32] : memref<1x16x64xbf16, #tpu.memory_space<vmem>>, vector<1x16x16xbf16>
    %47 = vector.shape_cast %46 : vector<1x16x16xbf16> to vector<16x16xbf16>
    %c0_31 = arith.constant 0 : index
    %c0_32 = arith.constant 0 : index
    %c32_33 = arith.constant 32 : index
    %48 = vector.load %arg3[%c0_31, %c0_32, %c32_33] : memref<1x16x64xbf16, #tpu.memory_space<vmem>>, vector<1x16x16xbf16>
    %49 = vector.shape_cast %48 : vector<1x16x16xbf16> to vector<16x16xbf16>
    %c0_34 = arith.constant 0 : index
    %c0_35 = arith.constant 0 : index
    %c32_36 = arith.constant 32 : index
    %50 = vector.load %arg4[%c0_34, %c0_35, %c32_36] : memref<1x16x64xbf16, #tpu.memory_space<vmem>>, vector<1x16x16xbf16>
    %51 = vector.shape_cast %50 : vector<1x16x16xbf16> to vector<16x16xbf16>
    "tpu.trace_start"() <{level = 10 : i32, message = "qd,kd->qk"}> : () -> ()
    %cst_37 = arith.constant dense<0.000000e+00> : vector<16x16xf32>
    %52 = tpu.matmul %47, %49, %cst_37 {dimension_numbers = #tpu.dot_dimension_numbers<[1], [1], [0], [0], [0, 0, 1, 0], [], []>} : vector<16x16xbf16>, vector<16x16xbf16>, vector<16x16xf32> -> vector<16x16xf32>
    "tpu.trace_stop"() : () -> ()
    %cst_38 = arith.constant dense<0xFF800000> : vector<16xf32>
    %53 = vector.multi_reduction <maximumf>, %52, %cst_38 [1] : vector<16x16xf32> to vector<16xf32>
    %54 = vector.shape_cast %53 : vector<16xf32> to vector<16x1xf32>
    %55 = vector.broadcast %54 : vector<16x1xf32> to vector<16x16xf32>
    %56 = arith.subf %52, %55 : vector<16x16xf32>
    %57 = math.exp %56 : vector<16x16xf32>
    %cst_39 = arith.constant dense<0.000000e+00> : vector<16xf32>
    %58 = vector.multi_reduction <add>, %57, %cst_39 [1] : vector<16x16xf32> to vector<16xf32>
    %59 = vector.shape_cast %58 : vector<16xf32> to vector<16x1xf32>
    %60 = arith.truncf %57 : vector<16x16xf32> to vector<16x16xbf16>
    %cst_40 = arith.constant dense<0.000000e+00> : vector<16x16xf32>
    %61 = tpu.matmul %60, %51, %cst_40 {dimension_numbers = #tpu.dot_dimension_numbers<[1], [0], [0], [1], [0, 0, 1, 1], [], []>} : vector<16x16xbf16>, vector<16x16xbf16>, vector<16x16xf32> -> vector<16x16xf32>
    %62 = tpu.reciprocal %59 {approx = true} : vector<16x1xf32> -> vector<16x1xf32>
    %63 = vector.broadcast %62 : vector<16x1xf32> to vector<16x16xf32>
    %64 = arith.mulf %61, %63 : vector<16x16xf32>
    %65 = arith.truncf %64 : vector<16x16xf32> to vector<16x16xbf16>
    %c0_41 = arith.constant 0 : index
    %c0_42 = arith.constant 0 : index
    %c32_43 = arith.constant 32 : index
    %66 = vector.load %arg5[%c0_41, %c0_42, %c32_43] : memref<1x16x64xbf16, #tpu.memory_space<vmem>>, vector<1x16x16xbf16>
    %67 = vector.shape_cast %66 : vector<1x16x16xbf16> to vector<16x16xbf16>
    %68 = vector.shape_cast %65 : vector<16x16xbf16> to vector<1x16x16xbf16>
    tpu.vector_store %arg5[%c0_41, %c0_42, %c32_43], %68 {strides = array<i32>} : memref<1x16x64xbf16, #tpu.memory_space<vmem>>, vector<1x16x16xbf16>,
    %c0_44 = arith.constant 0 : index
    %c0_45 = arith.constant 0 : index
    %c48 = arith.constant 48 : index
    %69 = vector.load %arg2[%c0_44, %c0_45, %c48] : memref<1x16x64xbf16, #tpu.memory_space<vmem>>, vector<1x16x16xbf16>
    %70 = vector.shape_cast %69 : vector<1x16x16xbf16> to vector<16x16xbf16>
    %c0_46 = arith.constant 0 : index
    %c0_47 = arith.constant 0 : index
    %c48_48 = arith.constant 48 : index
    %71 = vector.load %arg3[%c0_46, %c0_47, %c48_48] : memref<1x16x64xbf16, #tpu.memory_space<vmem>>, vector<1x16x16xbf16>
    %72 = vector.shape_cast %71 : vector<1x16x16xbf16> to vector<16x16xbf16>
    %c0_49 = arith.constant 0 : index
    %c0_50 = arith.constant 0 : index
    %c48_51 = arith.constant 48 : index
    %73 = vector.load %arg4[%c0_49, %c0_50, %c48_51] : memref<1x16x64xbf16, #tpu.memory_space<vmem>>, vector<1x16x16xbf16>
    %74 = vector.shape_cast %73 : vector<1x16x16xbf16> to vector<16x16xbf16>
    "tpu.trace_start"() <{level = 10 : i32, message = "qd,kd->qk"}> : () -> ()
    %cst_52 = arith.constant dense<0.000000e+00> : vector<16x16xf32>
    %75 = tpu.matmul %70, %72, %cst_52 {dimension_numbers = #tpu.dot_dimension_numbers<[1], [1], [0], [0], [0, 0, 1, 0], [], []>} : vector<16x16xbf16>, vector<16x16xbf16>, vector<16x16xf32> -> vector<16x16xf32>
    "tpu.trace_stop"() : () -> ()
    %cst_53 = arith.constant dense<0xFF800000> : vector<16xf32>
    %76 = vector.multi_reduction <maximumf>, %75, %cst_53 [1] : vector<16x16xf32> to vector<16xf32>
    %77 = vector.shape_cast %76 : vector<16xf32> to vector<16x1xf32>
    %78 = vector.broadcast %77 : vector<16x1xf32> to vector<16x16xf32>
    %79 = arith.subf %75, %78 : vector<16x16xf32>
    %80 = math.exp %79 : vector<16x16xf32>
    %cst_54 = arith.constant dense<0.000000e+00> : vector<16xf32>
    %81 = vector.multi_reduction <add>, %80, %cst_54 [1] : vector<16x16xf32> to vector<16xf32>
    %82 = vector.shape_cast %81 : vector<16xf32> to vector<16x1xf32>
    %83 = arith.truncf %80 : vector<16x16xf32> to vector<16x16xbf16>
    %cst_55 = arith.constant dense<0.000000e+00> : vector<16x16xf32>
    %84 = tpu.matmul %83, %74, %cst_55 {dimension_numbers = #tpu.dot_dimension_numbers<[1], [0], [0], [1], [0, 0, 1, 1], [], []>} : vector<16x16xbf16>, vector<16x16xbf16>, vector<16x16xf32> -> vector<16x16xf32>
    %85 = tpu.reciprocal %82 {approx = true} : vector<16x1xf32> -> vector<16x1xf32>
    %86 = vector.broadcast %85 : vector<16x1xf32> to vector<16x16xf32>
    %87 = arith.mulf %84, %86 : vector<16x16xf32>
    %88 = arith.truncf %87 : vector<16x16xf32> to vector<16x16xbf16>
    %c0_56 = arith.constant 0 : index
    %c0_57 = arith.constant 0 : index
    %c48_58 = arith.constant 48 : index
    %89 = vector.load %arg5[%c0_56, %c0_57, %c48_58] : memref<1x16x64xbf16, #tpu.memory_space<vmem>>, vector<1x16x16xbf16>
    %90 = vector.shape_cast %89 : vector<1x16x16xbf16> to vector<16x16xbf16>
    %91 = vector.shape_cast %88 : vector<16x16xbf16> to vector<1x16x16xbf16>
    tpu.vector_store %arg5[%c0_56, %c0_57, %c48_58], %91 {strides = array<i32>} : memref<1x16x64xbf16, #tpu.memory_space<vmem>>, vector<1x16x16xbf16>,
    return
  }
  func.func @transform_0(%arg0: i32, %arg1: i32) -> (i32, i32, i32) {
    %c0_i32 = arith.constant 0 : i32
    %c0_i32_0 = arith.constant 0 : i32
    return %arg0, %arg1, %c0_i32 : i32, i32, i32
  }
  func.func @transform_1(%arg0: i32, %arg1: i32) -> (i32, i32, i32) {
    %c0_i32 = arith.constant 0 : i32
    %c0_i32_0 = arith.constant 0 : i32
    %c0_i32_1 = arith.constant 0 : i32
    return %arg0, %c0_i32, %c0_i32_0 : i32, i32, i32
  }
  func.func @transform_2(%arg0: i32, %arg1: i32) -> (i32, i32, i32) {
    %c0_i32 = arith.constant 0 : i32
    %c0_i32_0 = arith.constant 0 : i32
    %c0_i32_1 = arith.constant 0 : i32
    return %arg0, %c0_i32, %c0_i32_0 : i32, i32, i32
  }
  func.func @transform_3(%arg0: i32, %arg1: i32) -> (i32, i32, i32) {
    %c0_i32 = arith.constant 0 : i32
    %c0_i32_0 = arith.constant 0 : i32
    return %arg0, %arg1, %c0_i32 : i32, i32, i32
  }
}

</mosaic_0001>

<llo_original>
// kernel: tpu_custom_call.1
$region0: #{tpu_custom_call.1}
  #allocation0 [shape = 'u32[]', space=smem, size = 0x4, offset = 0x4, fixed_abs, tag = 'smem constant byte address 0x4 - core index']
  #allocation1 [shape = 'u32[144,128]{1,0:T(1,128)}', space=vmem, size = 0x12000, scoped, tag = 'internal scratch']
  %s0 = inlined_call_operand.hbm [shape: f32[8,128], index: 0, kind: input, shape index: {}]
  %s1 = inlined_call_operand.hbm [shape: f32[16,128], index: 1, kind: output, shape index: {}]
  %s2 = sld [smem:[#allocation0]]
  $region41: #{tpu_custom_call.1} parent=0
    _
  %s4 = ssub.s32 1, %s2
  %s5 = scalar_select 0, %s4, %s2
  $region1: #{tpu_custom_call.1} parent=0
    #allocation2 [shape = 'u8[4096]{0}', space=vmem, size = 0x1000, scoped, tag = 'input window, operand 0, single buffered']
    #allocation3 [shape = 's32[2]{0}', space=sflag, size = 0x8, scoped, tag = 'scoped memory for tpu_custom_call.1']
    #allocation4 [shape = 's32[2]{0}', space=sflag, size = 0x8, scoped, tag = 'scoped memory for tpu_custom_call.1']
    #allocation5 [shape = 'u8[8192]{0}', space=vmem, size = 0x2000, scoped, tag = 'output window, operand 0']
    %6 = vsyncpa [#allocation3], 0
    %7 = vsyncpa [#allocation4], 0
    %s8 = scalar_lea.sflag [#allocation4], 1
    %9 = vsyncpa %s8, 0
    loop: start=0, step=1, limit=4
    $region2: #{tpu_custom_call.1} parent=1 // loop_pre_header
      _
    $region3: #{tpu_custom_call.1} parent=1 // loop_header
      %s11 = sphi 0, %s15
      %p12 = scmp.ge.s32.totalorder %s11, 4
      %s19 = sphi 0, %s19
      %s21 = sphi 0, %s19
      %s22 = sphi 0, %s21
      %s36 = sphi 0, %s22
      %s42 = sphi 0, %s44
      %s45 = sphi 0, %s42
      %s46 = sphi 0, %s45
      %s62 = sphi 0, %s46
    $region4: #{tpu_custom_call.1} parent=1 // loop_header_branch
      %14 = sbr.rel (%p12) target = $region8
    $region5: #{tpu_custom_call.1} parent=1 // loop_body
      %s16 = ssub.s32 %s11, 1
      %s17 = ssub.s32 %s11, 2
      %s18 = sadd.s32 %s11, 1
      %s20 = sadd.s32 %s19, 1
      %p23 = scmp.eq.s32.totalorder %s11, 1
      %p24 = scmp.ne.s32.totalorder %s19, %s21
      %p25 = scmp.eq.s32.totalorder %s11, 0
      %p26 = por %p24, %p25
      %p27 = scmp.ne.s32.totalorder %s19, %s21
      %p28 = scmp.eq.s32.totalorder %s16, 1
      %p29 = por %p27, %p28
      %p30 = scmp.ne.s32.totalorder %s21, %s22
      %p31 = scmp.eq.s32.totalorder %s16, 0
      %p32 = por %p30, %p31
      %p33 = scmp.ne.s32.totalorder %s21, %s22
      %p34 = scmp.eq.s32.totalorder %s17, 1
      %p35 = por %p33, %p34
      %p37 = scmp.ne.s32.totalorder %s22, %s36
      %p38 = scmp.eq.s32.totalorder %s17, 0
      %p39 = por %p37, %p38
      %s40 = ssub.s32 %s11, %s18
      %p41 = scmp.eq.s32.totalorder %s40, 0
      %s43 = sadd.s32 %s42, 1
      %s44 = scalar_select %p41, %s42, %s43
      %p47 = pneg %p41
      %p48 = scmp.eq.s32.totalorder %s11, 1
      %p49 = por %p47, %p48
      %p50 = scmp.ne.s32.totalorder %s42, %s45
      %p51 = scmp.eq.s32.totalorder %s11, 0
      %p52 = por %p50, %p51
      %p53 = scmp.ne.s32.totalorder %s42, %s45
      %p54 = scmp.eq.s32.totalorder %s16, 1
      %p55 = por %p53, %p54
      %p56 = scmp.ne.s32.totalorder %s45, %s46
      %p57 = scmp.eq.s32.totalorder %s16, 0
      %p58 = por %p56, %p57
      %p59 = scmp.ne.s32.totalorder %s45, %s46
      %p60 = scmp.eq.s32.totalorder %s17, 1
      %p61 = por %p59, %p60
      %p63 = scmp.ne.s32.totalorder %s46, %s62
      %p64 = scmp.eq.s32.totalorder %s17, 0
      %p65 = por %p63, %p64
      %p66 = scmp.le.s32.totalorder 1, %s11
      %p67 = scmp.lt.s32.totalorder %s11, 3
      %p68 = pnand %p66, %p67
      %p69 = pneg %p68
      // Predicated region
      $region9: #{tpu_custom_call.1} parent=5 // pred_check
        _
      $region10: #{tpu_custom_call.1} parent=5 // pred_check_branch
        %71 = sbr.rel (%p68) target = $region12
      $region11: #{tpu_custom_call.1} parent=5 // pred_region
        %s72 = ssub.s32 %s11, 1
        // Predicated region
        $region13: #{tpu_custom_call.1} parent=11 // pred_check
          %p73 = pneg %p32
        $region14: #{tpu_custom_call.1} parent=11 // pred_check_branch
          %75 = sbr.rel (%p73) target = $region16
        $region15: #{tpu_custom_call.1} parent=11 // pred_region
          %s77 = ssub.s32 128, 128
          %78 = vsyncadd [#allocation3], %s77
          %s80 = sshll.u32 [#allocation2], 4
          %s81 = int_to_ptr.vmem [resolvable:$true] %s80
          %83 = dma.hbm_to_vmem [thread:$0]  %s0, 128, %s81, [#allocation3]
        $region16: #{tpu_custom_call.1} parent=11 // pred_fallthru
          _
      $region12: #{tpu_custom_call.1} parent=5 // pred_fallthru
        _
      %p84 = scmp.lt.s32.totalorder %s11, 2
      // Predicated region
      $region17: #{tpu_custom_call.1} parent=5 // pred_check
        %p85 = pneg %p84
      $region18: #{tpu_custom_call.1} parent=5 // pred_check_branch
        %87 = sbr.rel (%p85) target = $region20
      $region19: #{tpu_custom_call.1} parent=5 // pred_region
        _
      $region20: #{tpu_custom_call.1} parent=5 // pred_fallthru
        _
      %p88 = scmp.le.s32.totalorder 1, %s11
      %p89 = scmp.lt.s32.totalorder %s11, 3
      %p90 = pnand %p88, %p89
      %p91 = pneg %p90
      // Predicated region
      $region21: #{tpu_custom_call.1} parent=5 // pred_check
        _
      $region22: #{tpu_custom_call.1} parent=5 // pred_check_branch
        %93 = sbr.rel (%p90) target = $region24
      $region23: #{tpu_custom_call.1} parent=5 // pred_region
        %s94 = ssub.s32 %s11, 1
        // Predicated region
        $region25: #{tpu_custom_call.1} parent=23 // pred_check
          %p95 = pneg %p32
        $region26: #{tpu_custom_call.1} parent=23 // pred_check_branch
          %97 = sbr.rel (%p95) target = $region28
        $region27: #{tpu_custom_call.1} parent=23 // pred_region
          %98 = dma.done [#allocation3], 128
        $region28: #{tpu_custom_call.1} parent=23 // pred_fallthru
          _
        %p99 = pneg %p32
        %p100 = pneg %p29
        %p101 = pneg %p58
        %p102 = pneg %p55
        %s103 = sand.u32 %s45, 1
        %s104 = scalar_lea.sflag [#allocation4], %s103
        %s105 = sand.u32 %s45, 1
        %s106 = smul.addr %s105, 8
        %s107 = scalar_lea.vmem [#allocation5], %s106
        %v108 = vld [vmem:[#allocation2] sm:$0xff]
        %109 = vst [vmem:[%s107] sm:$0xff] %v108
        %s110 = sand.u32 %s45, 1
        %s111 = scalar_lea.sflag [#allocation4], %s110
        %s112 = sand.u32 %s45, 1
        %s113 = smul.addr %s112, 8
        %s114 = scalar_lea.vmem [#allocation5], %s113
        // Predicated region
        $region29: #{tpu_custom_call.1} parent=23 // pred_check
          %p115 = pneg %p55
        $region30: #{tpu_custom_call.1} parent=23 // pred_check_branch
          %117 = sbr.rel (%p115) target = $region32
        $region31: #{tpu_custom_call.1} parent=23 // pred_region
          %s119 = ssub.s32 128, 128
          %120 = vsyncadd %s111, %s119
          %s121 = smul.addr %s16, 128
          %s122 = scalar_lea.hbm %s1, %s121
          %s124 = sshll.u32 %s114, 4
          %s125 = int_to_ptr.vmem [resolvable:$true] %s124
          %127 = dma.vmem_to_hbm [thread:$0]  %s125, 128, %s122, %s111
        $region32: #{tpu_custom_call.1} parent=23 // pred_fallthru
          _
      $region24: #{tpu_custom_call.1} parent=5 // pred_fallthru
        _
      %p128 = scmp.le.s32.totalorder 2, %s11
      // Predicated region
      $region33: #{tpu_custom_call.1} parent=5 // pred_check
        %p129 = pneg %p128
      $region34: #{tpu_custom_call.1} parent=5 // pred_check_branch
        %131 = sbr.rel (%p129) target = $region36
      $region35: #{tpu_custom_call.1} parent=5 // pred_region
        %s132 = ssub.s32 %s11, 2
        // Predicated region
        $region37: #{tpu_custom_call.1} parent=35 // pred_check
          %p133 = pneg %p61
        $region38: #{tpu_custom_call.1} parent=35 // pred_check_branch
          %135 = sbr.rel (%p133) target = $region40
        $region39: #{tpu_custom_call.1} parent=35 // pred_region
          %s136 = sand.u32 %s46, 1
          %s137 = scalar_lea.sflag [#allocation4], %s136
          %s138 = sand.u32 %s46, 1
          %s139 = smul.addr %s138, 8
          %s140 = scalar_lea.vmem [#allocation5], %s139
          %141 = dma.done %s137, 128
        $region40: #{tpu_custom_call.1} parent=35 // pred_fallthru
          _
      $region36: #{tpu_custom_call.1} parent=5 // pred_fallthru
        _
    $region6: #{tpu_custom_call.1} parent=1 // loop_footer
      %s15 = sadd.s32 1, %s11
    $region7: #{tpu_custom_call.1} parent=1 // loop_footer_branch
      %10 = sbr.rel target = $region3
    $region8: #{tpu_custom_call.1} parent=1 // loop_exit
      _
    %142 = vsyncpa [#allocation3], 1
    %s143 = scalar_lea.sflag [#allocation3], 1
    %144 = vsyncpa %s143, 1
    %145 = vsyncpa [#allocation4], 1
    %s146 = scalar_lea.sflag [#allocation4], 1
    %147 = vsyncpa %s146, 1

// kernel: _lambda_.5
$region0: #{_lambda_.5}
  #allocation0 [shape = 'u32[]', space=smem, size = 0x4, offset = 0x4, fixed_abs, tag = 'smem constant byte address 0x4 - core index']
  #allocation1 [shape = 'u32[144,128]{1,0:T(1,128)}', space=vmem, size = 0x12000, scoped, tag = 'internal scratch']
  %s0 = inlined_call_operand.hbm [shape: f32[2,16,64], index: 0, kind: input, shape index: {}, may-alias: {0,10}]
  %s1 = inlined_call_operand.vmem [shape: bf16[2,16,64], index: 1, kind: input, shape index: {}]
  %s2 = inlined_call_operand.vmem [shape: bf16[64,64], index: 2, kind: input, shape index: {}]
  %s3 = inlined_call_operand.vmem [shape: f32[1,64], index: 3, kind: input, shape index: {}]
  %s4 = inlined_call_operand.vmem [shape: f32[1,64], index: 4, kind: input, shape index: {}]
  %s5 = inlined_call_operand.vmem [shape: f32[1,64], index: 5, kind: input, shape index: {}]
  %s6 = inlined_call_operand.vmem [shape: bf16[64,256], index: 6, kind: input, shape index: {}]
  %s7 = inlined_call_operand.vmem [shape: f32[1,256], index: 7, kind: input, shape index: {}]
  %s8 = inlined_call_operand.vmem [shape: bf16[256,64], index: 8, kind: input, shape index: {}]
  %s9 = inlined_call_operand.vmem [shape: f32[1,64], index: 9, kind: input, shape index: {}]
  %s10 = inlined_call_operand.hbm [shape: f32[2,16,64], index: 10, kind: output, shape index: {}, may-alias: {0,10}]
  %s11 = sld [smem:[#allocation0]]
  $region77: #{_lambda_.5} parent=0
    _
  %s13 = ssub.s32 1, %s11
  %s14 = scalar_select 0, %s13, %s11
  $region1: #{_lambda_.5} parent=0
    #allocation2 [shape = 'u8[16384]{0}', space=vmem, size = 0x4000, scoped, tag = 'input window, operand 0']
    #allocation3 [shape = 's32[2]{0}', space=sflag, size = 0x8, scoped, tag = 'scoped memory for _lambda_.5']
    #allocation4 [shape = 's32[2]{0}', space=sflag, size = 0x8, scoped, tag = 'scoped memory for _lambda_.5']
    #allocation5 [shape = 'u8[16384]{0}', space=vmem, size = 0x4000, scoped, tag = 'output window, operand 0']
    %15 = vsyncpa [#allocation3], 0
    %s16 = scalar_lea.sflag [#allocation3], 1
    %17 = vsyncpa %s16, 0
    %18 = vsyncpa [#allocation4], 0
    %s19 = scalar_lea.sflag [#allocation4], 1
    %20 = vsyncpa %s19, 0
    loop: start=0, step=1, limit=4
    $region2: #{_lambda_.5} parent=1 // loop_pre_header
      _
    $region3: #{_lambda_.5} parent=1 // loop_header
      %s22 = sphi 0, %s26
      %p23 = scmp.ge.s32.totalorder %s22, 4
      %s29 = sphi 0, %s41
      %s30 = sphi 0, %s37
      %s31 = sphi 0, %s29
      %s32 = sphi 0, %s30
      %s33 = sphi 0, %s31
      %s34 = sphi 0, %s32
      %s46 = sphi 0, %s48
      %s49 = sphi 0, %s46
      %s50 = sphi 0, %s49
      %s66 = sphi 0, %s50
      %s74 = sphi 0, %s76
      %s77 = sphi 0, %s74
      %s78 = sphi 0, %s77
      %s94 = sphi 0, %s78
      %s98 = sphi 0, %s98
      %s100 = sphi 0, %s98
      %s101 = sphi 0, %s100
      %s115 = sphi 0, %s101
      %s119 = sphi 0, %s119
      %s121 = sphi 0, %s119
      %s122 = sphi 0, %s121
      %s136 = sphi 0, %s122
      %s140 = sphi 0, %s140
      %s142 = sphi 0, %s140
      %s143 = sphi 0, %s142
      %s157 = sphi 0, %s143
      %s161 = sphi 0, %s161
      %s163 = sphi 0, %s161
      %s164 = sphi 0, %s163
      %s178 = sphi 0, %s164
      %s182 = sphi 0, %s182
      %s184 = sphi 0, %s182
      %s185 = sphi 0, %s184
      %s199 = sphi 0, %s185
      %s203 = sphi 0, %s203
      %s205 = sphi 0, %s203
      %s206 = sphi 0, %s205
      %s220 = sphi 0, %s206
      %s224 = sphi 0, %s224
      %s226 = sphi 0, %s224
      %s227 = sphi 0, %s226
      %s241 = sphi 0, %s227
      %s245 = sphi 0, %s245
      %s247 = sphi 0, %s245
      %s248 = sphi 0, %s247
      %s262 = sphi 0, %s248
      %s270 = sphi 0, %s272
      %s273 = sphi 0, %s270
      %s274 = sphi 0, %s273
      %s290 = sphi 0, %s274
    $region4: #{_lambda_.5} parent=1 // loop_header_branch
      %25 = sbr.rel (%p23) target = $region8
    $region5: #{_lambda_.5} parent=1 // loop_body
      %s27 = ssub.s32 %s22, 1
      %s28 = ssub.s32 %s22, 2
      %s35 = sadd.s32 1, %s30
      %p36 = scmp.ge.s32.totalorder %s35, 2
      %s37 = scalar_select %p36, 0, %s35
      %s38 = sadd.s32 1, %s29
      %s39 = scalar_select %p36, %s38, %s29
      %p40 = scmp.ge.s32.totalorder %s39, 1
      %s41 = scalar_select %p40, 0, %s39
      %s42 = ssub.s32 %s30, %s37
      %s43 = ssub.s32 %s29, %s41
      %s44 = sor.u32 %s42, %s43
      %p45 = scmp.eq.s32.totalorder %s44, 0
      %s47 = sadd.s32 %s46, 1
      %s48 = scalar_select %p45, %s46, %s47
      %p51 = pneg %p45
      %p52 = scmp.eq.s32.totalorder %s22, 1
      %p53 = por %p51, %p52
      %p54 = scmp.ne.s32.totalorder %s46, %s49
      %p55 = scmp.eq.s32.totalorder %s22, 0
      %p56 = por %p54, %p55
      %p57 = scmp.ne.s32.totalorder %s46, %s49
      %p58 = scmp.eq.s32.totalorder %s27, 1
      %p59 = por %p57, %p58
      %p60 = scmp.ne.s32.totalorder %s49, %s50
      %p61 = scmp.eq.s32.totalorder %s27, 0
      %p62 = por %p60, %p61
      %p63 = scmp.ne.s32.totalorder %s49, %s50
      %p64 = scmp.eq.s32.totalorder %s28, 1
      %p65 = por %p63, %p64
      %p67 = scmp.ne.s32.totalorder %s50, %s66
      %p68 = scmp.eq.s32.totalorder %s28, 0
      %p69 = por %p67, %p68
      %s70 = ssub.s32 %s30, %s37
      %s71 = ssub.s32 %s29, %s41
      %s72 = sor.u32 %s70, %s71
      %p73 = scmp.eq.s32.totalorder %s72, 0
      %s75 = sadd.s32 %s74, 1
      %s76 = scalar_select %p73, %s74, %s75
      %p79 = pneg %p73
      %p80 = scmp.eq.s32.totalorder %s22, 1
      %p81 = por %p79, %p80
      %p82 = scmp.ne.s32.totalorder %s74, %s77
      %p83 = scmp.eq.s32.totalorder %s22, 0
      %p84 = por %p82, %p83
      %p85 = scmp.ne.s32.totalorder %s74, %s77
      %p86 = scmp.eq.s32.totalorder %s27, 1
      %p87 = por %p85, %p86
      %p88 = scmp.ne.s32.totalorder %s77, %s78
      %p89 = scmp.eq.s32.totalorder %s27, 0
      %p90 = por %p88, %p89
      %p91 = scmp.ne.s32.totalorder %s77, %s78
      %p92 = scmp.eq.s32.totalorder %s28, 1
      %p93 = por %p91, %p92
      %p95 = scmp.ne.s32.totalorder %s78, %s94
      %p96 = scmp.eq.s32.totalorder %s28, 0
      %p97 = por %p95, %p96
      %s99 = sadd.s32 %s98, 1
      %p102 = scmp.eq.s32.totalorder %s22, 1
      %p103 = scmp.ne.s32.totalorder %s98, %s100
      %p104 = scmp.eq.s32.totalorder %s22, 0
      %p105 = por %p103, %p104
      %p106 = scmp.ne.s32.totalorder %s98, %s100
      %p107 = scmp.eq.s32.totalorder %s27, 1
      %p108 = por %p106, %p107
      %p109 = scmp.ne.s32.totalorder %s100, %s101
      %p110 = scmp.eq.s32.totalorder %s27, 0
      %p111 = por %p109, %p110
      %p112 = scmp.ne.s32.totalorder %s100, %s101
      %p113 = scmp.eq.s32.totalorder %s28, 1
      %p114 = por %p112, %p113
      %p116 = scmp.ne.s32.totalorder %s101, %s115
      %p117 = scmp.eq.s32.totalorder %s28, 0
      %p118 = por %p116, %p117
      %s120 = sadd.s32 %s119, 1
      %p123 = scmp.eq.s32.totalorder %s22, 1
      %p124 = scmp.ne.s32.totalorder %s119, %s121
      %p125 = scmp.eq.s32.totalorder %s22, 0
      %p126 = por %p124, %p125
      %p127 = scmp.ne.s32.totalorder %s119, %s121
      %p128 = scmp.eq.s32.totalorder %s27, 1
      %p129 = por %p127, %p128
      %p130 = scmp.ne.s32.totalorder %s121, %s122
      %p131 = scmp.eq.s32.totalorder %s27, 0
      %p132 = por %p130, %p131
      %p133 = scmp.ne.s32.totalorder %s121, %s122
      %p134 = scmp.eq.s32.totalorder %s28, 1
      %p135 = por %p133, %p134
      %p137 = scmp.ne.s32.totalorder %s122, %s136
      %p138 = scmp.eq.s32.totalorder %s28, 0
      %p139 = por %p137, %p138
      %s141 = sadd.s32 %s140, 1
      %p144 = scmp.eq.s32.totalorder %s22, 1
      %p145 = scmp.ne.s32.totalorder %s140, %s142
      %p146 = scmp.eq.s32.totalorder %s22, 0
      %p147 = por %p145, %p146
      %p148 = scmp.ne.s32.totalorder %s140, %s142
      %p149 = scmp.eq.s32.totalorder %s27, 1
      %p150 = por %p148, %p149
      %p151 = scmp.ne.s32.totalorder %s142, %s143
      %p152 = scmp.eq.s32.totalorder %s27, 0
      %p153 = por %p151, %p152
      %p154 = scmp.ne.s32.totalorder %s142, %s143
      %p155 = scmp.eq.s32.totalorder %s28, 1
      %p156 = por %p154, %p155
      %p158 = scmp.ne.s32.totalorder %s143, %s157
      %p159 = scmp.eq.s32.totalorder %s28, 0
      %p160 = por %p158, %p159
      %s162 = sadd.s32 %s161, 1
      %p165 = scmp.eq.s32.totalorder %s22, 1
      %p166 = scmp.ne.s32.totalorder %s161, %s163
      %p167 = scmp.eq.s32.totalorder %s22, 0
      %p168 = por %p166, %p167
      %p169 = scmp.ne.s32.totalorder %s161, %s163
      %p170 = scmp.eq.s32.totalorder %s27, 1
      %p171 = por %p169, %p170
      %p172 = scmp.ne.s32.totalorder %s163, %s164
      %p173 = scmp.eq.s32.totalorder %s27, 0
      %p174 = por %p172, %p173
      %p175 = scmp.ne.s32.totalorder %s163, %s164
      %p176 = scmp.eq.s32.totalorder %s28, 1
      %p177 = por %p175, %p176
      %p179 = scmp.ne.s32.totalorder %s164, %s178
      %p180 = scmp.eq.s32.totalorder %s28, 0
      %p181 = por %p179, %p180
      %s183 = sadd.s32 %s182, 1
      %p186 = scmp.eq.s32.totalorder %s22, 1
      %p187 = scmp.ne.s32.totalorder %s182, %s184
      %p188 = scmp.eq.s32.totalorder %s22, 0
      %p189 = por %p187, %p188
      %p190 = scmp.ne.s32.totalorder %s182, %s184
      %p191 = scmp.eq.s32.totalorder %s27, 1
      %p192 = por %p190, %p191
      %p193 = scmp.ne.s32.totalorder %s184, %s185
      %p194 = scmp.eq.s32.totalorder %s27, 0
      %p195 = por %p193, %p194
      %p196 = scmp.ne.s32.totalorder %s184, %s185
      %p197 = scmp.eq.s32.totalorder %s28, 1
      %p198 = por %p196, %p197
      %p200 = scmp.ne.s32.totalorder %s185, %s199
      %p201 = scmp.eq.s32.totalorder %s28, 0
      %p202 = por %p200, %p201
      %s204 = sadd.s32 %s203, 1
      %p207 = scmp.eq.s32.totalorder %s22, 1
      %p208 = scmp.ne.s32.totalorder %s203, %s205
      %p209 = scmp.eq.s32.totalorder %s22, 0
      %p210 = por %p208, %p209
      %p211 = scmp.ne.s32.totalorder %s203, %s205
      %p212 = scmp.eq.s32.totalorder %s27, 1
      %p213 = por %p211, %p212
      %p214 = scmp.ne.s32.totalorder %s205, %s206
      %p215 = scmp.eq.s32.totalorder %s27, 0
      %p216 = por %p214, %p215
      %p217 = scmp.ne.s32.totalorder %s205, %s206
      %p218 = scmp.eq.s32.totalorder %s28, 1
      %p219 = por %p217, %p218
      %p221 = scmp.ne.s32.totalorder %s206, %s220
      %p222 = scmp.eq.s32.totalorder %s28, 0
      %p223 = por %p221, %p222
      %s225 = sadd.s32 %s224, 1
      %p228 = scmp.eq.s32.totalorder %s22, 1
      %p229 = scmp.ne.s32.totalorder %s224, %s226
      %p230 = scmp.eq.s32.totalorder %s22, 0
      %p231 = por %p229, %p230
      %p232 = scmp.ne.s32.totalorder %s224, %s226
      %p233 = scmp.eq.s32.totalorder %s27, 1
      %p234 = por %p232, %p233
      %p235 = scmp.ne.s32.totalorder %s226, %s227
      %p236 = scmp.eq.s32.totalorder %s27, 0
      %p237 = por %p235, %p236
      %p238 = scmp.ne.s32.totalorder %s226, %s227
      %p239 = scmp.eq.s32.totalorder %s28, 1
      %p240 = por %p238, %p239
      %p242 = scmp.ne.s32.totalorder %s227, %s241
      %p243 = scmp.eq.s32.totalorder %s28, 0
      %p244 = por %p242, %p243
      %s246 = sadd.s32 %s245, 1
      %p249 = scmp.eq.s32.totalorder %s22, 1
      %p250 = scmp.ne.s32.totalorder %s245, %s247
      %p251 = scmp.eq.s32.totalorder %s22, 0
      %p252 = por %p250, %p251
      %p253 = scmp.ne.s32.totalorder %s245, %s247
      %p254 = scmp.eq.s32.totalorder %s27, 1
      %p255 = por %p253, %p254
      %p256 = scmp.ne.s32.totalorder %s247, %s248
      %p257 = scmp.eq.s32.totalorder %s27, 0
      %p258 = por %p256, %p257
      %p259 = scmp.ne.s32.totalorder %s247, %s248
      %p260 = scmp.eq.s32.totalorder %s28, 1
      %p261 = por %p259, %p260
      %p263 = scmp.ne.s32.totalorder %s248, %s262
      %p264 = scmp.eq.s32.totalorder %s28, 0
      %p265 = por %p263, %p264
      %s266 = ssub.s32 %s30, %s37
      %s267 = ssub.s32 %s29, %s41
      %s268 = sor.u32 %s266, %s267
      %p269 = scmp.eq.s32.totalorder %s268, 0
      %s271 = sadd.s32 %s270, 1
      %s272 = scalar_select %p269, %s270, %s271
      %p275 = pneg %p269
      %p276 = scmp.eq.s32.totalorder %s22, 1
      %p277 = por %p275, %p276
      %p278 = scmp.ne.s32.totalorder %s270, %s273
      %p279 = scmp.eq.s32.totalorder %s22, 0
      %p280 = por %p278, %p279
      %p281 = scmp.ne.s32.totalorder %s270, %s273
      %p282 = scmp.eq.s32.totalorder %s27, 1
      %p283 = por %p281, %p282
      %p284 = scmp.ne.s32.totalorder %s273, %s274
      %p285 = scmp.eq.s32.totalorder %s27, 0
      %p286 = por %p284, %p285
      %p287 = scmp.ne.s32.totalorder %s273, %s274
      %p288 = scmp.eq.s32.totalorder %s28, 1
      %p289 = por %p287, %p288
      %p291 = scmp.ne.s32.totalorder %s274, %s290
      %p292 = scmp.eq.s32.totalorder %s28, 0
      %p293 = por %p291, %p292
      %p294 = scmp.le.s32.totalorder 1, %s22
      %p295 = scmp.lt.s32.totalorder %s22, 3
      %p296 = pnand %p294, %p295
      %p297 = pneg %p296
      // Predicated region
      $region9: #{_lambda_.5} parent=5 // pred_check
        _
      $region10: #{_lambda_.5} parent=5 // pred_check_branch
        %299 = sbr.rel (%p296) target = $region12
      $region11: #{_lambda_.5} parent=5 // pred_region
        %s300 = ssub.s32 %s22, 1
        // Predicated region
        $region13: #{_lambda_.5} parent=11 // pred_check
          %p301 = pneg %p111
        $region14: #{_lambda_.5} parent=11 // pred_check_branch
          %303 = sbr.rel (%p301) target = $region16
        $region15: #{_lambda_.5} parent=11 // pred_region
          _
        $region16: #{_lambda_.5} parent=11 // pred_fallthru
          _
        // Predicated region
        $region17: #{_lambda_.5} parent=11 // pred_check
          %p304 = pneg %p132
        $region18: #{_lambda_.5} parent=11 // pred_check_branch
          %306 = sbr.rel (%p304) target = $region20
        $region19: #{_lambda_.5} parent=11 // pred_region
          _
        $region20: #{_lambda_.5} parent=11 // pred_fallthru
          _
        // Predicated region
        $region21: #{_lambda_.5} parent=11 // pred_check
          %p307 = pneg %p153
        $region22: #{_lambda_.5} parent=11 // pred_check_branch
          %309 = sbr.rel (%p307) target = $region24
        $region23: #{_lambda_.5} parent=11 // pred_region
          _
        $region24: #{_lambda_.5} parent=11 // pred_fallthru
          _
        // Predicated region
        $region25: #{_lambda_.5} parent=11 // pred_check
          %p310 = pneg %p174
        $region26: #{_lambda_.5} parent=11 // pred_check_branch
          %312 = sbr.rel (%p310) target = $region28
        $region27: #{_lambda_.5} parent=11 // pred_region
          _
        $region28: #{_lambda_.5} parent=11 // pred_fallthru
          _
        // Predicated region
        $region29: #{_lambda_.5} parent=11 // pred_check
          %p313 = pneg %p195
        $region30: #{_lambda_.5} parent=11 // pred_check_branch
          %315 = sbr.rel (%p313) target = $region32
        $region31: #{_lambda_.5} parent=11 // pred_region
          _
        $region32: #{_lambda_.5} parent=11 // pred_fallthru
          _
        // Predicated region
        $region33: #{_lambda_.5} parent=11 // pred_check
          %p316 = pneg %p216
        $region34: #{_lambda_.5} parent=11 // pred_check_branch
          %318 = sbr.rel (%p316) target = $region36
        $region35: #{_lambda_.5} parent=11 // pred_region
          _
        $region36: #{_lambda_.5} parent=11 // pred_fallthru
          _
        // Predicated region
        $region37: #{_lambda_.5} parent=11 // pred_check
          %p319 = pneg %p237
        $region38: #{_lambda_.5} parent=11 // pred_check_branch
          %321 = sbr.rel (%p319) target = $region40
        $region39: #{_lambda_.5} parent=11 // pred_region
          _
        $region40: #{_lambda_.5} parent=11 // pred_fallthru
          _
        // Predicated region
        $region41: #{_lambda_.5} parent=11 // pred_check
          %p322 = pneg %p258
        $region42: #{_lambda_.5} parent=11 // pred_check_branch
          %324 = sbr.rel (%p322) target = $region44
        $region43: #{_lambda_.5} parent=11 // pred_region
          _
        $region44: #{_lambda_.5} parent=11 // pred_fallthru
          _
      $region12: #{_lambda_.5} parent=5 // pred_fallthru
        _
      %p325 = scmp.lt.s32.totalorder %s22, 2
      // Predicated region
      $region45: #{_lambda_.5} parent=5 // pred_check
        %p326 = pneg %p325
      $region46: #{_lambda_.5} parent=5 // pred_check_branch
        %328 = sbr.rel (%p326) target = $region48
      $region47: #{_lambda_.5} parent=5 // pred_region
        // Predicated region
        $region49: #{_lambda_.5} parent=47 // pred_check
          %p329 = pneg %p56
        $region50: #{_lambda_.5} parent=47 // pred_check_branch
          %331 = sbr.rel (%p329) target = $region52
        $region51: #{_lambda_.5} parent=47 // pred_region
          %s332 = sand.u32 %s46, 1
          %s333 = scalar_lea.sflag [#allocation3], %s332
          %s334 = sand.u32 %s46, 1
          %s335 = smul.addr %s334, 16
          %s336 = scalar_lea.vmem [#allocation2], %s335
          %s337 = smul.u32 2, %s29
          %s339 = ssub.s32 256, 256
          %340 = vsyncadd %s333, %s339
          %s341 = smul.addr %s30, 2
          %s342 = sadd.s32 %s337, %s341
          %s343 = smul.addr %s342, 128
          %s344 = scalar_lea.hbm %s0, %s343
          %s345 = sshll.u32 %s336, 4
          %s346 = int_to_ptr.vmem [resolvable:$true] %s345
          %351 = dma.hbm_to_vmem [thread:$0]  %s344, 256, %s346, %s333, 128, 128, 8
        $region52: #{_lambda_.5} parent=47 // pred_fallthru
          _
        // Predicated region
        $region53: #{_lambda_.5} parent=47 // pred_check
          %p352 = pneg %p84
        $region54: #{_lambda_.5} parent=47 // pred_check_branch
          %354 = sbr.rel (%p352) target = $region56
        $region55: #{_lambda_.5} parent=47 // pred_region
          %s355 = smul.u32 2, %s29
          %p356 = scmp.lt.s32.totalorder %s30, 1
          %s357 = scalar_select %p356, %s30, 1
          %p358 = scmp.lt.s32.totalorder %s355, 1
          %s359 = scalar_select %p358, %s355, 1
          %s360 = smul.addr %s357, 2
          %s361 = sadd.s32 %s359, %s360
          %s362 = smul.addr %s361, 4
          %s363 = scalar_lea.vmem %s1, %s362
          %s364 = smul.u32 2, %s29
        $region56: #{_lambda_.5} parent=47 // pred_fallthru
          _
      $region48: #{_lambda_.5} parent=5 // pred_fallthru
        _
      %p365 = scmp.le.s32.totalorder 1, %s22
      %p366 = scmp.lt.s32.totalorder %s22, 3
      %p367 = pnand %p365, %p366
      %p368 = pneg %p367
      // Predicated region
      $region57: #{_lambda_.5} parent=5 // pred_check
        _
      $region58: #{_lambda_.5} parent=5 // pred_check_branch
        %370 = sbr.rel (%p367) target = $region60
      $region59: #{_lambda_.5} parent=5 // pred_region
        %s371 = ssub.s32 %s22, 1
        %s372 = sand.u32 %s49, 1
        %s373 = scalar_lea.sflag [#allocation3], %s372
        %s374 = sand.u32 %s49, 1
        %s375 = smul.addr %s374, 16
        %s376 = scalar_lea.vmem [#allocation2], %s375
        // Predicated region
        $region61: #{_lambda_.5} parent=59 // pred_check
          %p377 = pneg %p62
        $region62: #{_lambda_.5} parent=59 // pred_check_branch
          %379 = sbr.rel (%p377) target = $region64
        $region63: #{_lambda_.5} parent=59 // pred_region
          %380 = dma.done %s373, 256
        $region64: #{_lambda_.5} parent=59 // pred_fallthru
          _
        %s381 = sand.u32 %s49, 1
        %s382 = scalar_lea.sflag [#allocation3], %s381
        %s383 = sand.u32 %s49, 1
        %s384 = smul.addr %s383, 16
        %s385 = scalar_lea.vmem [#allocation2], %s384
        %p386 = pneg %p62
        %p387 = pneg %p59
        %s388 = smul.u32 2, %s31
        %p389 = scmp.lt.s32.totalorder %s32, 1
        %s390 = scalar_select %p389, %s32, 1
        %p391 = scmp.lt.s32.totalorder %s388, 1
        %s392 = scalar_select %p391, %s388, 1
        %s393 = smul.addr %s390, 2
        %s394 = sadd.s32 %s392, %s393
        %s395 = smul.addr %s394, 4
        %s396 = scalar_lea.vmem %s1, %s395
        %p397 = pneg %p90
        %p398 = pneg %p87
        %p399 = pneg %p111
        %p400 = pneg %p108
        %p401 = pneg %p132
        %p402 = pneg %p129
        %p403 = pneg %p153
        %p404 = pneg %p150
        %p405 = pneg %p174
        %p406 = pneg %p171
        %p407 = pneg %p195
        %p408 = pneg %p192
        %p409 = pneg %p216
        %p410 = pneg %p213
        %p411 = pneg %p237
        %p412 = pneg %p234
        %p413 = pneg %p258
        %p414 = pneg %p255
        %p415 = pneg %p286
        %p416 = pneg %p283
        %s417 = sand.u32 %s273, 1
        %s418 = scalar_lea.sflag [#allocation4], %s417
        %s419 = sand.u32 %s273, 1
        %s420 = smul.addr %s419, 16
        %s421 = scalar_lea.vmem [#allocation5], %s420
        %s422 = smul.u32 2, %s31
        %s423 = smul.u32 2, %s31
        %p424 = scmp.lt.s32.totalorder %s32, 1
        %s425 = scalar_select %p424, %s32, 1
        %p426 = scmp.lt.s32.totalorder %s423, 1
        %s427 = scalar_select %p426, %s423, 1
        %s428 = smul.addr %s425, 2
        %s429 = sadd.s32 %s427, %s428
        %s430 = smul.addr %s429, 4
        %s431 = scalar_lea.vmem %s1, %s430
        %s432 = smul.u32 2, %s31
        %s433 = smul.u32 2, %s31
        %v435 = vld [vmem:[%s376] sm:$0xff]
        %v436 = vld [vmem:[%s376 + $0x8] sm:$0xff]
        %v437 = vld [vmem:[%s431] sm:$0xf]
        %v438 = vld [vmem:[%s431 + $0x4] sm:$0xf]
        %v439 = vld [vmem:[%s2] sm:$0xf]
        %v440 = vld [vmem:[%s2 + $0x4] sm:$0xf]
        %v441 = vld [vmem:[%s2 + $0x8] sm:$0xf]
        %v442 = vld [vmem:[%s2 + $0xc] sm:$0xf]
        %v443 = vld [vmem:[%s2 + $0x10] sm:$0xf]
        %v444 = vld [vmem:[%s2 + $0x14] sm:$0xf]
        %v445 = vld [vmem:[%s2 + $0x18] sm:$0xf]
        %v446 = vld [vmem:[%s2 + $0x1c] sm:$0xf]
        %v447 = vld [vmem:[%s3] sm:$0x1]
        %v449 = vlaneseq
        %v450 = vshrl.u32 %v449, 7
        %v451 = vsub.s32 0, %v450
        %v452 = vrot.slane %v447, %v451
        %v456 = vunpack.c.l.b16 %v437
        %v457 = vunpack.c.l.b16 %v438
        %v458 = vpack.c.b16 %v457, %v456
        %v467 = vunpack.c.l.b16 %v439
        %v468 = vunpack.c.l.b16 %v440
        %v469 = vunpack.c.l.b16 %v441
        %v470 = vunpack.c.l.b16 %v442
        %v471 = vunpack.c.l.b16 %v443
        %v472 = vunpack.c.l.b16 %v444
        %v473 = vunpack.c.l.b16 %v445
        %v474 = vunpack.c.l.b16 %v446
        %v475 = vpack.c.b16 %v468, %v467
        %v476 = vpack.c.b16 %v470, %v469
        %v477 = vpack.c.b16 %v472, %v471
        %v478 = vpack.c.b16 %v474, %v473
        %vm483 = vcmask 523264
        %v485 = vsel %vm483, %v458, 0
        %487 = vmatprep.subr.bf16.mxu0 0
        %488 = vmatpush1.bf16.msra.mxu0 %v475
        %489 = vmatprep.subr.bf16.mxu0 0
        %490 = vmatpush1.bf16.msra.mxu0 %v476
        %491 = vmatprep.subr.bf16.mxu0 0
        %492 = vmatpush1.bf16.msra.mxu0 %v477
        %493 = vmatprep.subr.bf16.mxu0 0
        %494 = vmatpush1.bf16.msra.mxu0 %v478
        %495 = vmatprep.subr.bf16.mxu0 0
        %496 = vmatpush1.bf16.msra.mxu0 0
        %497 = vmatprep.subr.bf16.mxu0 0
        %498 = vmatpush1.bf16.msra.mxu0 0
        %499 = vmatprep.subr.bf16.mxu0 0
        %500 = vmatpush1.bf16.msra.mxu0 0
        %501 = vmatprep.subr.bf16.mxu0 0
        %502 = vmatpush1.bf16.msra.mxu0 0
        %503 = vmatprep.subr.bf16.mxu0 0
        %504 = vmatpush1.bf16.msra.mxu0 0
        %505 = vmatprep.subr.bf16.mxu0 0
        %506 = vmatpush1.bf16.msra.mxu0 0
        %507 = vmatprep.subr.bf16.mxu0 0
        %508 = vmatpush1.bf16.msra.mxu0 0
        %509 = vmatprep.subr.bf16.mxu0 0
        %510 = vmatpush1.bf16.msra.mxu0 0
        %511 = vmatprep.subr.bf16.mxu0 0
        %512 = vmatpush1.bf16.msra.mxu0 0
        %513 = vmatprep.subr.bf16.mxu0 0
        %514 = vmatpush1.bf16.msra.mxu0 0
        %515 = vmatprep.subr.bf16.mxu0 0
        %516 = vmatpush1.bf16.msra.mxu0 0
        %517 = vmatprep.subr.bf16.mxu0 0
        %518 = vmatpush1.bf16.msra.mxu0 0
        %519 = vmatprep.mubr.bf16.mxu0 0
        %520 = vmatmul.mubr.bf16.gmra.mrb[0].mxu0 %v485
        %v521 = vpop.f32.mrb[0].mxu0
        %v522 = vadd.f32 %v452, %v521
        %v523 = vpop.f32.mrb[0].mxu0
        %v524 = vpop.f32.mrb[0].mxu0
        %v525 = vadd.f32 %v452, %v524
        %v526 = vpop.f32.mrb[0].mxu0
        %527 = vdwg.mxu0
        %v528 = vadd.f32 %v435, %v522
        %v529 = vadd.f32 %v436, %v525
        %v530 = vld [vmem:[%s4] sm:$0x1]
        %v531 = vld [vmem:[%s5] sm:$0x1]
        %v532 = vsel %vm483, %v528, 0.0
        %533 = vadd.xlane.f32.xlu0 %v532
        %v534 = vpop.xlane.xlu0 %533
        %v535 = vsel %vm483, %v529, 0.0
        %536 = vadd.xlane.f32.xlu0 %v535
        %v537 = vpop.xlane.xlu0 %536
        %v538 = vmul.f32 %v534, 0.015625
        %v539 = vmul.f32 %v537, 0.015625
        %v540 = vmul.f32 %v528, %v528
        %v541 = vmul.f32 %v529, %v529
        %v542 = vsel %vm483, %v540, 0.0
        %543 = vadd.xlane.f32.xlu0 %v542
        %v544 = vpop.xlane.xlu0 %543
        %v545 = vsel %vm483, %v541, 0.0
        %546 = vadd.xlane.f32.xlu0 %v545
        %v547 = vpop.xlane.xlu0 %546
        %v548 = vmul.f32 %v544, 0.015625
        %v549 = vmul.f32 %v547, 0.015625
        %v550 = vmul.f32 %v538, %v538
        %v551 = vmul.f32 %v539, %v539
        %v552 = vsub.f32 %v548, %v550
        %v553 = vsub.f32 %v549, %v551
        %v554 = vsub.f32 %v528, %v538
        %v555 = vsub.f32 %v529, %v539
        %v556 = vadd.f32 %v552, 1e-05
        %v557 = vadd.f32 %v553, 1e-05
        %v558 = vrsqrt.pop %v556
        %v559 = vrsqrt.pop %v557
        %v560 = vmul.f32 %v554, %v558
        %v561 = vmul.f32 %v555, %v559
        %v563 = vlaneseq
        %v564 = vshrl.u32 %v563, 7
        %v565 = vsub.s32 0, %v564
        %v566 = vrot.slane %v530, %v565
        %v568 = vmul.f32 %v560, %v566
        %v569 = vmul.f32 %v561, %v566
        %v571 = vlaneseq
        %v572 = vshrl.u32 %v571, 7
        %v573 = vsub.s32 0, %v572
        %v574 = vrot.slane %v531, %v573
        %v576 = vadd.f32 %v568, %v574
        %v577 = vadd.f32 %v569, %v574
        %v578 = vpack.c.bf16 %v577, %v576
        %v579 = vld [vmem:[%s6] sm:$0xff]
        %v580 = vld [vmem:[%s6 + $0x8] sm:$0xff]
        %v581 = vld [vmem:[%s6 + $0x10] sm:$0xff]
        %v582 = vld [vmem:[%s6 + $0x18] sm:$0xff]
        %v583 = vld [vmem:[%s6 + $0x20] sm:$0xff]
        %v584 = vld [vmem:[%s6 + $0x28] sm:$0xff]
        %v585 = vld [vmem:[%s6 + $0x30] sm:$0xff]
        %v586 = vld [vmem:[%s6 + $0x38] sm:$0xff]
        %v587 = vld [vmem:[%s7] sm:$0x3]
        %v589 = vlaneseq
        %v590 = vshrl.u32 %v589, 7
        %v591 = vsub.s32 0, %v590
        %v592 = vrot.slane %v587, %v591
        %v593 = vlaneseq
        %v594 = vshrl.u32 %v593, 7
        %v595 = vsub.s32 1, %v594
        %v596 = vrot.slane %v587, %v595
        %v607 = vunpack.c.l.b16 %v579
        %v608 = vunpack.c.h.b16 %v579
        %v609 = vunpack.c.l.b16 %v580
        %v610 = vunpack.c.h.b16 %v580
        %v611 = vunpack.c.l.b16 %v581
        %v612 = vunpack.c.h.b16 %v581
        %v613 = vunpack.c.l.b16 %v582
        %v614 = vunpack.c.h.b16 %v582
        %v615 = vunpack.c.l.b16 %v583
        %v616 = vunpack.c.h.b16 %v583
        %v617 = vunpack.c.l.b16 %v584
        %v618 = vunpack.c.h.b16 %v584
        %v619 = vunpack.c.l.b16 %v585
        %v620 = vunpack.c.h.b16 %v585
        %v621 = vunpack.c.l.b16 %v586
        %v622 = vunpack.c.h.b16 %v586
        %v623 = vpack.c.b16 %v609, %v607
        %v624 = vpack.c.b16 %v610, %v608
        %v625 = vpack.c.b16 %v613, %v611
        %v626 = vpack.c.b16 %v614, %v612
        %v627 = vpack.c.b16 %v617, %v615
        %v628 = vpack.c.b16 %v618, %v616
        %v629 = vpack.c.b16 %v621, %v619
        %v630 = vpack.c.b16 %v622, %v620
        %v640 = vsel %vm483, %v578, 0
        %642 = vmatprep.subr.bf16.mxu0 %v624
        %643 = vmatpush1.bf16.msra.mxu0 %v623
        %644 = vmatprep.subr.bf16.mxu0 %v626
        %645 = vmatpush1.bf16.msra.mxu0 %v625
        %646 = vmatprep.subr.bf16.mxu0 %v628
        %647 = vmatpush1.bf16.msra.mxu0 %v627
        %648 = vmatprep.subr.bf16.mxu0 %v630
        %649 = vmatpush1.bf16.msra.mxu0 %v629
        %650 = vmatprep.subr.bf16.mxu0 0
        %651 = vmatpush1.bf16.msra.mxu0 0
        %652 = vmatprep.subr.bf16.mxu0 0
        %653 = vmatpush1.bf16.msra.mxu0 0
        %654 = vmatprep.subr.bf16.mxu0 0
        %655 = vmatpush1.bf16.msra.mxu0 0
        %656 = vmatprep.subr.bf16.mxu0 0
        %657 = vmatpush1.bf16.msra.mxu0 0
        %658 = vmatprep.subr.bf16.mxu0 0
        %659 = vmatpush1.bf16.msra.mxu0 0
        %660 = vmatprep.subr.bf16.mxu0 0
        %661 = vmatpush1.bf16.msra.mxu0 0
        %662 = vmatprep.subr.bf16.mxu0 0
        %663 = vmatpush1.bf16.msra.mxu0 0
        %664 = vmatprep.subr.bf16.mxu0 0
        %665 = vmatpush1.bf16.msra.mxu0 0
        %666 = vmatprep.subr.bf16.mxu0 0
        %667 = vmatpush1.bf16.msra.mxu0 0
        %668 = vmatprep.subr.bf16.mxu0 0
        %669 = vmatpush1.bf16.msra.mxu0 0
        %670 = vmatprep.subr.bf16.mxu0 0
        %671 = vmatpush1.bf16.msra.mxu0 0
        %672 = vmatprep.subr.bf16.mxu0 0
        %673 = vmatpush1.bf16.msra.mxu0 0
        %674 = vmatprep.mubr.bf16.mxu0 0
        %675 = vmatmul.mubr.bf16.gmra.mrb[0].mxu0 %v640
        %v676 = vpop.f32.mrb[0].mxu0
        %v677 = vadd.f32 %v592, %v676
        %v678 = vpop.f32.mrb[0].mxu0
        %v679 = vadd.f32 %v596, %v678
        %v680 = vpop.f32.mrb[0].mxu0
        %v681 = vadd.f32 %v592, %v680
        %v682 = vpop.f32.mrb[0].mxu0
        %v683 = vadd.f32 %v596, %v682
        %684 = vdwg.mxu0
        %v685 = vmul.f32 %v677, 0.5
        %v686 = vmul.f32 %v679, 0.5
        %v687 = vmul.f32 %v681, 0.5
        %v688 = vmul.f32 %v683, 0.5
        %v689 = vmul.f32 %v677, 0.70710677
        %v690 = vmul.f32 %v679, 0.70710677
        %v691 = vmul.f32 %v681, 0.70710677
        %v692 = vmul.f32 %v683, 0.70710677
        %v693 = verf.f32.pop %v689
        %v694 = verf.f32.pop %v690
        %v695 = verf.f32.pop %v691
        %v696 = verf.f32.pop %v692
        %v697 = vadd.f32 %v693, 1.0
        %v698 = vadd.f32 %v694, 1.0
        %v699 = vadd.f32 %v695, 1.0
        %v700 = vadd.f32 %v696, 1.0
        %v701 = vmul.f32 %v685, %v697
        %v702 = vmul.f32 %v686, %v698
        %v703 = vmul.f32 %v687, %v699
        %v704 = vmul.f32 %v688, %v700
        %v705 = vpack.c.bf16 %v703, %v701
        %v706 = vpack.c.bf16 %v704, %v702
        %v707 = vld [vmem:[%s8] sm:$0xf]
        %v708 = vld [vmem:[%s8 + $0x4] sm:$0xf]
        %v709 = vld [vmem:[%s8 + $0x8] sm:$0xf]
        %v710 = vld [vmem:[%s8 + $0xc] sm:$0xf]
        %v711 = vld [vmem:[%s8 + $0x10] sm:$0xf]
        %v712 = vld [vmem:[%s8 + $0x14] sm:$0xf]
        %v713 = vld [vmem:[%s8 + $0x18] sm:$0xf]
        %v714 = vld [vmem:[%s8 + $0x1c] sm:$0xf]
        %v715 = vld [vmem:[%s8 + $0x20] sm:$0xf]
        %v716 = vld [vmem:[%s8 + $0x24] sm:$0xf]
        %v717 = vld [vmem:[%s8 + $0x28] sm:$0xf]
        %v718 = vld [vmem:[%s8 + $0x2c] sm:$0xf]
        %v719 = vld [vmem:[%s8 + $0x30] sm:$0xf]
        %v720 = vld [vmem:[%s8 + $0x34] sm:$0xf]
        %v721 = vld [vmem:[%s8 + $0x38] sm:$0xf]
        %v722 = vld [vmem:[%s8 + $0x3c] sm:$0xf]
        %v723 = vld [vmem:[%s8 + $0x40] sm:$0xf]
        %v724 = vld [vmem:[%s8 + $0x44] sm:$0xf]
        %v725 = vld [vmem:[%s8 + $0x48] sm:$0xf]
        %v726 = vld [vmem:[%s8 + $0x4c] sm:$0xf]
        %v727 = vld [vmem:[%s8 + $0x50] sm:$0xf]
        %v728 = vld [vmem:[%s8 + $0x54] sm:$0xf]
        %v729 = vld [vmem:[%s8 + $0x58] sm:$0xf]
        %v730 = vld [vmem:[%s8 + $0x5c] sm:$0xf]
        %v731 = vld [vmem:[%s8 + $0x60] sm:$0xf]
        %v732 = vld [vmem:[%s8 + $0x64] sm:$0xf]
        %v733 = vld [vmem:[%s8 + $0x68] sm:$0xf]
        %v734 = vld [vmem:[%s8 + $0x6c] sm:$0xf]
        %v735 = vld [vmem:[%s8 + $0x70] sm:$0xf]
        %v736 = vld [vmem:[%s8 + $0x74] sm:$0xf]
        %v737 = vld [vmem:[%s8 + $0x78] sm:$0xf]
        %v738 = vld [vmem:[%s8 + $0x7c] sm:$0xf]
        %v739 = vld [vmem:[%s9] sm:$0x1]
        %v741 = vlaneseq
        %v742 = vshrl.u32 %v741, 7
        %v743 = vsub.s32 0, %v742
        %v744 = vrot.slane %v739, %v743
        %v778 = vunpack.c.l.b16 %v707
        %v779 = vunpack.c.l.b16 %v708
        %v780 = vunpack.c.l.b16 %v709
        %v781 = vunpack.c.l.b16 %v710
        %v782 = vunpack.c.l.b16 %v711
        %v783 = vunpack.c.l.b16 %v712
        %v784 = vunpack.c.l.b16 %v713
        %v785 = vunpack.c.l.b16 %v714
        %v786 = vunpack.c.l.b16 %v715
        %v787 = vunpack.c.l.b16 %v716
        %v788 = vunpack.c.l.b16 %v717
        %v789 = vunpack.c.l.b16 %v718
        %v790 = vunpack.c.l.b16 %v719
        %v791 = vunpack.c.l.b16 %v720
        %v792 = vunpack.c.l.b16 %v721
        %v793 = vunpack.c.l.b16 %v722
        %v794 = vunpack.c.l.b16 %v723
        %v795 = vunpack.c.l.b16 %v724
        %v796 = vunpack.c.l.b16 %v725
        %v797 = vunpack.c.l.b16 %v726
        %v798 = vunpack.c.l.b16 %v727
        %v799 = vunpack.c.l.b16 %v728
        %v800 = vunpack.c.l.b16 %v729
        %v801 = vunpack.c.l.b16 %v730
        %v802 = vunpack.c.l.b16 %v731
        %v803 = vunpack.c.l.b16 %v732
        %v804 = vunpack.c.l.b16 %v733
        %v805 = vunpack.c.l.b16 %v734
        %v806 = vunpack.c.l.b16 %v735
        %v807 = vunpack.c.l.b16 %v736
        %v808 = vunpack.c.l.b16 %v737
        %v809 = vunpack.c.l.b16 %v738
        %v810 = vpack.c.b16 %v779, %v778
        %v811 = vpack.c.b16 %v781, %v780
        %v812 = vpack.c.b16 %v783, %v782
        %v813 = vpack.c.b16 %v785, %v784
        %v814 = vpack.c.b16 %v787, %v786
        %v815 = vpack.c.b16 %v789, %v788
        %v816 = vpack.c.b16 %v791, %v790
        %v817 = vpack.c.b16 %v793, %v792
        %v818 = vpack.c.b16 %v795, %v794
        %v819 = vpack.c.b16 %v797, %v796
        %v820 = vpack.c.b16 %v799, %v798
        %v821 = vpack.c.b16 %v801, %v800
        %v822 = vpack.c.b16 %v803, %v802
        %v823 = vpack.c.b16 %v805, %v804
        %v824 = vpack.c.b16 %v807, %v806
        %v825 = vpack.c.b16 %v809, %v808
        %842 = vmatprep.subr.bf16.mxu0 0
        %843 = vmatpush1.bf16.msra.mxu0 %v810
        %844 = vmatprep.subr.bf16.mxu0 0
        %845 = vmatpush1.bf16.msra.mxu0 %v811
        %846 = vmatprep.subr.bf16.mxu0 0
        %847 = vmatpush1.bf16.msra.mxu0 %v812
        %848 = vmatprep.subr.bf16.mxu0 0
        %849 = vmatpush1.bf16.msra.mxu0 %v813
        %850 = vmatprep.subr.bf16.mxu0 0
        %851 = vmatpush1.bf16.msra.mxu0 %v814
        %852 = vmatprep.subr.bf16.mxu0 0
        %853 = vmatpush1.bf16.msra.mxu0 %v815
        %854 = vmatprep.subr.bf16.mxu0 0
        %855 = vmatpush1.bf16.msra.mxu0 %v816
        %856 = vmatprep.subr.bf16.mxu0 0
        %857 = vmatpush1.bf16.msra.mxu0 %v817
        %858 = vmatprep.subr.bf16.mxu0 0
        %859 = vmatpush1.bf16.msra.mxu0 %v818
        %860 = vmatprep.subr.bf16.mxu0 0
        %861 = vmatpush1.bf16.msra.mxu0 %v819
        %862 = vmatprep.subr.bf16.mxu0 0
        %863 = vmatpush1.bf16.msra.mxu0 %v820
        %864 = vmatprep.subr.bf16.mxu0 0
        %865 = vmatpush1.bf16.msra.mxu0 %v821
        %866 = vmatprep.subr.bf16.mxu0 0
        %867 = vmatpush1.bf16.msra.mxu0 %v822
        %868 = vmatprep.subr.bf16.mxu0 0
        %869 = vmatpush1.bf16.msra.mxu0 %v823
        %870 = vmatprep.subr.bf16.mxu0 0
        %871 = vmatpush1.bf16.msra.mxu0 %v824
        %872 = vmatprep.subr.bf16.mxu0 0
        %873 = vmatpush1.bf16.msra.mxu0 %v825
        %874 = vmatprep.mubr.bf16.mxu0 %v706
        %875 = vmatmul.mubr.bf16.gmra.mrb[0].mxu0 %v705
        %v876 = vpop.f32.mrb[0].mxu0
        %v877 = vadd.f32 %v744, %v876
        %v878 = vpop.f32.mrb[0].mxu0
        %v879 = vpop.f32.mrb[0].mxu0
        %v880 = vadd.f32 %v744, %v879
        %v881 = vpop.f32.mrb[0].mxu0
        %882 = vdwg.mxu0
        %v883 = vadd.f32 %v528, %v877
        %v884 = vadd.f32 %v529, %v880
        %885 = vst.msk [vmem:[%s421] sm:$0xff] %vm483, %v883
        %886 = vst.msk [vmem:[%s421 + $0x8] sm:$0xff] %vm483, %v884
        %s887 = sand.u32 %s273, 1
        %s888 = scalar_lea.sflag [#allocation4], %s887
        %s889 = sand.u32 %s273, 1
        %s890 = smul.addr %s889, 16
        %s891 = scalar_lea.vmem [#allocation5], %s890
        // Predicated region
        $region65: #{_lambda_.5} parent=59 // pred_check
          %p892 = pneg %p283
        $region66: #{_lambda_.5} parent=59 // pred_check_branch
          %894 = sbr.rel (%p892) target = $region68
        $region67: #{_lambda_.5} parent=59 // pred_region
          %s895 = smul.u32 2, %s31
          %s897 = ssub.s32 256, 256
          %898 = vsyncadd %s888, %s897
          %s899 = smul.addr %s32, 2
          %s900 = sadd.s32 %s895, %s899
          %s901 = smul.addr %s900, 128
          %s902 = scalar_lea.hbm %s10, %s901
          %s903 = sshll.u32 %s891, 4
          %s904 = int_to_ptr.vmem [resolvable:$true] %s903
          %909 = dma.vmem_to_hbm [thread:$0]  %s904, 256, %s902, %s888, 128, 128, 8
        $region68: #{_lambda_.5} parent=59 // pred_fallthru
          _
      $region60: #{_lambda_.5} parent=5 // pred_fallthru
        _
      %p910 = scmp.le.s32.totalorder 2, %s22
      // Predicated region
      $region69: #{_lambda_.5} parent=5 // pred_check
        %p911 = pneg %p910
      $region70: #{_lambda_.5} parent=5 // pred_check_branch
        %913 = sbr.rel (%p911) target = $region72
      $region71: #{_lambda_.5} parent=5 // pred_region
        %s914 = ssub.s32 %s22, 2
        // Predicated region
        $region73: #{_lambda_.5} parent=71 // pred_check
          %p915 = pneg %p289
        $region74: #{_lambda_.5} parent=71 // pred_check_branch
          %917 = sbr.rel (%p915) target = $region76
        $region75: #{_lambda_.5} parent=71 // pred_region
          %s918 = sand.u32 %s274, 1
          %s919 = scalar_lea.sflag [#allocation4], %s918
          %s920 = sand.u32 %s274, 1
          %s921 = smul.addr %s920, 16
          %s922 = scalar_lea.vmem [#allocation5], %s921
          %923 = dma.done %s919, 256
        $region76: #{_lambda_.5} parent=71 // pred_fallthru
          _
      $region72: #{_lambda_.5} parent=5 // pred_fallthru
        _
    $region6: #{_lambda_.5} parent=1 // loop_footer
      %s26 = sadd.s32 1, %s22
    $region7: #{_lambda_.5} parent=1 // loop_footer_branch
      %21 = sbr.rel target = $region3
    $region8: #{_lambda_.5} parent=1 // loop_exit
      _
    %924 = vsyncpa [#allocation3], 1
    %s925 = scalar_lea.sflag [#allocation3], 1
    %926 = vsyncpa %s925, 1
    %927 = vsyncpa [#allocation4], 1
    %s928 = scalar_lea.sflag [#allocation4], 1
    %929 = vsyncpa %s928, 1

// kernel: _lambda_.3
$region0: #{_lambda_.3}
  #allocation0 [shape = 'u32[]', space=smem, size = 0x4, offset = 0x4, fixed_abs, tag = 'smem constant byte address 0x4 - core index']
  #allocation1 [shape = 'u32[144,128]{1,0:T(1,128)}', space=vmem, size = 0x12000, scoped, tag = 'internal scratch']
  %s0 = inlined_call_operand.vmem [shape: f32[2,16,64], index: 0, kind: input, shape index: {}]
  %s1 = inlined_call_operand.vmem [shape: f32[1,64], index: 1, kind: input, shape index: {}]
  %s2 = inlined_call_operand.vmem [shape: f32[1,64], index: 2, kind: input, shape index: {}]
  %s3 = inlined_call_operand.vmem [shape: bf16[64,64], index: 3, kind: input, shape index: {}]
  %s4 = inlined_call_operand.vmem [shape: bf16[64,64], index: 4, kind: input, shape index: {}]
  %s5 = inlined_call_operand.vmem [shape: bf16[64,64], index: 5, kind: input, shape index: {}]
  %s6 = inlined_call_operand.vmem [shape: bf16[2,16,64], index: 6, kind: output, shape index: {0}]
  %s7 = inlined_call_operand.vmem [shape: bf16[2,16,64], index: 7, kind: output, shape index: {1}]
  %s8 = inlined_call_operand.vmem [shape: bf16[2,16,64], index: 8, kind: output, shape index: {2}]
  %9 = xla_tuple %s6, %s7, %s8
  %s10 = sld [smem:[#allocation0]]
  $region73: #{_lambda_.3} parent=0
    _
  %s12 = ssub.s32 1, %s10
  %s13 = scalar_select 0, %s12, %s10
  loop: start=0, step=1, limit=4
  $region2: #{_lambda_.3} parent=0 // loop_pre_header
    _
  $region3: #{_lambda_.3} parent=0 // loop_header
    %s15 = sphi 0, %s19
    %p16 = scmp.ge.s32.totalorder %s15, 4
    %s22 = sphi 0, %s34
    %s23 = sphi 0, %s30
    %s24 = sphi 0, %s22
    %s25 = sphi 0, %s23
    %s26 = sphi 0, %s24
    %s27 = sphi 0, %s25
    %s39 = sphi 0, %s41
    %s42 = sphi 0, %s39
    %s43 = sphi 0, %s42
    %s59 = sphi 0, %s43
    %s63 = sphi 0, %s63
    %s65 = sphi 0, %s63
    %s66 = sphi 0, %s65
    %s80 = sphi 0, %s66
    %s84 = sphi 0, %s84
    %s86 = sphi 0, %s84
    %s87 = sphi 0, %s86
    %s101 = sphi 0, %s87
    %s105 = sphi 0, %s105
    %s107 = sphi 0, %s105
    %s108 = sphi 0, %s107
    %s122 = sphi 0, %s108
    %s126 = sphi 0, %s126
    %s128 = sphi 0, %s126
    %s129 = sphi 0, %s128
    %s143 = sphi 0, %s129
    %s147 = sphi 0, %s147
    %s149 = sphi 0, %s147
    %s150 = sphi 0, %s149
    %s164 = sphi 0, %s150
    %s172 = sphi 0, %s174
    %s175 = sphi 0, %s172
    %s176 = sphi 0, %s175
    %s192 = sphi 0, %s176
    %s200 = sphi 0, %s202
    %s203 = sphi 0, %s200
    %s204 = sphi 0, %s203
    %s220 = sphi 0, %s204
    %s228 = sphi 0, %s230
    %s231 = sphi 0, %s228
    %s232 = sphi 0, %s231
    %s248 = sphi 0, %s232
  $region4: #{_lambda_.3} parent=0 // loop_header_branch
    %18 = sbr.rel (%p16) target = $region8
  $region5: #{_lambda_.3} parent=0 // loop_body
    %s20 = ssub.s32 %s15, 1
    %s21 = ssub.s32 %s15, 2
    %s28 = sadd.s32 1, %s23
    %p29 = scmp.ge.s32.totalorder %s28, 2
    %s30 = scalar_select %p29, 0, %s28
    %s31 = sadd.s32 1, %s22
    %s32 = scalar_select %p29, %s31, %s22
    %p33 = scmp.ge.s32.totalorder %s32, 1
    %s34 = scalar_select %p33, 0, %s32
    %s35 = ssub.s32 %s23, %s30
    %s36 = ssub.s32 %s22, %s34
    %s37 = sor.u32 %s35, %s36
    %p38 = scmp.eq.s32.totalorder %s37, 0
    %s40 = sadd.s32 %s39, 1
    %s41 = scalar_select %p38, %s39, %s40
    %p44 = pneg %p38
    %p45 = scmp.eq.s32.totalorder %s15, 1
    %p46 = por %p44, %p45
    %p47 = scmp.ne.s32.totalorder %s39, %s42
    %p48 = scmp.eq.s32.totalorder %s15, 0
    %p49 = por %p47, %p48
    %p50 = scmp.ne.s32.totalorder %s39, %s42
    %p51 = scmp.eq.s32.totalorder %s20, 1
    %p52 = por %p50, %p51
    %p53 = scmp.ne.s32.totalorder %s42, %s43
    %p54 = scmp.eq.s32.totalorder %s20, 0
    %p55 = por %p53, %p54
    %p56 = scmp.ne.s32.totalorder %s42, %s43
    %p57 = scmp.eq.s32.totalorder %s21, 1
    %p58 = por %p56, %p57
    %p60 = scmp.ne.s32.totalorder %s43, %s59
    %p61 = scmp.eq.s32.totalorder %s21, 0
    %p62 = por %p60, %p61
    %s64 = sadd.s32 %s63, 1
    %p67 = scmp.eq.s32.totalorder %s15, 1
    %p68 = scmp.ne.s32.totalorder %s63, %s65
    %p69 = scmp.eq.s32.totalorder %s15, 0
    %p70 = por %p68, %p69
    %p71 = scmp.ne.s32.totalorder %s63, %s65
    %p72 = scmp.eq.s32.totalorder %s20, 1
    %p73 = por %p71, %p72
    %p74 = scmp.ne.s32.totalorder %s65, %s66
    %p75 = scmp.eq.s32.totalorder %s20, 0
    %p76 = por %p74, %p75
    %p77 = scmp.ne.s32.totalorder %s65, %s66
    %p78 = scmp.eq.s32.totalorder %s21, 1
    %p79 = por %p77, %p78
    %p81 = scmp.ne.s32.totalorder %s66, %s80
    %p82 = scmp.eq.s32.totalorder %s21, 0
    %p83 = por %p81, %p82
    %s85 = sadd.s32 %s84, 1
    %p88 = scmp.eq.s32.totalorder %s15, 1
    %p89 = scmp.ne.s32.totalorder %s84, %s86
    %p90 = scmp.eq.s32.totalorder %s15, 0
    %p91 = por %p89, %p90
    %p92 = scmp.ne.s32.totalorder %s84, %s86
    %p93 = scmp.eq.s32.totalorder %s20, 1
    %p94 = por %p92, %p93
    %p95 = scmp.ne.s32.totalorder %s86, %s87
    %p96 = scmp.eq.s32.totalorder %s20, 0
    %p97 = por %p95, %p96
    %p98 = scmp.ne.s32.totalorder %s86, %s87
    %p99 = scmp.eq.s32.totalorder %s21, 1
    %p100 = por %p98, %p99
    %p102 = scmp.ne.s32.totalorder %s87, %s101
    %p103 = scmp.eq.s32.totalorder %s21, 0
    %p104 = por %p102, %p103
    %s106 = sadd.s32 %s105, 1
    %p109 = scmp.eq.s32.totalorder %s15, 1
    %p110 = scmp.ne.s32.totalorder %s105, %s107
    %p111 = scmp.eq.s32.totalorder %s15, 0
    %p112 = por %p110, %p111
    %p113 = scmp.ne.s32.totalorder %s105, %s107
    %p114 = scmp.eq.s32.totalorder %s20, 1
    %p115 = por %p113, %p114
    %p116 = scmp.ne.s32.totalorder %s107, %s108
    %p117 = scmp.eq.s32.totalorder %s20, 0
    %p118 = por %p116, %p117
    %p119 = scmp.ne.s32.totalorder %s107, %s108
    %p120 = scmp.eq.s32.totalorder %s21, 1
    %p121 = por %p119, %p120
    %p123 = scmp.ne.s32.totalorder %s108, %s122
    %p124 = scmp.eq.s32.totalorder %s21, 0
    %p125 = por %p123, %p124
    %s127 = sadd.s32 %s126, 1
    %p130 = scmp.eq.s32.totalorder %s15, 1
    %p131 = scmp.ne.s32.totalorder %s126, %s128
    %p132 = scmp.eq.s32.totalorder %s15, 0
    %p133 = por %p131, %p132
    %p134 = scmp.ne.s32.totalorder %s126, %s128
    %p135 = scmp.eq.s32.totalorder %s20, 1
    %p136 = por %p134, %p135
    %p137 = scmp.ne.s32.totalorder %s128, %s129
    %p138 = scmp.eq.s32.totalorder %s20, 0
    %p139 = por %p137, %p138
    %p140 = scmp.ne.s32.totalorder %s128, %s129
    %p141 = scmp.eq.s32.totalorder %s21, 1
    %p142 = por %p140, %p141
    %p144 = scmp.ne.s32.totalorder %s129, %s143
    %p145 = scmp.eq.s32.totalorder %s21, 0
    %p146 = por %p144, %p145
    %s148 = sadd.s32 %s147, 1
    %p151 = scmp.eq.s32.totalorder %s15, 1
    %p152 = scmp.ne.s32.totalorder %s147, %s149
    %p153 = scmp.eq.s32.totalorder %s15, 0
    %p154 = por %p152, %p153
    %p155 = scmp.ne.s32.totalorder %s147, %s149
    %p156 = scmp.eq.s32.totalorder %s20, 1
    %p157 = por %p155, %p156
    %p158 = scmp.ne.s32.totalorder %s149, %s150
    %p159 = scmp.eq.s32.totalorder %s20, 0
    %p160 = por %p158, %p159
    %p161 = scmp.ne.s32.totalorder %s149, %s150
    %p162 = scmp.eq.s32.totalorder %s21, 1
    %p163 = por %p161, %p162
    %p165 = scmp.ne.s32.totalorder %s150, %s164
    %p166 = scmp.eq.s32.totalorder %s21, 0
    %p167 = por %p165, %p166
    %s168 = ssub.s32 %s23, %s30
    %s169 = ssub.s32 %s22, %s34
    %s170 = sor.u32 %s168, %s169
    %p171 = scmp.eq.s32.totalorder %s170, 0
    %s173 = sadd.s32 %s172, 1
    %s174 = scalar_select %p171, %s172, %s173
    %p177 = pneg %p171
    %p178 = scmp.eq.s32.totalorder %s15, 1
    %p179 = por %p177, %p178
    %p180 = scmp.ne.s32.totalorder %s172, %s175
    %p181 = scmp.eq.s32.totalorder %s15, 0
    %p182 = por %p180, %p181
    %p183 = scmp.ne.s32.totalorder %s172, %s175
    %p184 = scmp.eq.s32.totalorder %s20, 1
    %p185 = por %p183, %p184
    %p186 = scmp.ne.s32.totalorder %s175, %s176
    %p187 = scmp.eq.s32.totalorder %s20, 0
    %p188 = por %p186, %p187
    %p189 = scmp.ne.s32.totalorder %s175, %s176
    %p190 = scmp.eq.s32.totalorder %s21, 1
    %p191 = por %p189, %p190
    %p193 = scmp.ne.s32.totalorder %s176, %s192
    %p194 = scmp.eq.s32.totalorder %s21, 0
    %p195 = por %p193, %p194
    %s196 = ssub.s32 %s23, %s30
    %s197 = ssub.s32 %s22, %s34
    %s198 = sor.u32 %s196, %s197
    %p199 = scmp.eq.s32.totalorder %s198, 0
    %s201 = sadd.s32 %s200, 1
    %s202 = scalar_select %p199, %s200, %s201
    %p205 = pneg %p199
    %p206 = scmp.eq.s32.totalorder %s15, 1
    %p207 = por %p205, %p206
    %p208 = scmp.ne.s32.totalorder %s200, %s203
    %p209 = scmp.eq.s32.totalorder %s15, 0
    %p210 = por %p208, %p209
    %p211 = scmp.ne.s32.totalorder %s200, %s203
    %p212 = scmp.eq.s32.totalorder %s20, 1
    %p213 = por %p211, %p212
    %p214 = scmp.ne.s32.totalorder %s203, %s204
    %p215 = scmp.eq.s32.totalorder %s20, 0
    %p216 = por %p214, %p215
    %p217 = scmp.ne.s32.totalorder %s203, %s204
    %p218 = scmp.eq.s32.totalorder %s21, 1
    %p219 = por %p217, %p218
    %p221 = scmp.ne.s32.totalorder %s204, %s220
    %p222 = scmp.eq.s32.totalorder %s21, 0
    %p223 = por %p221, %p222
    %s224 = ssub.s32 %s23, %s30
    %s225 = ssub.s32 %s22, %s34
    %s226 = sor.u32 %s224, %s225
    %p227 = scmp.eq.s32.totalorder %s226, 0
    %s229 = sadd.s32 %s228, 1
    %s230 = scalar_select %p227, %s228, %s229
    %p233 = pneg %p227
    %p234 = scmp.eq.s32.totalorder %s15, 1
    %p235 = por %p233, %p234
    %p236 = scmp.ne.s32.totalorder %s228, %s231
    %p237 = scmp.eq.s32.totalorder %s15, 0
    %p238 = por %p236, %p237
    %p239 = scmp.ne.s32.totalorder %s228, %s231
    %p240 = scmp.eq.s32.totalorder %s20, 1
    %p241 = por %p239, %p240
    %p242 = scmp.ne.s32.totalorder %s231, %s232
    %p243 = scmp.eq.s32.totalorder %s20, 0
    %p244 = por %p242, %p243
    %p245 = scmp.ne.s32.totalorder %s231, %s232
    %p246 = scmp.eq.s32.totalorder %s21, 1
    %p247 = por %p245, %p246
    %p249 = scmp.ne.s32.totalorder %s232, %s248
    %p250 = scmp.eq.s32.totalorder %s21, 0
    %p251 = por %p249, %p250
    %p252 = scmp.le.s32.totalorder 1, %s15
    %p253 = scmp.lt.s32.totalorder %s15, 3
    %p254 = pnand %p252, %p253
    %p255 = pneg %p254
    // Predicated region
    $region9: #{_lambda_.3} parent=5 // pred_check
      _
    $region10: #{_lambda_.3} parent=5 // pred_check_branch
      %257 = sbr.rel (%p254) target = $region12
    $region11: #{_lambda_.3} parent=5 // pred_region
      %s258 = ssub.s32 %s15, 1
      // Predicated region
      $region13: #{_lambda_.3} parent=11 // pred_check
        %p259 = pneg %p76
      $region14: #{_lambda_.3} parent=11 // pred_check_branch
        %261 = sbr.rel (%p259) target = $region16
      $region15: #{_lambda_.3} parent=11 // pred_region
        _
      $region16: #{_lambda_.3} parent=11 // pred_fallthru
        _
      // Predicated region
      $region17: #{_lambda_.3} parent=11 // pred_check
        %p262 = pneg %p97
      $region18: #{_lambda_.3} parent=11 // pred_check_branch
        %264 = sbr.rel (%p262) target = $region20
      $region19: #{_lambda_.3} parent=11 // pred_region
        _
      $region20: #{_lambda_.3} parent=11 // pred_fallthru
        _
      // Predicated region
      $region21: #{_lambda_.3} parent=11 // pred_check
        %p265 = pneg %p118
      $region22: #{_lambda_.3} parent=11 // pred_check_branch
        %267 = sbr.rel (%p265) target = $region24
      $region23: #{_lambda_.3} parent=11 // pred_region
        _
      $region24: #{_lambda_.3} parent=11 // pred_fallthru
        _
      // Predicated region
      $region25: #{_lambda_.3} parent=11 // pred_check
        %p268 = pneg %p139
      $region26: #{_lambda_.3} parent=11 // pred_check_branch
        %270 = sbr.rel (%p268) target = $region28
      $region27: #{_lambda_.3} parent=11 // pred_region
        _
      $region28: #{_lambda_.3} parent=11 // pred_fallthru
        _
      // Predicated region
      $region29: #{_lambda_.3} parent=11 // pred_check
        %p271 = pneg %p160
      $region30: #{_lambda_.3} parent=11 // pred_check_branch
        %273 = sbr.rel (%p271) target = $region32
      $region31: #{_lambda_.3} parent=11 // pred_region
        _
      $region32: #{_lambda_.3} parent=11 // pred_fallthru
        _
    $region12: #{_lambda_.3} parent=5 // pred_fallthru
      _
    %p274 = scmp.lt.s32.totalorder %s15, 2
    // Predicated region
    $region33: #{_lambda_.3} parent=5 // pred_check
      %p275 = pneg %p274
    $region34: #{_lambda_.3} parent=5 // pred_check_branch
      %277 = sbr.rel (%p275) target = $region36
    $region35: #{_lambda_.3} parent=5 // pred_region
      // Predicated region
      $region37: #{_lambda_.3} parent=35 // pred_check
        %p278 = pneg %p49
      $region38: #{_lambda_.3} parent=35 // pred_check_branch
        %280 = sbr.rel (%p278) target = $region40
      $region39: #{_lambda_.3} parent=35 // pred_region
        %s281 = smul.u32 2, %s22
        %p282 = scmp.lt.s32.totalorder %s23, 1
        %s283 = scalar_select %p282, %s23, 1
        %p284 = scmp.lt.s32.totalorder %s281, 1
        %s285 = scalar_select %p284, %s281, 1
        %s286 = smul.addr %s283, 2
        %s287 = sadd.s32 %s285, %s286
        %s288 = smul.addr %s287, 8
        %s289 = scalar_lea.vmem %s0, %s288
        %s290 = smul.u32 2, %s22
      $region40: #{_lambda_.3} parent=35 // pred_fallthru
        _
    $region36: #{_lambda_.3} parent=5 // pred_fallthru
      _
    %p291 = scmp.le.s32.totalorder 1, %s15
    %p292 = scmp.lt.s32.totalorder %s15, 3
    %p293 = pnand %p291, %p292
    %p294 = pneg %p293
    // Predicated region
    $region41: #{_lambda_.3} parent=5 // pred_check
      _
    $region42: #{_lambda_.3} parent=5 // pred_check_branch
      %296 = sbr.rel (%p293) target = $region44
    $region43: #{_lambda_.3} parent=5 // pred_region
      %s297 = ssub.s32 %s15, 1
      %s298 = smul.u32 2, %s24
      %p299 = scmp.lt.s32.totalorder %s25, 1
      %s300 = scalar_select %p299, %s25, 1
      %p301 = scmp.lt.s32.totalorder %s298, 1
      %s302 = scalar_select %p301, %s298, 1
      %s303 = smul.addr %s300, 2
      %s304 = sadd.s32 %s302, %s303
      %s305 = smul.addr %s304, 8
      %s306 = scalar_lea.vmem %s0, %s305
      %p307 = pneg %p55
      %p308 = pneg %p52
      %p309 = pneg %p76
      %p310 = pneg %p73
      %p311 = pneg %p97
      %p312 = pneg %p94
      %p313 = pneg %p118
      %p314 = pneg %p115
      %p315 = pneg %p139
      %p316 = pneg %p136
      %p317 = pneg %p160
      %p318 = pneg %p157
      %p319 = pneg %p188
      %p320 = pneg %p185
      %s321 = smul.u32 2, %s24
      %p322 = scmp.lt.s32.totalorder %s25, 1
      %s323 = scalar_select %p322, %s25, 1
      %p324 = scmp.lt.s32.totalorder %s321, 1
      %s325 = scalar_select %p324, %s321, 1
      %s326 = smul.addr %s323, 2
      %s327 = sadd.s32 %s325, %s326
      %s328 = smul.addr %s327, 4
      %s329 = scalar_lea.vmem %s6, %s328
      %p330 = pneg %p216
      %p331 = pneg %p213
      %s332 = smul.u32 2, %s24
      %p333 = scmp.lt.s32.totalorder %s25, 1
      %s334 = scalar_select %p333, %s25, 1
      %p335 = scmp.lt.s32.totalorder %s332, 1
      %s336 = scalar_select %p335, %s332, 1
      %s337 = smul.addr %s334, 2
      %s338 = sadd.s32 %s336, %s337
      %s339 = smul.addr %s338, 4
      %s340 = scalar_lea.vmem %s7, %s339
      %p341 = pneg %p244
      %p342 = pneg %p241
      %s343 = smul.u32 2, %s24
      %p344 = scmp.lt.s32.totalorder %s25, 1
      %s345 = scalar_select %p344, %s25, 1
      %p346 = scmp.lt.s32.totalorder %s343, 1
      %s347 = scalar_select %p346, %s343, 1
      %s348 = smul.addr %s345, 2
      %s349 = sadd.s32 %s347, %s348
      %s350 = smul.addr %s349, 4
      %s351 = scalar_lea.vmem %s8, %s350
      %s352 = smul.u32 2, %s24
      %p353 = scmp.lt.s32.totalorder %s25, 1
      %s354 = scalar_select %p353, %s25, 1
      %p355 = scmp.lt.s32.totalorder %s352, 1
      %s356 = scalar_select %p355, %s352, 1
      %s357 = smul.addr %s354, 2
      %s358 = sadd.s32 %s356, %s357
      %s359 = smul.addr %s358, 8
      %s360 = scalar_lea.vmem %s0, %s359
      %s361 = smul.u32 2, %s24
      %s362 = smul.u32 2, %s24
      %p363 = scmp.lt.s32.totalorder %s25, 1
      %s364 = scalar_select %p363, %s25, 1
      %p365 = scmp.lt.s32.totalorder %s362, 1
      %s366 = scalar_select %p365, %s362, 1
      %s367 = smul.addr %s364, 2
      %s368 = sadd.s32 %s366, %s367
      %s369 = smul.addr %s368, 4
      %s370 = scalar_lea.vmem %s6, %s369
      %s371 = smul.u32 2, %s24
      %s372 = smul.u32 2, %s24
      %p373 = scmp.lt.s32.totalorder %s25, 1
      %s374 = scalar_select %p373, %s25, 1
      %p375 = scmp.lt.s32.totalorder %s372, 1
      %s376 = scalar_select %p375, %s372, 1
      %s377 = smul.addr %s374, 2
      %s378 = sadd.s32 %s376, %s377
      %s379 = smul.addr %s378, 4
      %s380 = scalar_lea.vmem %s7, %s379
      %s381 = smul.u32 2, %s24
      %s382 = smul.u32 2, %s24
      %p383 = scmp.lt.s32.totalorder %s25, 1
      %s384 = scalar_select %p383, %s25, 1
      %p385 = scmp.lt.s32.totalorder %s382, 1
      %s386 = scalar_select %p385, %s382, 1
      %s387 = smul.addr %s384, 2
      %s388 = sadd.s32 %s386, %s387
      %s389 = smul.addr %s388, 4
      %s390 = scalar_lea.vmem %s8, %s389
      %s391 = smul.u32 2, %s24
      %v393 = vld [vmem:[%s360] sm:$0xff]
      %v394 = vld [vmem:[%s360 + $0x8] sm:$0xff]
      %v395 = vld [vmem:[%s1] sm:$0x1]
      %v396 = vld [vmem:[%s2] sm:$0x1]
      %vm397 = vcmask 523264
      %v398 = vsel %vm397, %v393, 0.0
      %399 = vadd.xlane.f32.xlu0 %v398
      %v400 = vpop.xlane.xlu0 %399
      %v401 = vsel %vm397, %v394, 0.0
      %402 = vadd.xlane.f32.xlu0 %v401
      %v403 = vpop.xlane.xlu0 %402
      %v404 = vmul.f32 %v400, 0.015625
      %v405 = vmul.f32 %v403, 0.015625
      %v406 = vmul.f32 %v393, %v393
      %v407 = vmul.f32 %v394, %v394
      %v408 = vsel %vm397, %v406, 0.0
      %409 = vadd.xlane.f32.xlu0 %v408
      %v410 = vpop.xlane.xlu0 %409
      %v411 = vsel %vm397, %v407, 0.0
      %412 = vadd.xlane.f32.xlu0 %v411
      %v413 = vpop.xlane.xlu0 %412
      %v414 = vmul.f32 %v410, 0.015625
      %v415 = vmul.f32 %v413, 0.015625
      %v416 = vmul.f32 %v404, %v404
      %v417 = vmul.f32 %v405, %v405
      %v418 = vsub.f32 %v414, %v416
      %v419 = vsub.f32 %v415, %v417
      %v420 = vsub.f32 %v393, %v404
      %v421 = vsub.f32 %v394, %v405
      %v422 = vadd.f32 %v418, 1e-05
      %v423 = vadd.f32 %v419, 1e-05
      %v424 = vrsqrt.pop %v422
      %v425 = vrsqrt.pop %v423
      %v426 = vmul.f32 %v420, %v424
      %v427 = vmul.f32 %v421, %v425
      %v429 = vlaneseq
      %v430 = vshrl.u32 %v429, 7
      %v431 = vsub.s32 0, %v430
      %v432 = vrot.slane %v395, %v431
      %v434 = vmul.f32 %v426, %v432
      %v435 = vmul.f32 %v427, %v432
      %v437 = vlaneseq
      %v438 = vshrl.u32 %v437, 7
      %v439 = vsub.s32 0, %v438
      %v440 = vrot.slane %v396, %v439
      %v442 = vadd.f32 %v434, %v440
      %v443 = vadd.f32 %v435, %v440
      %v444 = vpack.c.bf16 %v443, %v442
      %v445 = vld [vmem:[%s3] sm:$0xf]
      %v446 = vld [vmem:[%s3 + $0x4] sm:$0xf]
      %v447 = vld [vmem:[%s3 + $0x8] sm:$0xf]
      %v448 = vld [vmem:[%s3 + $0xc] sm:$0xf]
      %v449 = vld [vmem:[%s3 + $0x10] sm:$0xf]
      %v450 = vld [vmem:[%s3 + $0x14] sm:$0xf]
      %v451 = vld [vmem:[%s3 + $0x18] sm:$0xf]
      %v452 = vld [vmem:[%s3 + $0x1c] sm:$0xf]
      %v461 = vunpack.c.l.b16 %v445
      %v462 = vunpack.c.l.b16 %v446
      %v463 = vunpack.c.l.b16 %v447
      %v464 = vunpack.c.l.b16 %v448
      %v465 = vunpack.c.l.b16 %v449
      %v466 = vunpack.c.l.b16 %v450
      %v467 = vunpack.c.l.b16 %v451
      %v468 = vunpack.c.l.b16 %v452
      %v469 = vpack.c.b16 %v462, %v461
      %v470 = vpack.c.b16 %v464, %v463
      %v471 = vpack.c.b16 %v466, %v465
      %v472 = vpack.c.b16 %v468, %v467
      %v478 = vsel %vm397, %v444, 0
      %480 = vmatprep.subr.bf16.mxu0 0
      %481 = vmatpush1.bf16.msra.mxu0 %v469
      %482 = vmatprep.subr.bf16.mxu0 0
      %483 = vmatpush1.bf16.msra.mxu0 %v470
      %484 = vmatprep.subr.bf16.mxu0 0
      %485 = vmatpush1.bf16.msra.mxu0 %v471
      %486 = vmatprep.subr.bf16.mxu0 0
      %487 = vmatpush1.bf16.msra.mxu0 %v472
      %488 = vmatprep.subr.bf16.mxu0 0
      %489 = vmatpush1.bf16.msra.mxu0 0
      %490 = vmatprep.subr.bf16.mxu0 0
      %491 = vmatpush1.bf16.msra.mxu0 0
      %492 = vmatprep.subr.bf16.mxu0 0
      %493 = vmatpush1.bf16.msra.mxu0 0
      %494 = vmatprep.subr.bf16.mxu0 0
      %495 = vmatpush1.bf16.msra.mxu0 0
      %496 = vmatprep.subr.bf16.mxu0 0
      %497 = vmatpush1.bf16.msra.mxu0 0
      %498 = vmatprep.subr.bf16.mxu0 0
      %499 = vmatpush1.bf16.msra.mxu0 0
      %500 = vmatprep.subr.bf16.mxu0 0
      %501 = vmatpush1.bf16.msra.mxu0 0
      %502 = vmatprep.subr.bf16.mxu0 0
      %503 = vmatpush1.bf16.msra.mxu0 0
      %504 = vmatprep.subr.bf16.mxu0 0
      %505 = vmatpush1.bf16.msra.mxu0 0
      %506 = vmatprep.subr.bf16.mxu0 0
      %507 = vmatpush1.bf16.msra.mxu0 0
      %508 = vmatprep.subr.bf16.mxu0 0
      %509 = vmatpush1.bf16.msra.mxu0 0
      %510 = vmatprep.subr.bf16.mxu0 0
      %511 = vmatpush1.bf16.msra.mxu0 0
      %512 = vmatprep.mubr.bf16.mxu0 0
      %513 = vmatmul.mubr.bf16.gmra.mrb[0].mxu0 %v478
      %v514 = vpop.f32.mrb[0].mxu0
      %v515 = vadd.f32 0.0, %v514
      %v516 = vpop.f32.mrb[0].mxu0
      %v517 = vpop.f32.mrb[0].mxu0
      %v518 = vadd.f32 0.0, %v517
      %v519 = vpop.f32.mrb[0].mxu0
      %520 = vdwg.mxu0
      %v521 = vpack.c.bf16 %v518, %v515
      %v523 = vunpack.c.l.b16 %v521
      %v524 = vunpack.c.h.b16 %v521
      %v525 = vpack.c.b16 %v523, %v523
      %v526 = vpack.c.b16 %v524, %v524
      %vm529 = vcmask 519168
      %530 = vst.msk [vmem:[%s370] sm:$0xf] %vm529, %v525
      %531 = vst.msk [vmem:[%s370 + $0x4] sm:$0xf] %vm529, %v526
      %v532 = vld [vmem:[%s4] sm:$0xf]
      %v533 = vld [vmem:[%s4 + $0x4] sm:$0xf]
      %v534 = vld [vmem:[%s4 + $0x8] sm:$0xf]
      %v535 = vld [vmem:[%s4 + $0xc] sm:$0xf]
      %v536 = vld [vmem:[%s4 + $0x10] sm:$0xf]
      %v537 = vld [vmem:[%s4 + $0x14] sm:$0xf]
      %v538 = vld [vmem:[%s4 + $0x18] sm:$0xf]
      %v539 = vld [vmem:[%s4 + $0x1c] sm:$0xf]
      %v548 = vunpack.c.l.b16 %v532
      %v549 = vunpack.c.l.b16 %v533
      %v550 = vunpack.c.l.b16 %v534
      %v551 = vunpack.c.l.b16 %v535
      %v552 = vunpack.c.l.b16 %v536
      %v553 = vunpack.c.l.b16 %v537
      %v554 = vunpack.c.l.b16 %v538
      %v555 = vunpack.c.l.b16 %v539
      %v556 = vpack.c.b16 %v549, %v548
      %v557 = vpack.c.b16 %v551, %v550
      %v558 = vpack.c.b16 %v553, %v552
      %v559 = vpack.c.b16 %v555, %v554
      %564 = vmatprep.subr.bf16.mxu0 0
      %565 = vmatpush1.bf16.msra.mxu0 %v556
      %566 = vmatprep.subr.bf16.mxu0 0
      %567 = vmatpush1.bf16.msra.mxu0 %v557
      %568 = vmatprep.subr.bf16.mxu0 0
      %569 = vmatpush1.bf16.msra.mxu0 %v558
      %570 = vmatprep.subr.bf16.mxu0 0
      %571 = vmatpush1.bf16.msra.mxu0 %v559
      %572 = vmatprep.subr.bf16.mxu0 0
      %573 = vmatpush1.bf16.msra.mxu0 0
      %574 = vmatprep.subr.bf16.mxu0 0
      %575 = vmatpush1.bf16.msra.mxu0 0
      %576 = vmatprep.subr.bf16.mxu0 0
      %577 = vmatpush1.bf16.msra.mxu0 0
      %578 = vmatprep.subr.bf16.mxu0 0
      %579 = vmatpush1.bf16.msra.mxu0 0
      %580 = vmatprep.subr.bf16.mxu0 0
      %581 = vmatpush1.bf16.msra.mxu0 0
      %582 = vmatprep.subr.bf16.mxu0 0
      %583 = vmatpush1.bf16.msra.mxu0 0
      %584 = vmatprep.subr.bf16.mxu0 0
      %585 = vmatpush1.bf16.msra.mxu0 0
      %586 = vmatprep.subr.bf16.mxu0 0
      %587 = vmatpush1.bf16.msra.mxu0 0
      %588 = vmatprep.subr.bf16.mxu0 0
      %589 = vmatpush1.bf16.msra.mxu0 0
      %590 = vmatprep.subr.bf16.mxu0 0
      %591 = vmatpush1.bf16.msra.mxu0 0
      %592 = vmatprep.subr.bf16.mxu0 0
      %593 = vmatpush1.bf16.msra.mxu0 0
      %594 = vmatprep.subr.bf16.mxu0 0
      %595 = vmatpush1.bf16.msra.mxu0 0
      %596 = vmatprep.mubr.bf16.mxu0 0
      %597 = vmatmul.mubr.bf16.gmra.mrb[0].mxu0 %v478
      %v598 = vpop.f32.mrb[0].mxu0
      %v599 = vadd.f32 0.0, %v598
      %v600 = vpop.f32.mrb[0].mxu0
      %v601 = vpop.f32.mrb[0].mxu0
      %v602 = vadd.f32 0.0, %v601
      %v603 = vpop.f32.mrb[0].mxu0
      %604 = vdwg.mxu0
      %v605 = vpack.c.bf16 %v602, %v599
      %v607 = vunpack.c.l.b16 %v605
      %v608 = vunpack.c.h.b16 %v605
      %v609 = vpack.c.b16 %v607, %v607
      %v610 = vpack.c.b16 %v608, %v608
      %613 = vst.msk [vmem:[%s380] sm:$0xf] %vm529, %v609
      %614 = vst.msk [vmem:[%s380 + $0x4] sm:$0xf] %vm529, %v610
      %v615 = vld [vmem:[%s5] sm:$0xf]
      %v616 = vld [vmem:[%s5 + $0x4] sm:$0xf]
      %v617 = vld [vmem:[%s5 + $0x8] sm:$0xf]
      %v618 = vld [vmem:[%s5 + $0xc] sm:$0xf]
      %v619 = vld [vmem:[%s5 + $0x10] sm:$0xf]
      %v620 = vld [vmem:[%s5 + $0x14] sm:$0xf]
      %v621 = vld [vmem:[%s5 + $0x18] sm:$0xf]
      %v622 = vld [vmem:[%s5 + $0x1c] sm:$0xf]
      %v631 = vunpack.c.l.b16 %v615
      %v632 = vunpack.c.l.b16 %v616
      %v633 = vunpack.c.l.b16 %v617
      %v634 = vunpack.c.l.b16 %v618
      %v635 = vunpack.c.l.b16 %v619
      %v636 = vunpack.c.l.b16 %v620
      %v637 = vunpack.c.l.b16 %v621
      %v638 = vunpack.c.l.b16 %v622
      %v639 = vpack.c.b16 %v632, %v631
      %v640 = vpack.c.b16 %v634, %v633
      %v641 = vpack.c.b16 %v636, %v635
      %v642 = vpack.c.b16 %v638, %v637
      %647 = vmatprep.subr.bf16.mxu0 0
      %648 = vmatpush1.bf16.msra.mxu0 %v639
      %649 = vmatprep.subr.bf16.mxu0 0
      %650 = vmatpush1.bf16.msra.mxu0 %v640
      %651 = vmatprep.subr.bf16.mxu0 0
      %652 = vmatpush1.bf16.msra.mxu0 %v641
      %653 = vmatprep.subr.bf16.mxu0 0
      %654 = vmatpush1.bf16.msra.mxu0 %v642
      %655 = vmatprep.subr.bf16.mxu0 0
      %656 = vmatpush1.bf16.msra.mxu0 0
      %657 = vmatprep.subr.bf16.mxu0 0
      %658 = vmatpush1.bf16.msra.mxu0 0
      %659 = vmatprep.subr.bf16.mxu0 0
      %660 = vmatpush1.bf16.msra.mxu0 0
      %661 = vmatprep.subr.bf16.mxu0 0
      %662 = vmatpush1.bf16.msra.mxu0 0
      %663 = vmatprep.subr.bf16.mxu0 0
      %664 = vmatpush1.bf16.msra.mxu0 0
      %665 = vmatprep.subr.bf16.mxu0 0
      %666 = vmatpush1.bf16.msra.mxu0 0
      %667 = vmatprep.subr.bf16.mxu0 0
      %668 = vmatpush1.bf16.msra.mxu0 0
      %669 = vmatprep.subr.bf16.mxu0 0
      %670 = vmatpush1.bf16.msra.mxu0 0
      %671 = vmatprep.subr.bf16.mxu0 0
      %672 = vmatpush1.bf16.msra.mxu0 0
      %673 = vmatprep.subr.bf16.mxu0 0
      %674 = vmatpush1.bf16.msra.mxu0 0
      %675 = vmatprep.subr.bf16.mxu0 0
      %676 = vmatpush1.bf16.msra.mxu0 0
      %677 = vmatprep.subr.bf16.mxu0 0
      %678 = vmatpush1.bf16.msra.mxu0 0
      %679 = vmatprep.mubr.bf16.mxu0 0
      %680 = vmatmul.mubr.bf16.gmra.mrb[0].mxu0 %v478
      %v681 = vpop.f32.mrb[0].mxu0
      %v682 = vadd.f32 0.0, %v681
      %v683 = vpop.f32.mrb[0].mxu0
      %v684 = vpop.f32.mrb[0].mxu0
      %v685 = vadd.f32 0.0, %v684
      %v686 = vpop.f32.mrb[0].mxu0
      %687 = vdwg.mxu0
      %v688 = vpack.c.bf16 %v685, %v682
      %v690 = vunpack.c.l.b16 %v688
      %v691 = vunpack.c.h.b16 %v688
      %v692 = vpack.c.b16 %v690, %v690
      %v693 = vpack.c.b16 %v691, %v691
      %696 = vst.msk [vmem:[%s390] sm:$0xf] %vm529, %v692
      %697 = vst.msk [vmem:[%s390 + $0x4] sm:$0xf] %vm529, %v693
      %s698 = smul.u32 2, %s24
      %p699 = scmp.lt.s32.totalorder %s25, 1
      %s700 = scalar_select %p699, %s25, 1
      %p701 = scmp.lt.s32.totalorder %s698, 1
      %s702 = scalar_select %p701, %s698, 1
      %s703 = smul.addr %s700, 2
      %s704 = sadd.s32 %s702, %s703
      %s705 = smul.addr %s704, 4
      %s706 = scalar_lea.vmem %s6, %s705
      %s707 = smul.u32 2, %s24
      %p708 = scmp.lt.s32.totalorder %s25, 1
      %s709 = scalar_select %p708, %s25, 1
      %p710 = scmp.lt.s32.totalorder %s707, 1
      %s711 = scalar_select %p710, %s707, 1
      %s712 = smul.addr %s709, 2
      %s713 = sadd.s32 %s711, %s712
      %s714 = smul.addr %s713, 4
      %s715 = scalar_lea.vmem %s7, %s714
      %s716 = smul.u32 2, %s24
      %p717 = scmp.lt.s32.totalorder %s25, 1
      %s718 = scalar_select %p717, %s25, 1
      %p719 = scmp.lt.s32.totalorder %s716, 1
      %s720 = scalar_select %p719, %s716, 1
      %s721 = smul.addr %s718, 2
      %s722 = sadd.s32 %s720, %s721
      %s723 = smul.addr %s722, 4
      %s724 = scalar_lea.vmem %s8, %s723
      // Predicated region
      $region45: #{_lambda_.3} parent=43 // pred_check
        %p725 = pneg %p185
      $region46: #{_lambda_.3} parent=43 // pred_check_branch
        %727 = sbr.rel (%p725) target = $region48
      $region47: #{_lambda_.3} parent=43 // pred_region
        %s728 = smul.u32 2, %s24
      $region48: #{_lambda_.3} parent=43 // pred_fallthru
        _
      // Predicated region
      $region49: #{_lambda_.3} parent=43 // pred_check
        %p729 = pneg %p213
      $region50: #{_lambda_.3} parent=43 // pred_check_branch
        %731 = sbr.rel (%p729) target = $region52
      $region51: #{_lambda_.3} parent=43 // pred_region
        %s732 = smul.u32 2, %s24
      $region52: #{_lambda_.3} parent=43 // pred_fallthru
        _
      // Predicated region
      $region53: #{_lambda_.3} parent=43 // pred_check
        %p733 = pneg %p241
      $region54: #{_lambda_.3} parent=43 // pred_check_branch
        %735 = sbr.rel (%p733) target = $region56
      $region55: #{_lambda_.3} parent=43 // pred_region
        %s736 = smul.u32 2, %s24
      $region56: #{_lambda_.3} parent=43 // pred_fallthru
        _
    $region44: #{_lambda_.3} parent=5 // pred_fallthru
      _
    %p737 = scmp.le.s32.totalorder 2, %s15
    // Predicated region
    $region57: #{_lambda_.3} parent=5 // pred_check
      %p738 = pneg %p737
    $region58: #{_lambda_.3} parent=5 // pred_check_branch
      %740 = sbr.rel (%p738) target = $region60
    $region59: #{_lambda_.3} parent=5 // pred_region
      %s741 = ssub.s32 %s15, 2
      // Predicated region
      $region61: #{_lambda_.3} parent=59 // pred_check
        %p742 = pneg %p191
      $region62: #{_lambda_.3} parent=59 // pred_check_branch
        %744 = sbr.rel (%p742) target = $region64
      $region63: #{_lambda_.3} parent=59 // pred_region
        %s745 = smul.u32 2, %s26
        %p746 = scmp.lt.s32.totalorder %s27, 1
        %s747 = scalar_select %p746, %s27, 1
        %p748 = scmp.lt.s32.totalorder %s745, 1
        %s749 = scalar_select %p748, %s745, 1
        %s750 = smul.addr %s747, 2
        %s751 = sadd.s32 %s749, %s750
        %s752 = smul.addr %s751, 4
        %s753 = scalar_lea.vmem %s6, %s752
      $region64: #{_lambda_.3} parent=59 // pred_fallthru
        _
      // Predicated region
      $region65: #{_lambda_.3} parent=59 // pred_check
        %p754 = pneg %p219
      $region66: #{_lambda_.3} parent=59 // pred_check_branch
        %756 = sbr.rel (%p754) target = $region68
      $region67: #{_lambda_.3} parent=59 // pred_region
        %s757 = smul.u32 2, %s26
        %p758 = scmp.lt.s32.totalorder %s27, 1
        %s759 = scalar_select %p758, %s27, 1
        %p760 = scmp.lt.s32.totalorder %s757, 1
        %s761 = scalar_select %p760, %s757, 1
        %s762 = smul.addr %s759, 2
        %s763 = sadd.s32 %s761, %s762
        %s764 = smul.addr %s763, 4
        %s765 = scalar_lea.vmem %s7, %s764
      $region68: #{_lambda_.3} parent=59 // pred_fallthru
        _
      // Predicated region
      $region69: #{_lambda_.3} parent=59 // pred_check
        %p766 = pneg %p247
      $region70: #{_lambda_.3} parent=59 // pred_check_branch
        %768 = sbr.rel (%p766) target = $region72
      $region71: #{_lambda_.3} parent=59 // pred_region
        %s769 = smul.u32 2, %s26
        %p770 = scmp.lt.s32.totalorder %s27, 1
        %s771 = scalar_select %p770, %s27, 1
        %p772 = scmp.lt.s32.totalorder %s769, 1
        %s773 = scalar_select %p772, %s769, 1
        %s774 = smul.addr %s771, 2
        %s775 = sadd.s32 %s773, %s774
        %s776 = smul.addr %s775, 4
        %s777 = scalar_lea.vmem %s8, %s776
      $region72: #{_lambda_.3} parent=59 // pred_fallthru
        _
    $region60: #{_lambda_.3} parent=5 // pred_fallthru
      _
  $region6: #{_lambda_.3} parent=0 // loop_footer
    %s19 = sadd.s32 1, %s15
  $region7: #{_lambda_.3} parent=0 // loop_footer_branch
    %14 = sbr.rel target = $region3
  $region8: #{_lambda_.3} parent=0 // loop_exit
    _

// kernel: _lambda_.4
$region0: #{_lambda_.4}
  #allocation0 [shape = 'u32[]', space=smem, size = 0x4, offset = 0x4, fixed_abs, tag = 'smem constant byte address 0x4 - core index']
  #allocation1 [shape = 'u32[144,128]{1,0:T(1,128)}', space=vmem, size = 0x12000, scoped, tag = 'internal scratch']
  %s0 = inlined_call_operand.vmem [shape: bf16[2,16,64], index: 0, kind: input, shape index: {}]
  %s1 = inlined_call_operand.vmem [shape: bf16[2,16,64], index: 1, kind: input, shape index: {}]
  %s2 = inlined_call_operand.vmem [shape: bf16[2,16,64], index: 2, kind: input, shape index: {}]
  %s3 = inlined_call_operand.vmem [shape: bf16[2,16,64], index: 3, kind: output, shape index: {}]
  %s4 = sld [smem:[#allocation0]]
  $region45: #{_lambda_.4} parent=0
    _
  %s6 = ssub.s32 1, %s4
  %s7 = scalar_select 0, %s6, %s4
  loop: start=0, step=1, limit=4
  $region2: #{_lambda_.4} parent=0 // loop_pre_header
    _
  $region3: #{_lambda_.4} parent=0 // loop_header
    %s9 = sphi 0, %s13
    %p10 = scmp.ge.s32.totalorder %s9, 4
    %s16 = sphi 0, %s28
    %s17 = sphi 0, %s24
    %s18 = sphi 0, %s16
    %s19 = sphi 0, %s17
    %s20 = sphi 0, %s18
    %s21 = sphi 0, %s19
    %s33 = sphi 0, %s35
    %s36 = sphi 0, %s33
    %s37 = sphi 0, %s36
    %s53 = sphi 0, %s37
    %s59 = sphi 0, %s61
    %s62 = sphi 0, %s59
    %s63 = sphi 0, %s62
    %s79 = sphi 0, %s63
    %s85 = sphi 0, %s87
    %s88 = sphi 0, %s85
    %s89 = sphi 0, %s88
    %s105 = sphi 0, %s89
    %s113 = sphi 0, %s115
    %s116 = sphi 0, %s113
    %s117 = sphi 0, %s116
    %s133 = sphi 0, %s117
  $region4: #{_lambda_.4} parent=0 // loop_header_branch
    %12 = sbr.rel (%p10) target = $region8
  $region5: #{_lambda_.4} parent=0 // loop_body
    %s14 = ssub.s32 %s9, 1
    %s15 = ssub.s32 %s9, 2
    %s22 = sadd.s32 1, %s17
    %p23 = scmp.ge.s32.totalorder %s22, 1
    %s24 = scalar_select %p23, 0, %s22
    %s25 = sadd.s32 1, %s16
    %s26 = scalar_select %p23, %s25, %s16
    %p27 = scmp.ge.s32.totalorder %s26, 2
    %s28 = scalar_select %p27, 0, %s26
    %s29 = ssub.s32 %s16, %s28
    %s30 = ssub.s32 %s17, %s24
    %s31 = sor.u32 %s29, %s30
    %p32 = scmp.eq.s32.totalorder %s31, 0
    %s34 = sadd.s32 %s33, 1
    %s35 = scalar_select %p32, %s33, %s34
    %p38 = pneg %p32
    %p39 = scmp.eq.s32.totalorder %s9, 1
    %p40 = por %p38, %p39
    %p41 = scmp.ne.s32.totalorder %s33, %s36
    %p42 = scmp.eq.s32.totalorder %s9, 0
    %p43 = por %p41, %p42
    %p44 = scmp.ne.s32.totalorder %s33, %s36
    %p45 = scmp.eq.s32.totalorder %s14, 1
    %p46 = por %p44, %p45
    %p47 = scmp.ne.s32.totalorder %s36, %s37
    %p48 = scmp.eq.s32.totalorder %s14, 0
    %p49 = por %p47, %p48
    %p50 = scmp.ne.s32.totalorder %s36, %s37
    %p51 = scmp.eq.s32.totalorder %s15, 1
    %p52 = por %p50, %p51
    %p54 = scmp.ne.s32.totalorder %s37, %s53
    %p55 = scmp.eq.s32.totalorder %s15, 0
    %p56 = por %p54, %p55
    %s57 = ssub.s32 %s16, %s28
    %p58 = scmp.eq.s32.totalorder %s57, 0
    %s60 = sadd.s32 %s59, 1
    %s61 = scalar_select %p58, %s59, %s60
    %p64 = pneg %p58
    %p65 = scmp.eq.s32.totalorder %s9, 1
    %p66 = por %p64, %p65
    %p67 = scmp.ne.s32.totalorder %s59, %s62
    %p68 = scmp.eq.s32.totalorder %s9, 0
    %p69 = por %p67, %p68
    %p70 = scmp.ne.s32.totalorder %s59, %s62
    %p71 = scmp.eq.s32.totalorder %s14, 1
    %p72 = por %p70, %p71
    %p73 = scmp.ne.s32.totalorder %s62, %s63
    %p74 = scmp.eq.s32.totalorder %s14, 0
    %p75 = por %p73, %p74
    %p76 = scmp.ne.s32.totalorder %s62, %s63
    %p77 = scmp.eq.s32.totalorder %s15, 1
    %p78 = por %p76, %p77
    %p80 = scmp.ne.s32.totalorder %s63, %s79
    %p81 = scmp.eq.s32.totalorder %s15, 0
    %p82 = por %p80, %p81
    %s83 = ssub.s32 %s16, %s28
    %p84 = scmp.eq.s32.totalorder %s83, 0
    %s86 = sadd.s32 %s85, 1
    %s87 = scalar_select %p84, %s85, %s86
    %p90 = pneg %p84
    %p91 = scmp.eq.s32.totalorder %s9, 1
    %p92 = por %p90, %p91
    %p93 = scmp.ne.s32.totalorder %s85, %s88
    %p94 = scmp.eq.s32.totalorder %s9, 0
    %p95 = por %p93, %p94
    %p96 = scmp.ne.s32.totalorder %s85, %s88
    %p97 = scmp.eq.s32.totalorder %s14, 1
    %p98 = por %p96, %p97
    %p99 = scmp.ne.s32.totalorder %s88, %s89
    %p100 = scmp.eq.s32.totalorder %s14, 0
    %p101 = por %p99, %p100
    %p102 = scmp.ne.s32.totalorder %s88, %s89
    %p103 = scmp.eq.s32.totalorder %s15, 1
    %p104 = por %p102, %p103
    %p106 = scmp.ne.s32.totalorder %s89, %s105
    %p107 = scmp.eq.s32.totalorder %s15, 0
    %p108 = por %p106, %p107
    %s109 = ssub.s32 %s16, %s28
    %s110 = ssub.s32 %s17, %s24
    %s111 = sor.u32 %s109, %s110
    %p112 = scmp.eq.s32.totalorder %s111, 0
    %s114 = sadd.s32 %s113, 1
    %s115 = scalar_select %p112, %s113, %s114
    %p118 = pneg %p112
    %p119 = scmp.eq.s32.totalorder %s9, 1
    %p120 = por %p118, %p119
    %p121 = scmp.ne.s32.totalorder %s113, %s116
    %p122 = scmp.eq.s32.totalorder %s9, 0
    %p123 = por %p121, %p122
    %p124 = scmp.ne.s32.totalorder %s113, %s116
    %p125 = scmp.eq.s32.totalorder %s14, 1
    %p126 = por %p124, %p125
    %p127 = scmp.ne.s32.totalorder %s116, %s117
    %p128 = scmp.eq.s32.totalorder %s14, 0
    %p129 = por %p127, %p128
    %p130 = scmp.ne.s32.totalorder %s116, %s117
    %p131 = scmp.eq.s32.totalorder %s15, 1
    %p132 = por %p130, %p131
    %p134 = scmp.ne.s32.totalorder %s117, %s133
    %p135 = scmp.eq.s32.totalorder %s15, 0
    %p136 = por %p134, %p135
    %p137 = scmp.le.s32.totalorder 1, %s9
    %p138 = scmp.lt.s32.totalorder %s9, 3
    %p139 = pnand %p137, %p138
    %p140 = pneg %p139
    // Predicated region
    $region9: #{_lambda_.4} parent=5 // pred_check
      _
    $region10: #{_lambda_.4} parent=5 // pred_check_branch
      %142 = sbr.rel (%p139) target = $region12
    $region11: #{_lambda_.4} parent=5 // pred_region
      %s143 = ssub.s32 %s9, 1
    $region12: #{_lambda_.4} parent=5 // pred_fallthru
      _
    %p144 = scmp.lt.s32.totalorder %s9, 2
    // Predicated region
    $region13: #{_lambda_.4} parent=5 // pred_check
      %p145 = pneg %p144
    $region14: #{_lambda_.4} parent=5 // pred_check_branch
      %147 = sbr.rel (%p145) target = $region16
    $region15: #{_lambda_.4} parent=5 // pred_region
      // Predicated region
      $region17: #{_lambda_.4} parent=15 // pred_check
        %p148 = pneg %p43
      $region18: #{_lambda_.4} parent=15 // pred_check_branch
        %150 = sbr.rel (%p148) target = $region20
      $region19: #{_lambda_.4} parent=15 // pred_region
        %s151 = smul.u32 2, %s17
        %p152 = scmp.lt.s32.totalorder %s16, 1
        %s153 = scalar_select %p152, %s16, 1
        %p154 = scmp.lt.s32.totalorder %s151, 1
        %s155 = scalar_select %p154, %s151, 1
        %s156 = smul.addr %s153, 2
        %s157 = sadd.s32 %s155, %s156
        %s158 = smul.addr %s157, 4
        %s159 = scalar_lea.vmem %s0, %s158
        %s160 = smul.u32 2, %s17
      $region20: #{_lambda_.4} parent=15 // pred_fallthru
        _
      // Predicated region
      $region21: #{_lambda_.4} parent=15 // pred_check
        %p161 = pneg %p69
      $region22: #{_lambda_.4} parent=15 // pred_check_branch
        %163 = sbr.rel (%p161) target = $region24
      $region23: #{_lambda_.4} parent=15 // pred_region
        %p164 = scmp.lt.s32.totalorder %s16, 1
        %s165 = scalar_select %p164, %s16, 1
        %s166 = smul.addr %s165, 2
        %s167 = smul.addr %s166, 4
        %s168 = scalar_lea.vmem %s1, %s167
      $region24: #{_lambda_.4} parent=15 // pred_fallthru
        _
      // Predicated region
      $region25: #{_lambda_.4} parent=15 // pred_check
        %p169 = pneg %p95
      $region26: #{_lambda_.4} parent=15 // pred_check_branch
        %171 = sbr.rel (%p169) target = $region28
      $region27: #{_lambda_.4} parent=15 // pred_region
        %p172 = scmp.lt.s32.totalorder %s16, 1
        %s173 = scalar_select %p172, %s16, 1
        %s174 = smul.addr %s173, 2
        %s175 = smul.addr %s174, 4
        %s176 = scalar_lea.vmem %s2, %s175
      $region28: #{_lambda_.4} parent=15 // pred_fallthru
        _
    $region16: #{_lambda_.4} parent=5 // pred_fallthru
      _
    %p177 = scmp.le.s32.totalorder 1, %s9
    %p178 = scmp.lt.s32.totalorder %s9, 3
    %p179 = pnand %p177, %p178
    %p180 = pneg %p179
    // Predicated region
    $region29: #{_lambda_.4} parent=5 // pred_check
      _
    $region30: #{_lambda_.4} parent=5 // pred_check_branch
      %182 = sbr.rel (%p179) target = $region32
    $region31: #{_lambda_.4} parent=5 // pred_region
      %s183 = ssub.s32 %s9, 1
      %s184 = smul.u32 2, %s19
      %p185 = scmp.lt.s32.totalorder %s18, 1
      %s186 = scalar_select %p185, %s18, 1
      %p187 = scmp.lt.s32.totalorder %s184, 1
      %s188 = scalar_select %p187, %s184, 1
      %s189 = smul.addr %s186, 2
      %s190 = sadd.s32 %s188, %s189
      %s191 = smul.addr %s190, 4
      %s192 = scalar_lea.vmem %s0, %s191
      %p193 = pneg %p49
      %p194 = pneg %p46
      %p195 = scmp.lt.s32.totalorder %s18, 1
      %s196 = scalar_select %p195, %s18, 1
      %s197 = smul.addr %s196, 2
      %s198 = smul.addr %s197, 4
      %s199 = scalar_lea.vmem %s1, %s198
      %p200 = pneg %p75
      %p201 = pneg %p72
      %p202 = scmp.lt.s32.totalorder %s18, 1
      %s203 = scalar_select %p202, %s18, 1
      %s204 = smul.addr %s203, 2
      %s205 = smul.addr %s204, 4
      %s206 = scalar_lea.vmem %s2, %s205
      %p207 = pneg %p101
      %p208 = pneg %p98
      %p209 = pneg %p129
      %p210 = pneg %p126
      %s211 = smul.u32 2, %s19
      %p212 = scmp.lt.s32.totalorder %s18, 1
      %s213 = scalar_select %p212, %s18, 1
      %p214 = scmp.lt.s32.totalorder %s211, 1
      %s215 = scalar_select %p214, %s211, 1
      %s216 = smul.addr %s213, 2
      %s217 = sadd.s32 %s215, %s216
      %s218 = smul.addr %s217, 4
      %s219 = scalar_lea.vmem %s3, %s218
      %s220 = smul.u32 2, %s19
      %p221 = scmp.lt.s32.totalorder %s18, 1
      %s222 = scalar_select %p221, %s18, 1
      %p223 = scmp.lt.s32.totalorder %s220, 1
      %s224 = scalar_select %p223, %s220, 1
      %s225 = smul.addr %s222, 2
      %s226 = sadd.s32 %s224, %s225
      %s227 = smul.addr %s226, 4
      %s228 = scalar_lea.vmem %s0, %s227
      %s229 = smul.u32 2, %s19
      %p230 = scmp.lt.s32.totalorder %s18, 1
      %s231 = scalar_select %p230, %s18, 1
      %s232 = smul.addr %s231, 2
      %s233 = smul.addr %s232, 4
      %s234 = scalar_lea.vmem %s1, %s233
      %p235 = scmp.lt.s32.totalorder %s18, 1
      %s236 = scalar_select %p235, %s18, 1
      %s237 = smul.addr %s236, 2
      %s238 = smul.addr %s237, 4
      %s239 = scalar_lea.vmem %s2, %s238
      %s240 = smul.u32 2, %s19
      %p241 = scmp.lt.s32.totalorder %s18, 1
      %s242 = scalar_select %p241, %s18, 1
      %p243 = scmp.lt.s32.totalorder %s240, 1
      %s244 = scalar_select %p243, %s240, 1
      %s245 = smul.addr %s242, 2
      %s246 = sadd.s32 %s244, %s245
      %s247 = smul.addr %s246, 4
      %s248 = scalar_lea.vmem %s3, %s247
      %s249 = smul.u32 2, %s19
      %v251 = vld [vmem:[%s228] sm:$0xf]
      %v252 = vld [vmem:[%s228 + $0x4] sm:$0xf]
      %v253 = vld [vmem:[%s234] sm:$0xf]
      %v254 = vld [vmem:[%s234 + $0x4] sm:$0xf]
      %v255 = vld [vmem:[%s239] sm:$0xf]
      %v256 = vld [vmem:[%s239 + $0x4] sm:$0xf]
      %v259 = vunpack.c.l.b16 %v251
      %v260 = vunpack.c.l.b16 %v252
      %v261 = vpack.c.b16 %v260, %v259
      %v264 = vunpack.c.l.b16 %v253
      %v265 = vunpack.c.l.b16 %v254
      %v266 = vpack.c.b16 %v265, %v264
      %vm267 = vcmask 130048
      %v269 = vsel %vm267, %v261, 0
      %v272 = vsel %vm267, %v266, 0
      %274 = vmatprep.subr.bf16.mxu0 0
      %275 = vmatpush1.bf16.xpose.msra.mxu0 %v272
      %276 = vmatprep.subr.bf16.mxu0 0
      %277 = vmatpush1.bf16.xpose.msra.mxu0 0
      %278 = vmatprep.subr.bf16.mxu0 0
      %279 = vmatpush1.bf16.xpose.msra.mxu0 0
      %280 = vmatprep.subr.bf16.mxu0 0
      %281 = vmatpush1.bf16.xpose.msra.mxu0 0
      %282 = vmatprep.subr.bf16.mxu0 0
      %283 = vmatpush1.bf16.xpose.msra.mxu0 0
      %284 = vmatprep.subr.bf16.mxu0 0
      %285 = vmatpush1.bf16.xpose.msra.mxu0 0
      %286 = vmatprep.subr.bf16.mxu0 0
      %287 = vmatpush1.bf16.xpose.msra.mxu0 0
      %288 = vmatprep.subr.bf16.mxu0 0
      %289 = vmatpush1.bf16.xpose.msra.mxu0 0
      %290 = vmatprep.subr.bf16.mxu0 0
      %291 = vmatpush1.bf16.xpose.msra.mxu0 0
      %292 = vmatprep.subr.bf16.mxu0 0
      %293 = vmatpush1.bf16.xpose.msra.mxu0 0
      %294 = vmatprep.subr.bf16.mxu0 0
      %295 = vmatpush1.bf16.xpose.msra.mxu0 0
      %296 = vmatprep.subr.bf16.mxu0 0
      %297 = vmatpush1.bf16.xpose.msra.mxu0 0
      %298 = vmatprep.subr.bf16.mxu0 0
      %299 = vmatpush1.bf16.xpose.msra.mxu0 0
      %300 = vmatprep.subr.bf16.mxu0 0
      %301 = vmatpush1.bf16.xpose.msra.mxu0 0
      %302 = vmatprep.subr.bf16.mxu0 0
      %303 = vmatpush1.bf16.xpose.msra.mxu0 0
      %304 = vmatprep.subr.bf16.mxu0 0
      %305 = vmatpush1.bf16.xpose.msra.mxu0 0
      %306 = vmatprep.mubr.bf16.mxu0 0
      %307 = vmatmul.mubr.bf16.gmra.mrb[0].mxu0 %v269
      %v308 = vpop.f32.mrb[0].mxu0
      %v309 = vadd.f32 0.0, %v308
      %v310 = vpop.f32.mrb[0].mxu0
      %v311 = vpop.f32.mrb[0].mxu0
      %v312 = vadd.f32 0.0, %v311
      %v313 = vpop.f32.mrb[0].mxu0
      %314 = vdwg.mxu0
      %v315 = vsel %vm267, %v309, -inf
      %316 = vmax.xlane.f32.xlu0 %v315
      %v317 = vpop.xlane.xlu0 %316
      %v318 = vsel %vm267, %v312, -inf
      %319 = vmax.xlane.f32.xlu0 %v318
      %v320 = vpop.xlane.xlu0 %319
      %v321 = vsub.f32 %v309, %v317
      %v322 = vsub.f32 %v312, %v320
      %v323 = vmul.f32 %v321, 1.442695
      %v324 = vpow.pop %v323
      %v325 = vmul.f32 %v322, 1.442695
      %v326 = vpow.pop %v325
      %v327 = vsel %vm267, %v324, 0.0
      %328 = vadd.xlane.f32.xlu0 %v327
      %v329 = vpop.xlane.xlu0 %328
      %v330 = vsel %vm267, %v326, 0.0
      %331 = vadd.xlane.f32.xlu0 %v330
      %v332 = vpop.xlane.xlu0 %331
      %v333 = vpack.c.bf16 %v326, %v324
      %v336 = vunpack.c.l.b16 %v255
      %v337 = vunpack.c.l.b16 %v256
      %v338 = vpack.c.b16 %v337, %v336
      %v341 = vsel %vm267, %v333, 0
      %343 = vmatprep.subr.bf16.mxu0 0
      %344 = vmatpush1.bf16.msra.mxu0 %v338
      %345 = vmatprep.subr.bf16.mxu0 0
      %346 = vmatpush1.bf16.msra.mxu0 0
      %347 = vmatprep.subr.bf16.mxu0 0
      %348 = vmatpush1.bf16.msra.mxu0 0
      %349 = vmatprep.subr.bf16.mxu0 0
      %350 = vmatpush1.bf16.msra.mxu0 0
      %351 = vmatprep.subr.bf16.mxu0 0
      %352 = vmatpush1.bf16.msra.mxu0 0
      %353 = vmatprep.subr.bf16.mxu0 0
      %354 = vmatpush1.bf16.msra.mxu0 0
      %355 = vmatprep.subr.bf16.mxu0 0
      %356 = vmatpush1.bf16.msra.mxu0 0
      %357 = vmatprep.subr.bf16.mxu0 0
      %358 = vmatpush1.bf16.msra.mxu0 0
      %359 = vmatprep.subr.bf16.mxu0 0
      %360 = vmatpush1.bf16.msra.mxu0 0
      %361 = vmatprep.subr.bf16.mxu0 0
      %362 = vmatpush1.bf16.msra.mxu0 0
      %363 = vmatprep.subr.bf16.mxu0 0
      %364 = vmatpush1.bf16.msra.mxu0 0
      %365 = vmatprep.subr.bf16.mxu0 0
      %366 = vmatpush1.bf16.msra.mxu0 0
      %367 = vmatprep.subr.bf16.mxu0 0
      %368 = vmatpush1.bf16.msra.mxu0 0
      %369 = vmatprep.subr.bf16.mxu0 0
      %370 = vmatpush1.bf16.msra.mxu0 0
      %371 = vmatprep.subr.bf16.mxu0 0
      %372 = vmatpush1.bf16.msra.mxu0 0
      %373 = vmatprep.subr.bf16.mxu0 0
      %374 = vmatpush1.bf16.msra.mxu0 0
      %375 = vmatprep.mubr.bf16.mxu0 0
      %376 = vmatmul.mubr.bf16.gmra.mrb[0].mxu0 %v341
      %v377 = vpop.f32.mrb[0].mxu0
      %v378 = vadd.f32 0.0, %v377
      %v379 = vpop.f32.mrb[0].mxu0
      %v380 = vpop.f32.mrb[0].mxu0
      %v381 = vadd.f32 0.0, %v380
      %v382 = vpop.f32.mrb[0].mxu0
      %383 = vdwg.mxu0
      %v384 = vrcp.pop %v329
      %v385 = vrcp.pop %v332
      %v386 = vmul.f32 %v378, %v384
      %v387 = vmul.f32 %v381, %v385
      %v388 = vpack.c.bf16 %v387, %v386
      %v390 = vunpack.c.l.b16 %v388
      %v391 = vunpack.c.h.b16 %v388
      %v392 = vpack.c.b16 %v390, %v390
      %v393 = vpack.c.b16 %v391, %v391
      %vm396 = vcmask 125952
      %397 = vst.msk [vmem:[%s248] sm:$0xf] %vm396, %v392
      %398 = vst.msk [vmem:[%s248 + $0x4] sm:$0xf] %vm396, %v393
      %v399 = vld [vmem:[%s228] sm:$0xf]
      %v400 = vld [vmem:[%s228 + $0x4] sm:$0xf]
      %v401 = vld [vmem:[%s234] sm:$0xf]
      %v402 = vld [vmem:[%s234 + $0x4] sm:$0xf]
      %v403 = vld [vmem:[%s239] sm:$0xf]
      %v404 = vld [vmem:[%s239 + $0x4] sm:$0xf]
      %v407 = vunpack.c.l.b16 %v399
      %v408 = vunpack.c.l.b16 %v400
      %v409 = vpack.c.b16 %v408, %v407
      %410 = vrot.lane.b32.xlu0 %v409, 112
      %v411 = vpop.permute.xlu0 %410
      %v414 = vunpack.c.l.b16 %v401
      %v415 = vunpack.c.l.b16 %v402
      %v416 = vpack.c.b16 %v415, %v414
      %417 = vrot.lane.b32.xlu0 %v416, 112
      %v418 = vpop.permute.xlu0 %417
      %v420 = vsel %vm267, %v411, 0
      %v423 = vsel %vm267, %v418, 0
      %425 = vmatprep.subr.bf16.mxu0 0
      %426 = vmatpush1.bf16.xpose.msra.mxu0 %v423
      %427 = vmatprep.subr.bf16.mxu0 0
      %428 = vmatpush1.bf16.xpose.msra.mxu0 0
      %429 = vmatprep.subr.bf16.mxu0 0
      %430 = vmatpush1.bf16.xpose.msra.mxu0 0
      %431 = vmatprep.subr.bf16.mxu0 0
      %432 = vmatpush1.bf16.xpose.msra.mxu0 0
      %433 = vmatprep.subr.bf16.mxu0 0
      %434 = vmatpush1.bf16.xpose.msra.mxu0 0
      %435 = vmatprep.subr.bf16.mxu0 0
      %436 = vmatpush1.bf16.xpose.msra.mxu0 0
      %437 = vmatprep.subr.bf16.mxu0 0
      %438 = vmatpush1.bf16.xpose.msra.mxu0 0
      %439 = vmatprep.subr.bf16.mxu0 0
      %440 = vmatpush1.bf16.xpose.msra.mxu0 0
      %441 = vmatprep.subr.bf16.mxu0 0
      %442 = vmatpush1.bf16.xpose.msra.mxu0 0
      %443 = vmatprep.subr.bf16.mxu0 0
      %444 = vmatpush1.bf16.xpose.msra.mxu0 0
      %445 = vmatprep.subr.bf16.mxu0 0
      %446 = vmatpush1.bf16.xpose.msra.mxu0 0
      %447 = vmatprep.subr.bf16.mxu0 0
      %448 = vmatpush1.bf16.xpose.msra.mxu0 0
      %449 = vmatprep.subr.bf16.mxu0 0
      %450 = vmatpush1.bf16.xpose.msra.mxu0 0
      %451 = vmatprep.subr.bf16.mxu0 0
      %452 = vmatpush1.bf16.xpose.msra.mxu0 0
      %453 = vmatprep.subr.bf16.mxu0 0
      %454 = vmatpush1.bf16.xpose.msra.mxu0 0
      %455 = vmatprep.subr.bf16.mxu0 0
      %456 = vmatpush1.bf16.xpose.msra.mxu0 0
      %457 = vmatprep.mubr.bf16.mxu0 0
      %458 = vmatmul.mubr.bf16.gmra.mrb[0].mxu0 %v420
      %v459 = vpop.f32.mrb[0].mxu0
      %v460 = vadd.f32 0.0, %v459
      %v461 = vpop.f32.mrb[0].mxu0
      %v462 = vpop.f32.mrb[0].mxu0
      %v463 = vadd.f32 0.0, %v462
      %v464 = vpop.f32.mrb[0].mxu0
      %465 = vdwg.mxu0
      %v466 = vsel %vm267, %v460, -inf
      %467 = vmax.xlane.f32.xlu0 %v466
      %v468 = vpop.xlane.xlu0 %467
      %v469 = vsel %vm267, %v463, -inf
      %470 = vmax.xlane.f32.xlu0 %v469
      %v471 = vpop.xlane.xlu0 %470
      %v472 = vsub.f32 %v460, %v468
      %v473 = vsub.f32 %v463, %v471
      %v474 = vmul.f32 %v472, 1.442695
      %v475 = vpow.pop %v474
      %v476 = vmul.f32 %v473, 1.442695
      %v477 = vpow.pop %v476
      %v478 = vsel %vm267, %v475, 0.0
      %479 = vadd.xlane.f32.xlu0 %v478
      %v480 = vpop.xlane.xlu0 %479
      %v481 = vsel %vm267, %v477, 0.0
      %482 = vadd.xlane.f32.xlu0 %v481
      %v483 = vpop.xlane.xlu0 %482
      %v484 = vpack.c.bf16 %v477, %v475
      %v487 = vunpack.c.l.b16 %v403
      %v488 = vunpack.c.l.b16 %v404
      %v489 = vpack.c.b16 %v488, %v487
      %490 = vrot.lane.b32.xlu0 %v489, 112
      %v491 = vpop.permute.xlu0 %490
      %v494 = vsel %vm267, %v484, 0
      %496 = vmatprep.subr.bf16.mxu0 0
      %497 = vmatpush1.bf16.msra.mxu0 %v491
      %498 = vmatprep.subr.bf16.mxu0 0
      %499 = vmatpush1.bf16.msra.mxu0 0
      %500 = vmatprep.subr.bf16.mxu0 0
      %501 = vmatpush1.bf16.msra.mxu0 0
      %502 = vmatprep.subr.bf16.mxu0 0
      %503 = vmatpush1.bf16.msra.mxu0 0
      %504 = vmatprep.subr.bf16.mxu0 0
      %505 = vmatpush1.bf16.msra.mxu0 0
      %506 = vmatprep.subr.bf16.mxu0 0
      %507 = vmatpush1.bf16.msra.mxu0 0
      %508 = vmatprep.subr.bf16.mxu0 0
      %509 = vmatpush1.bf16.msra.mxu0 0
      %510 = vmatprep.subr.bf16.mxu0 0
      %511 = vmatpush1.bf16.msra.mxu0 0
      %512 = vmatprep.subr.bf16.mxu0 0
      %513 = vmatpush1.bf16.msra.mxu0 0
      %514 = vmatprep.subr.bf16.mxu0 0
      %515 = vmatpush1.bf16.msra.mxu0 0
      %516 = vmatprep.subr.bf16.mxu0 0
      %517 = vmatpush1.bf16.msra.mxu0 0
      %518 = vmatprep.subr.bf16.mxu0 0
      %519 = vmatpush1.bf16.msra.mxu0 0
      %520 = vmatprep.subr.bf16.mxu0 0
      %521 = vmatpush1.bf16.msra.mxu0 0
      %522 = vmatprep.subr.bf16.mxu0 0
      %523 = vmatpush1.bf16.msra.mxu0 0
      %524 = vmatprep.subr.bf16.mxu0 0
      %525 = vmatpush1.bf16.msra.mxu0 0
      %526 = vmatprep.subr.bf16.mxu0 0
      %527 = vmatpush1.bf16.msra.mxu0 0
      %528 = vmatprep.mubr.bf16.mxu0 0
      %529 = vmatmul.mubr.bf16.gmra.mrb[0].mxu0 %v494
      %v530 = vpop.f32.mrb[0].mxu0
      %v531 = vadd.f32 0.0, %v530
      %v532 = vpop.f32.mrb[0].mxu0
      %v533 = vpop.f32.mrb[0].mxu0
      %v534 = vadd.f32 0.0, %v533
      %v535 = vpop.f32.mrb[0].mxu0
      %536 = vdwg.mxu0
      %v537 = vrcp.pop %v480
      %v538 = vrcp.pop %v483
      %v539 = vmul.f32 %v531, %v537
      %v540 = vmul.f32 %v534, %v538
      %v541 = vpack.c.bf16 %v540, %v539
      %v543 = vunpack.c.l.b16 %v541
      %v544 = vunpack.c.h.b16 %v541
      %v545 = vpack.c.b16 %v543, %v543
      %v546 = vpack.c.b16 %v544, %v544
      %547 = vrot.lane.b32.xlu0 %v545, 16
      %v548 = vpop.permute.xlu0 %547
      %549 = vrot.lane.b32.xlu0 %v546, 16
      %v550 = vpop.permute.xlu0 %549
      %vm553 = vcmask 257152
      %554 = vst.msk [vmem:[%s248] sm:$0xf] %vm553, %v548
      %555 = vst.msk [vmem:[%s248 + $0x4] sm:$0xf] %vm553, %v550
      %v556 = vld [vmem:[%s228] sm:$0xf]
      %v557 = vld [vmem:[%s228 + $0x4] sm:$0xf]
      %v558 = vld [vmem:[%s234] sm:$0xf]
      %v559 = vld [vmem:[%s234 + $0x4] sm:$0xf]
      %v560 = vld [vmem:[%s239] sm:$0xf]
      %v561 = vld [vmem:[%s239 + $0x4] sm:$0xf]
      %v564 = vunpack.c.l.b16 %v556
      %v565 = vunpack.c.l.b16 %v557
      %v566 = vpack.c.b16 %v565, %v564
      %567 = vrot.lane.b32.xlu0 %v566, 96
      %v568 = vpop.permute.xlu0 %567
      %v571 = vunpack.c.l.b16 %v558
      %v572 = vunpack.c.l.b16 %v559
      %v573 = vpack.c.b16 %v572, %v571
      %574 = vrot.lane.b32.xlu0 %v573, 96
      %v575 = vpop.permute.xlu0 %574
      %v577 = vsel %vm267, %v568, 0
      %v580 = vsel %vm267, %v575, 0
      %582 = vmatprep.subr.bf16.mxu0 0
      %583 = vmatpush1.bf16.xpose.msra.mxu0 %v580
      %584 = vmatprep.subr.bf16.mxu0 0
      %585 = vmatpush1.bf16.xpose.msra.mxu0 0
      %586 = vmatprep.subr.bf16.mxu0 0
      %587 = vmatpush1.bf16.xpose.msra.mxu0 0
      %588 = vmatprep.subr.bf16.mxu0 0
      %589 = vmatpush1.bf16.xpose.msra.mxu0 0
      %590 = vmatprep.subr.bf16.mxu0 0
      %591 = vmatpush1.bf16.xpose.msra.mxu0 0
      %592 = vmatprep.subr.bf16.mxu0 0
      %593 = vmatpush1.bf16.xpose.msra.mxu0 0
      %594 = vmatprep.subr.bf16.mxu0 0
      %595 = vmatpush1.bf16.xpose.msra.mxu0 0
      %596 = vmatprep.subr.bf16.mxu0 0
      %597 = vmatpush1.bf16.xpose.msra.mxu0 0
      %598 = vmatprep.subr.bf16.mxu0 0
      %599 = vmatpush1.bf16.xpose.msra.mxu0 0
      %600 = vmatprep.subr.bf16.mxu0 0
      %601 = vmatpush1.bf16.xpose.msra.mxu0 0
      %602 = vmatprep.subr.bf16.mxu0 0
      %603 = vmatpush1.bf16.xpose.msra.mxu0 0
      %604 = vmatprep.subr.bf16.mxu0 0
      %605 = vmatpush1.bf16.xpose.msra.mxu0 0
      %606 = vmatprep.subr.bf16.mxu0 0
      %607 = vmatpush1.bf16.xpose.msra.mxu0 0
      %608 = vmatprep.subr.bf16.mxu0 0
      %609 = vmatpush1.bf16.xpose.msra.mxu0 0
      %610 = vmatprep.subr.bf16.mxu0 0
      %611 = vmatpush1.bf16.xpose.msra.mxu0 0
      %612 = vmatprep.subr.bf16.mxu0 0
      %613 = vmatpush1.bf16.xpose.msra.mxu0 0
      %614 = vmatprep.mubr.bf16.mxu0 0
      %615 = vmatmul.mubr.bf16.gmra.mrb[0].mxu0 %v577
      %v616 = vpop.f32.mrb[0].mxu0
      %v617 = vadd.f32 0.0, %v616
      %v618 = vpop.f32.mrb[0].mxu0
      %v619 = vpop.f32.mrb[0].mxu0
      %v620 = vadd.f32 0.0, %v619
      %v621 = vpop.f32.mrb[0].mxu0
      %622 = vdwg.mxu0
      %v623 = vsel %vm267, %v617, -inf
      %624 = vmax.xlane.f32.xlu0 %v623
      %v625 = vpop.xlane.xlu0 %624
      %v626 = vsel %vm267, %v620, -inf
      %627 = vmax.xlane.f32.xlu0 %v626
      %v628 = vpop.xlane.xlu0 %627
      %v629 = vsub.f32 %v617, %v625
      %v630 = vsub.f32 %v620, %v628
      %v631 = vmul.f32 %v629, 1.442695
      %v632 = vpow.pop %v631
      %v633 = vmul.f32 %v630, 1.442695
      %v634 = vpow.pop %v633
      %v635 = vsel %vm267, %v632, 0.0
      %636 = vadd.xlane.f32.xlu0 %v635
      %v637 = vpop.xlane.xlu0 %636
      %v638 = vsel %vm267, %v634, 0.0
      %639 = vadd.xlane.f32.xlu0 %v638
      %v640 = vpop.xlane.xlu0 %639
      %v641 = vpack.c.bf16 %v634, %v632
      %v644 = vunpack.c.l.b16 %v560
      %v645 = vunpack.c.l.b16 %v561
      %v646 = vpack.c.b16 %v645, %v644
      %647 = vrot.lane.b32.xlu0 %v646, 96
      %v648 = vpop.permute.xlu0 %647
      %v651 = vsel %vm267, %v641, 0
      %653 = vmatprep.subr.bf16.mxu0 0
      %654 = vmatpush1.bf16.msra.mxu0 %v648
      %655 = vmatprep.subr.bf16.mxu0 0
      %656 = vmatpush1.bf16.msra.mxu0 0
      %657 = vmatprep.subr.bf16.mxu0 0
      %658 = vmatpush1.bf16.msra.mxu0 0
      %659 = vmatprep.subr.bf16.mxu0 0
      %660 = vmatpush1.bf16.msra.mxu0 0
      %661 = vmatprep.subr.bf16.mxu0 0
      %662 = vmatpush1.bf16.msra.mxu0 0
      %663 = vmatprep.subr.bf16.mxu0 0
      %664 = vmatpush1.bf16.msra.mxu0 0
      %665 = vmatprep.subr.bf16.mxu0 0
      %666 = vmatpush1.bf16.msra.mxu0 0
      %667 = vmatprep.subr.bf16.mxu0 0
      %668 = vmatpush1.bf16.msra.mxu0 0
      %669 = vmatprep.subr.bf16.mxu0 0
      %670 = vmatpush1.bf16.msra.mxu0 0
      %671 = vmatprep.subr.bf16.mxu0 0
      %672 = vmatpush1.bf16.msra.mxu0 0
      %673 = vmatprep.subr.bf16.mxu0 0
      %674 = vmatpush1.bf16.msra.mxu0 0
      %675 = vmatprep.subr.bf16.mxu0 0
      %676 = vmatpush1.bf16.msra.mxu0 0
      %677 = vmatprep.subr.bf16.mxu0 0
      %678 = vmatpush1.bf16.msra.mxu0 0
      %679 = vmatprep.subr.bf16.mxu0 0
      %680 = vmatpush1.bf16.msra.mxu0 0
      %681 = vmatprep.subr.bf16.mxu0 0
      %682 = vmatpush1.bf16.msra.mxu0 0
      %683 = vmatprep.subr.bf16.mxu0 0
      %684 = vmatpush1.bf16.msra.mxu0 0
      %685 = vmatprep.mubr.bf16.mxu0 0
      %686 = vmatmul.mubr.bf16.gmra.mrb[0].mxu0 %v651
      %v687 = vpop.f32.mrb[0].mxu0
      %v688 = vadd.f32 0.0, %v687
      %v689 = vpop.f32.mrb[0].mxu0
      %v690 = vpop.f32.mrb[0].mxu0
      %v691 = vadd.f32 0.0, %v690
      %v692 = vpop.f32.mrb[0].mxu0
      %693 = vdwg.mxu0
      %v694 = vrcp.pop %v637
      %v695 = vrcp.pop %v640
      %v696 = vmul.f32 %v688, %v694
      %v697 = vmul.f32 %v691, %v695
      %v698 = vpack.c.bf16 %v697, %v696
      %v700 = vunpack.c.l.b16 %v698
      %v701 = vunpack.c.h.b16 %v698
      %v702 = vpack.c.b16 %v700, %v700
      %v703 = vpack.c.b16 %v701, %v701
      %704 = vrot.lane.b32.xlu0 %v702, 32
      %v705 = vpop.permute.xlu0 %704
      %706 = vrot.lane.b32.xlu0 %v703, 32
      %v707 = vpop.permute.xlu0 %706
      %vm710 = vcmask 388352
      %711 = vst.msk [vmem:[%s248] sm:$0xf] %vm710, %v705
      %712 = vst.msk [vmem:[%s248 + $0x4] sm:$0xf] %vm710, %v707
      %v713 = vld [vmem:[%s228] sm:$0xf]
      %v714 = vld [vmem:[%s228 + $0x4] sm:$0xf]
      %v715 = vld [vmem:[%s234] sm:$0xf]
      %v716 = vld [vmem:[%s234 + $0x4] sm:$0xf]
      %v717 = vld [vmem:[%s239] sm:$0xf]
      %v718 = vld [vmem:[%s239 + $0x4] sm:$0xf]
      %v721 = vunpack.c.l.b16 %v713
      %v722 = vunpack.c.l.b16 %v714
      %v723 = vpack.c.b16 %v722, %v721
      %724 = vrot.lane.b32.xlu0 %v723, 80
      %v725 = vpop.permute.xlu0 %724
      %v728 = vunpack.c.l.b16 %v715
      %v729 = vunpack.c.l.b16 %v716
      %v730 = vpack.c.b16 %v729, %v728
      %731 = vrot.lane.b32.xlu0 %v730, 80
      %v732 = vpop.permute.xlu0 %731
      %v734 = vsel %vm267, %v725, 0
      %v737 = vsel %vm267, %v732, 0
      %739 = vmatprep.subr.bf16.mxu0 0
      %740 = vmatpush1.bf16.xpose.msra.mxu0 %v737
      %741 = vmatprep.subr.bf16.mxu0 0
      %742 = vmatpush1.bf16.xpose.msra.mxu0 0
      %743 = vmatprep.subr.bf16.mxu0 0
      %744 = vmatpush1.bf16.xpose.msra.mxu0 0
      %745 = vmatprep.subr.bf16.mxu0 0
      %746 = vmatpush1.bf16.xpose.msra.mxu0 0
      %747 = vmatprep.subr.bf16.mxu0 0
      %748 = vmatpush1.bf16.xpose.msra.mxu0 0
      %749 = vmatprep.subr.bf16.mxu0 0
      %750 = vmatpush1.bf16.xpose.msra.mxu0 0
      %751 = vmatprep.subr.bf16.mxu0 0
      %752 = vmatpush1.bf16.xpose.msra.mxu0 0
      %753 = vmatprep.subr.bf16.mxu0 0
      %754 = vmatpush1.bf16.xpose.msra.mxu0 0
      %755 = vmatprep.subr.bf16.mxu0 0
      %756 = vmatpush1.bf16.xpose.msra.mxu0 0
      %757 = vmatprep.subr.bf16.mxu0 0
      %758 = vmatpush1.bf16.xpose.msra.mxu0 0
      %759 = vmatprep.subr.bf16.mxu0 0
      %760 = vmatpush1.bf16.xpose.msra.mxu0 0
      %761 = vmatprep.subr.bf16.mxu0 0
      %762 = vmatpush1.bf16.xpose.msra.mxu0 0
      %763 = vmatprep.subr.bf16.mxu0 0
      %764 = vmatpush1.bf16.xpose.msra.mxu0 0
      %765 = vmatprep.subr.bf16.mxu0 0
      %766 = vmatpush1.bf16.xpose.msra.mxu0 0
      %767 = vmatprep.subr.bf16.mxu0 0
      %768 = vmatpush1.bf16.xpose.msra.mxu0 0
      %769 = vmatprep.subr.bf16.mxu0 0
      %770 = vmatpush1.bf16.xpose.msra.mxu0 0
      %771 = vmatprep.mubr.bf16.mxu0 0
      %772 = vmatmul.mubr.bf16.gmra.mrb[0].mxu0 %v734
      %v773 = vpop.f32.mrb[0].mxu0
      %v774 = vadd.f32 0.0, %v773
      %v775 = vpop.f32.mrb[0].mxu0
      %v776 = vpop.f32.mrb[0].mxu0
      %v777 = vadd.f32 0.0, %v776
      %v778 = vpop.f32.mrb[0].mxu0
      %779 = vdwg.mxu0
      %v780 = vsel %vm267, %v774, -inf
      %781 = vmax.xlane.f32.xlu0 %v780
      %v782 = vpop.xlane.xlu0 %781
      %v783 = vsel %vm267, %v777, -inf
      %784 = vmax.xlane.f32.xlu0 %v783
      %v785 = vpop.xlane.xlu0 %784
      %v786 = vsub.f32 %v774, %v782
      %v787 = vsub.f32 %v777, %v785
      %v788 = vmul.f32 %v786, 1.442695
      %v789 = vpow.pop %v788
      %v790 = vmul.f32 %v787, 1.442695
      %v791 = vpow.pop %v790
      %v792 = vsel %vm267, %v789, 0.0
      %793 = vadd.xlane.f32.xlu0 %v792
      %v794 = vpop.xlane.xlu0 %793
      %v795 = vsel %vm267, %v791, 0.0
      %796 = vadd.xlane.f32.xlu0 %v795
      %v797 = vpop.xlane.xlu0 %796
      %v798 = vpack.c.bf16 %v791, %v789
      %v801 = vunpack.c.l.b16 %v717
      %v802 = vunpack.c.l.b16 %v718
      %v803 = vpack.c.b16 %v802, %v801
      %804 = vrot.lane.b32.xlu0 %v803, 80
      %v805 = vpop.permute.xlu0 %804
      %v808 = vsel %vm267, %v798, 0
      %810 = vmatprep.subr.bf16.mxu0 0
      %811 = vmatpush1.bf16.msra.mxu0 %v805
      %812 = vmatprep.subr.bf16.mxu0 0
      %813 = vmatpush1.bf16.msra.mxu0 0
      %814 = vmatprep.subr.bf16.mxu0 0
      %815 = vmatpush1.bf16.msra.mxu0 0
      %816 = vmatprep.subr.bf16.mxu0 0
      %817 = vmatpush1.bf16.msra.mxu0 0
      %818 = vmatprep.subr.bf16.mxu0 0
      %819 = vmatpush1.bf16.msra.mxu0 0
      %820 = vmatprep.subr.bf16.mxu0 0
      %821 = vmatpush1.bf16.msra.mxu0 0
      %822 = vmatprep.subr.bf16.mxu0 0
      %823 = vmatpush1.bf16.msra.mxu0 0
      %824 = vmatprep.subr.bf16.mxu0 0
      %825 = vmatpush1.bf16.msra.mxu0 0
      %826 = vmatprep.subr.bf16.mxu0 0
      %827 = vmatpush1.bf16.msra.mxu0 0
      %828 = vmatprep.subr.bf16.mxu0 0
      %829 = vmatpush1.bf16.msra.mxu0 0
      %830 = vmatprep.subr.bf16.mxu0 0
      %831 = vmatpush1.bf16.msra.mxu0 0
      %832 = vmatprep.subr.bf16.mxu0 0
      %833 = vmatpush1.bf16.msra.mxu0 0
      %834 = vmatprep.subr.bf16.mxu0 0
      %835 = vmatpush1.bf16.msra.mxu0 0
      %836 = vmatprep.subr.bf16.mxu0 0
      %837 = vmatpush1.bf16.msra.mxu0 0
      %838 = vmatprep.subr.bf16.mxu0 0
      %839 = vmatpush1.bf16.msra.mxu0 0
      %840 = vmatprep.subr.bf16.mxu0 0
      %841 = vmatpush1.bf16.msra.mxu0 0
      %842 = vmatprep.mubr.bf16.mxu0 0
      %843 = vmatmul.mubr.bf16.gmra.mrb[0].mxu0 %v808
      %v844 = vpop.f32.mrb[0].mxu0
      %v845 = vadd.f32 0.0, %v844
      %v846 = vpop.f32.mrb[0].mxu0
      %v847 = vpop.f32.mrb[0].mxu0
      %v848 = vadd.f32 0.0, %v847
      %v849 = vpop.f32.mrb[0].mxu0
      %850 = vdwg.mxu0
      %v851 = vrcp.pop %v794
      %v852 = vrcp.pop %v797
      %v853 = vmul.f32 %v845, %v851
      %v854 = vmul.f32 %v848, %v852
      %v855 = vpack.c.bf16 %v854, %v853
      %v857 = vunpack.c.l.b16 %v855
      %v858 = vunpack.c.h.b16 %v855
      %v859 = vpack.c.b16 %v857, %v857
      %v860 = vpack.c.b16 %v858, %v858
      %861 = vrot.lane.b32.xlu0 %v859, 48
      %v862 = vpop.permute.xlu0 %861
      %863 = vrot.lane.b32.xlu0 %v860, 48
      %v864 = vpop.permute.xlu0 %863
      %vm867 = vcmask 519552
      %868 = vst.msk [vmem:[%s248] sm:$0xf] %vm867, %v862
      %869 = vst.msk [vmem:[%s248 + $0x4] sm:$0xf] %vm867, %v864
      %s870 = smul.u32 2, %s19
      %p871 = scmp.lt.s32.totalorder %s18, 1
      %s872 = scalar_select %p871, %s18, 1
      %p873 = scmp.lt.s32.totalorder %s870, 1
      %s874 = scalar_select %p873, %s870, 1
      %s875 = smul.addr %s872, 2
      %s876 = sadd.s32 %s874, %s875
      %s877 = smul.addr %s876, 4
      %s878 = scalar_lea.vmem %s3, %s877
      // Predicated region
      $region33: #{_lambda_.4} parent=31 // pred_check
        %p879 = pneg %p126
      $region34: #{_lambda_.4} parent=31 // pred_check_branch
        %881 = sbr.rel (%p879) target = $region36
      $region35: #{_lambda_.4} parent=31 // pred_region
        %s882 = smul.u32 2, %s19
      $region36: #{_lambda_.4} parent=31 // pred_fallthru
        _
    $region32: #{_lambda_.4} parent=5 // pred_fallthru
      _
    %p883 = scmp.le.s32.totalorder 2, %s9
    // Predicated region
    $region37: #{_lambda_.4} parent=5 // pred_check
      %p884 = pneg %p883
    $region38: #{_lambda_.4} parent=5 // pred_check_branch
      %886 = sbr.rel (%p884) target = $region40
    $region39: #{_lambda_.4} parent=5 // pred_region
      %s887 = ssub.s32 %s9, 2
      // Predicated region
      $region41: #{_lambda_.4} parent=39 // pred_check
        %p888 = pneg %p132
      $region42: #{_lambda_.4} parent=39 // pred_check_branch
        %890 = sbr.rel (%p888) target = $region44
      $region43: #{_lambda_.4} parent=39 // pred_region
        %s891 = smul.u32 2, %s21
        %p892 = scmp.lt.s32.totalorder %s20, 1
        %s893 = scalar_select %p892, %s20, 1
        %p894 = scmp.lt.s32.totalorder %s891, 1
        %s895 = scalar_select %p894, %s891, 1
        %s896 = smul.addr %s893, 2
        %s897 = sadd.s32 %s895, %s896
        %s898 = smul.addr %s897, 4
        %s899 = scalar_lea.vmem %s3, %s898
      $region44: #{_lambda_.4} parent=39 // pred_fallthru
        _
    $region40: #{_lambda_.4} parent=5 // pred_fallthru
      _
  $region6: #{_lambda_.4} parent=0 // loop_footer
    %s13 = sadd.s32 1, %s9
  $region7: #{_lambda_.4} parent=0 // loop_footer_branch
    %8 = sbr.rel target = $region3
  $region8: #{_lambda_.4} parent=0 // loop_exit
    _

</llo_original>
